<compile_context>
chip_gen: v5e
topology: v5e:2x2
jax: 0.10.0
libtpu: 0.0.40
codegen_flags: <defaults>
</compile_context>

<pallas_src>
import functools
import math

import jax
import jax.numpy as jnp
from jax.experimental import pallas as pl
from jax.experimental.pallas import tpu as pltpu


def _round_up(x, m):
    return (x + m - 1) // m * m


def _sublane(dtype):
    # second-minor tiling granularity: 8 for f32, 16 for bf16, 32 for int8
    return max(8, 32 // jnp.dtype(dtype).itemsize)


def _vmem_limit(block_bytes, scratch_bytes=0):
    # 2 pipeline buffers per block + scratch + headroom; clamp below v7x 64 MiB.
    need = 2 * int(block_bytes) + int(scratch_bytes) + (4 << 20)
    return int(min(max(need, 16 << 20), 48 << 20))


# ----------------------------------------------------------------------------
# Kernel 1: tiled dense layer  y = x @ W + b
#   x: (M, K), W: (K, N), b: (1, N); grid = (M/tm, N/tn, K/tk)
# ----------------------------------------------------------------------------
def _matmul_kernel(x_ref, w_ref, b_ref, o_ref, acc_ref):
    k = pl.program_id(2)

    @pl.when(k == 0)
    def _():
        acc_ref[...] = jnp.zeros_like(acc_ref)

    acc_ref[...] += jnp.dot(
        x_ref[...], w_ref[...], preferred_element_type=jnp.float32
    )

    @pl.when(k == pl.num_programs(2) - 1)
    def _():
        o_ref[...] = (acc_ref[...] + b_ref[...].astype(jnp.float32)).astype(
            o_ref.dtype
        )


def linear(x, w, b, *, tm=256, tn=512, tk=512):
    """Tiled y = x @ w + b with an f32 VMEM accumulator."""
    M, K = x.shape
    N = w.shape[1]

    # Full-extent block when a dim fits in one tile (no padding; the
    # "block dim == full array dim" exception covers unaligned sizes).
    tm = tm if M > tm else M
    tn = tn if N > tn else N
    tk = tk if K > tk else K
    Mp, Kp, Np = _round_up(M, tm), _round_up(K, tk), _round_up(N, tn)

    xp = x if (Mp == M and Kp == K) else jnp.pad(x, ((0, Mp - M), (0, Kp - K)))
    wp = w if (Kp == K and Np == N) else jnp.pad(w, ((0, Kp - K), (0, Np - N)))
    bp = (b if Np == N else jnp.pad(b, (0, Np - N))).reshape(1, Np)

    itemsize = jnp.dtype(x.dtype).itemsize
    block_bytes = (tm * tk + tk * tn + tn + tm * tn) * itemsize
    vmem = _vmem_limit(block_bytes, scratch_bytes=tm * tn * 4)

    out = pl.pallas_call(
        _matmul_kernel,
        out_shape=jax.ShapeDtypeStruct((Mp, Np), x.dtype),
        grid=(Mp // tm, Np // tn, Kp // tk),
        in_specs=[
            pl.BlockSpec((tm, tk), lambda i, j, k: (i, k)),
            pl.BlockSpec((tk, tn), lambda i, j, k: (k, j)),
            pl.BlockSpec((1, tn), lambda i, j, k: (0, j)),
        ],
        out_specs=pl.BlockSpec((tm, tn), lambda i, j, k: (i, j)),
        scratch_shapes=[pltpu.VMEM((tm, tn), jnp.float32)],
        compiler_params=pltpu.CompilerParams(
            dimension_semantics=("parallel", "parallel", "arbitrary"),
            vmem_limit_bytes=vmem,
        ),
    )(xp, wp, bp)

    if (Mp, Np) != (M, N):
        out = out[:M, :N]
    return out


# ----------------------------------------------------------------------------
# Kernel 2a: flash-style multi-head attention (no NxN writeback)
#   qkv: (B, Npad, 3C).  Grid = (B, Npad//tq, Npad//tkv).
#   scale is already folded into the q columns of the qkv projection.
# ----------------------------------------------------------------------------
def _mha_flash_kernel(q_ref, k_ref, v_ref, o_ref, q_sc, m_sc, l_sc, acc_sc, *,
                      num_heads, n_valid, fused_qkv, mask_kv):
    kv_i = pl.program_id(2)
    H = num_heads
    C = o_ref.shape[-1]
    d = C // H
    tq = o_ref.shape[1]
    tkv = k_ref.shape[1]

    @pl.when(kv_i == 0)
    def _():
        m_sc[...] = jnp.full_like(m_sc, -jnp.inf)
        l_sc[...] = jnp.zeros_like(l_sc)
        acc_sc[...] = jnp.zeros_like(acc_sc)
        # Stage q once per (batch, q-tile) in head-major (H, tq, d) layout so
        # the slice/reshape/relayout is NOT repeated for every kv tile.
        q_rows = q_ref[0, :, 0:C] if fused_qkv else q_ref[0]
        q_sc[...] = jnp.moveaxis(q_rows.reshape(tq, H, d), 1, 0)

    k_rows = k_ref[0, :, C:2 * C] if fused_qkv else k_ref[0]
    v_rows = v_ref[0, :, 2 * C:3 * C] if fused_qkv else v_ref[0]
    k = k_rows.reshape(tkv, H, d)
    v = v_rows.reshape(tkv, H, d)

    # (H, tq, tkv) scores; MXU operands keep the incoming dtype, f32 accumulate.
    s = jnp.einsum("hqd,khd->hqk", q_sc[...], k,
                   preferred_element_type=jnp.float32)
    if mask_kv:
        # padded key positions (>= n_valid) must not receive probability mass
        col = kv_i * tkv + jax.lax.broadcasted_iota(jnp.int32, s.shape, 2)
        s = jnp.where(col < n_valid, s, -1e30)

    m_prev = m_sc[...]                                   # (H, tq)
    m_new = jnp.maximum(m_prev, jnp.max(s, axis=-1))     # (H, tq)
    alpha = jnp.exp(m_prev - m_new)
    p = jnp.exp(s - m_new[:, :, None])                   # (H, tq, tkv)
    l_sc[...] = alpha * l_sc[...] + jnp.sum(p, axis=-1)
    acc_sc[...] = alpha[:, :, None] * acc_sc[...] + jnp.einsum(
        "hqk,khd->hqd", p.astype(v.dtype), v,
        preferred_element_type=jnp.float32)
    m_sc[...] = m_new

    @pl.when(kv_i == pl.num_programs(2) - 1)
    def _():
        inv_l = pl.reciprocal(l_sc[...], approx=False)   # EUP, exact
        out = acc_sc[...] * inv_l[:, :, None]            # (H, tq, d) f32
        # single relayout head-merge -> lane-dense (tq, C) slab, one store
        o_ref[0] = jnp.moveaxis(out, 0, 1).reshape(tq, C).astype(o_ref.dtype)


def attention_flash(qkv, num_heads, *, block=256):
    B, N, C3 = qkv.shape
    C = C3 // 3
    H = num_heads
    d = C // H

    sub = _sublane(qkv.dtype)
    t = min(block, _round_up(N, sub))
    tq = tkv = t
    Npad = _round_up(N, t)
    mask_kv = Npad != N
    if mask_kv:
        qkv = jnp.pad(qkv, ((0, 0), (0, Npad - N), (0, 0)))

    # Column-split q/K/V blocks need a lane-aligned C; otherwise fall back to
    # streaming full (tkv, 3C) rows and slicing columns in-kernel.
    fused_qkv = (C % 128) != 0
    if fused_qkv:
        in_specs = [
            pl.BlockSpec((1, tq, 3 * C), lambda b, qi, ki: (b, qi, 0)),
            pl.BlockSpec((1, tkv, 3 * C), lambda b, qi, ki: (b, ki, 0)),
            pl.BlockSpec((1, tkv, 3 * C), lambda b, qi, ki: (b, ki, 0)),
        ]
        kv_width = 3 * C
    else:
        in_specs = [
            pl.BlockSpec((1, tq, C), lambda b, qi, ki: (b, qi, 0)),   # q cols
            pl.BlockSpec((1, tkv, C), lambda b, qi, ki: (b, ki, 1)),  # k cols
            pl.BlockSpec((1, tkv, C), lambda b, qi, ki: (b, ki, 2)),  # v cols
        ]
        kv_width = C

    itemsize = jnp.dtype(qkv.dtype).itemsize
    block_bytes = (tq * kv_width + 2 * tkv * kv_width + tq * C) * itemsize
    scratch_bytes = H * tq * d * itemsize + (2 * H * tq + H * tq * d) * 4
    vmem = _vmem_limit(block_bytes, scratch_bytes)

    kernel = functools.partial(_mha_flash_kernel, num_heads=H, n_valid=N,
                               fused_qkv=fused_qkv, mask_kv=mask_kv)
    out = pl.pallas_call(
        kernel,
        out_shape=jax.ShapeDtypeStruct((B, Npad, C), qkv.dtype),
        grid=(B, Npad // tq, Npad // tkv),
        in_specs=in_specs,
        out_specs=pl.BlockSpec((1, tq, C), lambda b, qi, ki: (b, qi, 0)),
        scratch_shapes=[
            pltpu.VMEM((H, tq, d), qkv.dtype),     # staged q (head-major)
            pltpu.VMEM((H, tq), jnp.float32),      # running max (dense 2-D)
            pltpu.VMEM((H, tq), jnp.float32),      # running sum (dense 2-D)
            pltpu.VMEM((H, tq, d), jnp.float32),   # output accumulator
        ],
        compiler_params=pltpu.CompilerParams(
            dimension_semantics=("parallel", "parallel", "arbitrary"),
            vmem_limit_bytes=vmem,
        ),
    )(qkv, qkv, qkv)

    if Npad != N:
        out = out[:, :N, :]
    return out


# ----------------------------------------------------------------------------
# Kernel 2b: debug variant that also returns the (B,H,N,N) probabilities.
# Tiled over the query axis so s/p and the attn block stay bounded in VMEM.
# ----------------------------------------------------------------------------
def _mha_probs_kernel(q_ref, kv_ref, o_ref, attn_ref, *, num_heads):
    H = num_heads
    C = o_ref.shape[-1]
    d = C // H
    tq = q_ref.shape[1]
    N = kv_ref.shape[1]

    q = q_ref[0, :, 0:C].reshape(tq, H, d)          # scale pre-folded into W
    k = kv_ref[0, :, C:2 * C].reshape(N, H, d)
    v = kv_ref[0, :, 2 * C:3 * C].reshape(N, H, d)

    s = jnp.einsum("qhd,khd->hqk", q, k, preferred_element_type=jnp.float32)
    m = jnp.max(s, axis=-1, keepdims=True)
    p = jnp.exp(s - m)
    p = p / jnp.sum(p, axis=-1, keepdims=True)

    # TODO(synk): attn_drop (p=0.2) omitted -- eval-mode dropout is identity.
    attn_ref[0] = p.astype(attn_ref.dtype)

    out = jnp.einsum("hqk,khd->hqd", p.astype(v.dtype), v,
                     preferred_element_type=jnp.float32)        # (H, tq, d)
    o_ref[0] = jnp.moveaxis(out, 0, 1).reshape(tq, C).astype(o_ref.dtype)


def attention_with_probs(qkv, num_heads, *, tq=128):
    B, N, C3 = qkv.shape
    C = C3 // 3
    H = num_heads

    tq = min(tq, N)
    if N % tq != 0:
        tq = N   # TODO(synk): debug path; ragged q tiles fall back to one tile

    itemsize = jnp.dtype(qkv.dtype).itemsize
    block_bytes = (tq * 3 * C + N * 3 * C + tq * C) * itemsize + H * tq * N * 4
    vmem = _vmem_limit(block_bytes)

    kernel = functools.partial(_mha_probs_kernel, num_heads=H)
    out, attn = pl.pallas_call(
        kernel,
        out_shape=(
            jax.ShapeDtypeStruct((B, N, C), qkv.dtype),
            jax.ShapeDtypeStruct((B, H, N, N), jnp.float32),
        ),
        grid=(B, N // tq),
        in_specs=[
            pl.BlockSpec((1, tq, 3 * C), lambda b, qi: (b, qi, 0)),  # q rows
            pl.BlockSpec((1, N, 3 * C), lambda b, qi: (b, 0, 0)),    # all kv
        ],
        out_specs=(
            pl.BlockSpec((1, tq, C), lambda b, qi: (b, qi, 0)),
            pl.BlockSpec((1, H, tq, N), lambda b, qi: (b, 0, qi, 0)),
        ),
        compiler_params=pltpu.CompilerParams(
            dimension_semantics=("parallel", "parallel"),
            vmem_limit_bytes=vmem,
        ),
    )(qkv, qkv)
    return out, attn


# ----------------------------------------------------------------------------
# Full module forward
# ----------------------------------------------------------------------------
def init_attention_params(key, dim, num_heads=8, qkv_bias=False):
    k1, k2, k3 = jax.random.split(key, 3)
    # torch.nn.Linear default init: U(-1/sqrt(fan_in), 1/sqrt(fan_in))
    bound = 1.0 / math.sqrt(dim)
    w_qkv = jax.random.uniform(k1, (dim, 3 * dim), jnp.float32, -bound, bound)
    b_qkv = jnp.zeros((3 * dim,), jnp.float32)  # qkv_bias=False -> zero bias
    w_proj = jax.random.uniform(k2, (dim, dim), jnp.float32, -bound, bound)
    b_proj = jax.random.uniform(k3, (dim,), jnp.float32, -bound, bound)
    return {"w_qkv": w_qkv, "b_qkv": b_qkv, "w_proj": w_proj, "b_proj": b_proj}


def attention_forward(x, params, num_heads=8, return_attention=False,
                      attn_block=256):
    B, N, C = x.shape
    head_dim = C // num_heads
    scale = head_dim ** (-0.5)

    # Fold the softmax scale into the q columns of the qkv projection (free;
    # removes the per-kv-tile O(N*C) multiply from the attention kernel).
    w_qkv = params["w_qkv"].at[:, :C].multiply(scale)
    b_qkv = params["b_qkv"].at[:C].multiply(scale)

    # qkv projection (tiled Pallas matmul); q/k/v split happens in the
    # attention kernel's BlockSpecs (no wrapper transposes / extra HBM passes).
    qkv = linear(x.reshape(B * N, C), w_qkv, b_qkv).reshape(B, N, 3 * C)

    if return_attention:
        out, attn = attention_with_probs(qkv, num_heads)
    else:
        out = attention_flash(qkv, num_heads, block=attn_block)
        attn = None

    # output projection (tiled Pallas matmul)
    out = linear(out.reshape(B * N, C), params["w_proj"], params["b_proj"])
    out = out.reshape(B, N, C)
    # TODO(synk): proj_drop (p=0.2) omitted -- eval-mode dropout is identity.

    if return_attention:
        return out, attn
    return out


# ----------------------------------------------------------------------------
# Pure-JAX reference (mirrors the PyTorch forward) for correctness checking.
# ----------------------------------------------------------------------------
def _reference_forward(x, params, num_heads):
    B, N, C = x.shape
    d = C // num_heads
    scale = d ** (-0.5)
    qkv = x.reshape(B * N, C) @ params["w_qkv"] + params["b_qkv"]
    qkv = jnp.transpose(qkv.reshape(B, N, 3, num_heads, d), (2, 0, 3, 1, 4))
    q, k, v = qkv[0], qkv[1], qkv[2]
    attn = jax.nn.softmax((q @ jnp.swapaxes(k, -2, -1)) * scale, axis=-1)
    out = jnp.transpose(attn @ v, (0, 2, 1, 3)).reshape(B, N, C)
    out = out @ params["w_proj"] + params["b_proj"]
    return out, attn


# ----------------------------------------------------------------------------
if __name__ == "__main__":
    B, N, C, H = 2, 16, 128, 8   # head_dim = 16, C lane-aligned -> split q/K/V path

    key = jax.random.PRNGKey(0)
    kx, kp = jax.random.split(key)
    x = jax.random.normal(kx, (B, N, C), jnp.float32)
    params = init_attention_params(kp, C, num_heads=H, qkv_bias=False)

    fwd_fast = jax.jit(functools.partial(attention_forward, num_heads=H,
                                         return_attention=False))
    fwd_dbg = jax.jit(functools.partial(attention_forward, num_heads=H,
                                        return_attention=True))

    out_fast = jax.block_until_ready(fwd_fast(x, params))
    out_dbg, attn = fwd_dbg(x, params)
    out_dbg = jax.block_until_ready(out_dbg)
    attn = jax.block_until_ready(attn)

    ref_out, ref_attn = _reference_forward(x, params, H)

    assert out_fast.shape == (B, N, C) and out_dbg.shape == (B, N, C)
    assert attn.shape == (B, H, N, N)
    # softmax rows must sum to ~1 (exact normalization in the debug variant)
    assert jnp.allclose(jnp.sum(attn, axis=-1), 1.0, atol=1e-5)
    # match the pure-JAX reference (tolerance for MXU default precision)
    assert jnp.allclose(attn, ref_attn, atol=2e-2, rtol=2e-2)
    assert jnp.allclose(out_fast, ref_out, atol=2e-2, rtol=2e-2)
    assert jnp.allclose(out_dbg, ref_out, atol=2e-2, rtol=2e-2)

    # exercise the tiled online-softmax path (2 q tiles x 2 kv tiles)
    fwd_tiled = jax.jit(functools.partial(attention_forward, num_heads=H,
                                          return_attention=False, attn_block=8))
    out_tiled = jax.block_until_ready(fwd_tiled(x, params))
    assert jnp.allclose(out_tiled, ref_out, atol=2e-2, rtol=2e-2)

    # exercise the padded / masked-KV path (N=12 padded to 16, keys masked)
    x2 = jax.random.normal(jax.random.PRNGKey(1), (B, 12, C), jnp.float32)
    fwd_masked = jax.jit(functools.partial(attention_forward, num_heads=H,
                                           return_attention=False, attn_block=8))
    out2 = jax.block_until_ready(fwd_masked(x2, params))
    ref2, _ = _reference_forward(x2, params, H)
    assert jnp.allclose(out2, ref2, atol=2e-2, rtol=2e-2)

    print("KERNEL_OK")
</pallas_src>

<mosaic_0001>
module attributes {stable_mosaic.version = 11 : i64} {
  func.func @_matmul_kernel(%arg0: i32, %arg1: i32, %arg2: i32, %arg3: memref<32x128xf32, #tpu.memory_space<vmem>>, %arg4: memref<128x384xf32, #tpu.memory_space<vmem>>, %arg5: memref<1x384xf32, #tpu.memory_space<vmem>>, %arg6: memref<32x384xf32, #tpu.memory_space<vmem>>, %arg7: memref<32x384xf32, #tpu.memory_space<vmem>>) attributes {dimension_semantics = [#tpu.dimension_semantics<parallel>, #tpu.dimension_semantics<parallel>, #tpu.dimension_semantics<arbitrary>], iteration_bounds = array<i64: 1, 1, 1>, scalar_prefetch = 0 : i64, scratch_operands = 1 : i64, tpu.core_type = #tpu.core_type<tc>, window_params = [{transform_indices = @transform_0, window_bounds = array<i64: 32, 128>}, {transform_indices = @transform_1, window_bounds = array<i64: 128, 384>}, {transform_indices = @transform_2, window_bounds = array<i64: 1, 384>}, {transform_indices = @transform_3, window_bounds = array<i64: 32, 384>}]} {
    %c0_i32 = arith.constant 0 : i32
    %0 = arith.cmpi eq, %arg2, %c0_i32 : i32
    %1 = arith.extui %0 : i1 to i32
    %c0_i32_0 = arith.constant 0 : i32
    %2 = arith.cmpi ne, %1, %c0_i32_0 : i32
    scf.if %2 {
      %cst_10 = arith.constant 0.000000e+00 : f32
      %12 = vector.broadcast %cst_10 : f32 to vector<32x384xf32>
      %c0_11 = arith.constant 0 : index
      %c0_12 = arith.constant 0 : index
      %13 = vector.load %arg7[%c0_11, %c0_12] : memref<32x384xf32, #tpu.memory_space<vmem>>, vector<32x384xf32>
      tpu.vector_store %arg7[%c0_11, %c0_12], %12 {strides = array<i32>} : memref<32x384xf32, #tpu.memory_space<vmem>>, vector<32x384xf32>,
    } else {
    }
    %c0 = arith.constant 0 : index
    %c0_1 = arith.constant 0 : index
    %3 = vector.load %arg7[%c0, %c0_1] : memref<32x384xf32, #tpu.memory_space<vmem>>, vector<32x384xf32>
    %c0_2 = arith.constant 0 : index
    %c0_3 = arith.constant 0 : index
    %4 = vector.load %arg3[%c0_2, %c0_3] : memref<32x128xf32, #tpu.memory_space<vmem>>, vector<32x128xf32>
    %c0_4 = arith.constant 0 : index
    %c0_5 = arith.constant 0 : index
    %5 = vector.load %arg4[%c0_4, %c0_5] : memref<128x384xf32, #tpu.memory_space<vmem>>, vector<128x384xf32>
    %cst = arith.constant dense<0.000000e+00> : vector<32x384xf32>
    %6 = tpu.matmul %4, %5, %cst {dimension_numbers = #tpu.dot_dimension_numbers<[1], [0], [0], [1], [0, 0, 1, 1], [], []>} : vector<32x128xf32>, vector<128x384xf32>, vector<32x384xf32> -> vector<32x384xf32>
    %7 = arith.addf %3, %6 : vector<32x384xf32>
    %c0_6 = arith.constant 0 : index
    %c0_7 = arith.constant 0 : index
    %8 = vector.load %arg7[%c0_6, %c0_7] : memref<32x384xf32, #tpu.memory_space<vmem>>, vector<32x384xf32>
    tpu.vector_store %arg7[%c0_6, %c0_7], %7 {strides = array<i32>} : memref<32x384xf32, #tpu.memory_space<vmem>>, vector<32x384xf32>,
    %c0_i32_8 = arith.constant 0 : i32
    %9 = arith.cmpi eq, %arg2, %c0_i32_8 : i32
    %10 = arith.extui %9 : i1 to i32
    %c0_i32_9 = arith.constant 0 : i32
    %11 = arith.cmpi ne, %10, %c0_i32_9 : i32
    scf.if %11 {
      %c0_10 = arith.constant 0 : index
      %c0_11 = arith.constant 0 : index
      %12 = vector.load %arg7[%c0_10, %c0_11] : memref<32x384xf32, #tpu.memory_space<vmem>>, vector<32x384xf32>
      %c0_12 = arith.constant 0 : index
      %c0_13 = arith.constant 0 : index
      %13 = vector.load %arg5[%c0_12, %c0_13] : memref<1x384xf32, #tpu.memory_space<vmem>>, vector<1x384xf32>
      %14 = vector.broadcast %13 : vector<1x384xf32> to vector<32x384xf32>
      %15 = arith.addf %12, %14 : vector<32x384xf32>
      %c0_14 = arith.constant 0 : index
      %c0_15 = arith.constant 0 : index
      %16 = vector.load %arg6[%c0_14, %c0_15] : memref<32x384xf32, #tpu.memory_space<vmem>>, vector<32x384xf32>
      tpu.vector_store %arg6[%c0_14, %c0_15], %15 {strides = array<i32>} : memref<32x384xf32, #tpu.memory_space<vmem>>, vector<32x384xf32>,
    } else {
    }
    return
  }
  func.func @transform_0(%arg0: i32, %arg1: i32, %arg2: i32) -> (i32, i32) {
    %c0_i32 = arith.constant 0 : i32
    return %arg0, %arg2 : i32, i32
  }
  func.func @transform_1(%arg0: i32, %arg1: i32, %arg2: i32) -> (i32, i32) {
    %c0_i32 = arith.constant 0 : i32
    return %arg2, %arg1 : i32, i32
  }
  func.func @transform_2(%arg0: i32, %arg1: i32, %arg2: i32) -> (i32, i32) {
    %c0_i32 = arith.constant 0 : i32
    %c0_i32_0 = arith.constant 0 : i32
    return %c0_i32, %arg1 : i32, i32
  }
  func.func @transform_3(%arg0: i32, %arg1: i32, %arg2: i32) -> (i32, i32) {
    %c0_i32 = arith.constant 0 : i32
    return %arg0, %arg1 : i32, i32
  }
}

module attributes {stable_mosaic.version = 11 : i64} {
  func.func @_matmul_kernel(%arg0: i32, %arg1: i32, %arg2: i32, %arg3: memref<32x128xf32, #tpu.memory_space<vmem>>, %arg4: memref<128x128xf32, #tpu.memory_space<vmem>>, %arg5: memref<1x128xf32, #tpu.memory_space<vmem>>, %arg6: memref<32x128xf32, #tpu.memory_space<vmem>>, %arg7: memref<32x128xf32, #tpu.memory_space<vmem>>) attributes {dimension_semantics = [#tpu.dimension_semantics<parallel>, #tpu.dimension_semantics<parallel>, #tpu.dimension_semantics<arbitrary>], iteration_bounds = array<i64: 1, 1, 1>, scalar_prefetch = 0 : i64, scratch_operands = 1 : i64, tpu.core_type = #tpu.core_type<tc>, window_params = [{transform_indices = @transform_0, window_bounds = array<i64: 32, 128>}, {transform_indices = @transform_1, window_bounds = array<i64: 128, 128>}, {transform_indices = @transform_2, window_bounds = array<i64: 1, 128>}, {transform_indices = @transform_3, window_bounds = array<i64: 32, 128>}]} {
    %c0_i32 = arith.constant 0 : i32
    %0 = arith.cmpi eq, %arg2, %c0_i32 : i32
    %1 = arith.extui %0 : i1 to i32
    %c0_i32_0 = arith.constant 0 : i32
    %2 = arith.cmpi ne, %1, %c0_i32_0 : i32
    scf.if %2 {
      %cst_10 = arith.constant 0.000000e+00 : f32
      %12 = vector.broadcast %cst_10 : f32 to vector<32x128xf32>
      %c0_11 = arith.constant 0 : index
      %c0_12 = arith.constant 0 : index
      %13 = vector.load %arg7[%c0_11, %c0_12] : memref<32x128xf32, #tpu.memory_space<vmem>>, vector<32x128xf32>
      tpu.vector_store %arg7[%c0_11, %c0_12], %12 {strides = array<i32>} : memref<32x128xf32, #tpu.memory_space<vmem>>, vector<32x128xf32>,
    } else {
    }
    %c0 = arith.constant 0 : index
    %c0_1 = arith.constant 0 : index
    %3 = vector.load %arg7[%c0, %c0_1] : memref<32x128xf32, #tpu.memory_space<vmem>>, vector<32x128xf32>
    %c0_2 = arith.constant 0 : index
    %c0_3 = arith.constant 0 : index
    %4 = vector.load %arg3[%c0_2, %c0_3] : memref<32x128xf32, #tpu.memory_space<vmem>>, vector<32x128xf32>
    %c0_4 = arith.constant 0 : index
    %c0_5 = arith.constant 0 : index
    %5 = vector.load %arg4[%c0_4, %c0_5] : memref<128x128xf32, #tpu.memory_space<vmem>>, vector<128x128xf32>
    %cst = arith.constant dense<0.000000e+00> : vector<32x128xf32>
    %6 = tpu.matmul %4, %5, %cst {dimension_numbers = #tpu.dot_dimension_numbers<[1], [0], [0], [1], [0, 0, 1, 1], [], []>} : vector<32x128xf32>, vector<128x128xf32>, vector<32x128xf32> -> vector<32x128xf32>
    %7 = arith.addf %3, %6 : vector<32x128xf32>
    %c0_6 = arith.constant 0 : index
    %c0_7 = arith.constant 0 : index
    %8 = vector.load %arg7[%c0_6, %c0_7] : memref<32x128xf32, #tpu.memory_space<vmem>>, vector<32x128xf32>
    tpu.vector_store %arg7[%c0_6, %c0_7], %7 {strides = array<i32>} : memref<32x128xf32, #tpu.memory_space<vmem>>, vector<32x128xf32>,
    %c0_i32_8 = arith.constant 0 : i32
    %9 = arith.cmpi eq, %arg2, %c0_i32_8 : i32
    %10 = arith.extui %9 : i1 to i32
    %c0_i32_9 = arith.constant 0 : i32
    %11 = arith.cmpi ne, %10, %c0_i32_9 : i32
    scf.if %11 {
      %c0_10 = arith.constant 0 : index
      %c0_11 = arith.constant 0 : index
      %12 = vector.load %arg7[%c0_10, %c0_11] : memref<32x128xf32, #tpu.memory_space<vmem>>, vector<32x128xf32>
      %c0_12 = arith.constant 0 : index
      %c0_13 = arith.constant 0 : index
      %13 = vector.load %arg5[%c0_12, %c0_13] : memref<1x128xf32, #tpu.memory_space<vmem>>, vector<1x128xf32>
      %14 = vector.broadcast %13 : vector<1x128xf32> to vector<32x128xf32>
      %15 = arith.addf %12, %14 : vector<32x128xf32>
      %c0_14 = arith.constant 0 : index
      %c0_15 = arith.constant 0 : index
      %16 = vector.load %arg6[%c0_14, %c0_15] : memref<32x128xf32, #tpu.memory_space<vmem>>, vector<32x128xf32>
      tpu.vector_store %arg6[%c0_14, %c0_15], %15 {strides = array<i32>} : memref<32x128xf32, #tpu.memory_space<vmem>>, vector<32x128xf32>,
    } else {
    }
    return
  }
  func.func @transform_0(%arg0: i32, %arg1: i32, %arg2: i32) -> (i32, i32) {
    %c0_i32 = arith.constant 0 : i32
    return %arg0, %arg2 : i32, i32
  }
  func.func @transform_1(%arg0: i32, %arg1: i32, %arg2: i32) -> (i32, i32) {
    %c0_i32 = arith.constant 0 : i32
    return %arg2, %arg1 : i32, i32
  }
  func.func @transform_2(%arg0: i32, %arg1: i32, %arg2: i32) -> (i32, i32) {
    %c0_i32 = arith.constant 0 : i32
    %c0_i32_0 = arith.constant 0 : i32
    return %c0_i32, %arg1 : i32, i32
  }
  func.func @transform_3(%arg0: i32, %arg1: i32, %arg2: i32) -> (i32, i32) {
    %c0_i32 = arith.constant 0 : i32
    return %arg0, %arg1 : i32, i32
  }
}

module attributes {stable_mosaic.version = 11 : i64} {
  func.func @_mha_flash_kernel(%arg0: i32, %arg1: i32, %arg2: i32, %arg3: memref<1x16x128xf32, #tpu.memory_space<vmem>>, %arg4: memref<1x16x128xf32, #tpu.memory_space<vmem>>, %arg5: memref<1x16x128xf32, #tpu.memory_space<vmem>>, %arg6: memref<1x16x128xf32, #tpu.memory_space<vmem>>, %arg7: memref<8x16x16xf32, #tpu.memory_space<vmem>>, %arg8: memref<8x16xf32, #tpu.memory_space<vmem>>, %arg9: memref<8x16xf32, #tpu.memory_space<vmem>>, %arg10: memref<8x16x16xf32, #tpu.memory_space<vmem>>) attributes {dimension_semantics = [#tpu.dimension_semantics<parallel>, #tpu.dimension_semantics<parallel>, #tpu.dimension_semantics<arbitrary>], iteration_bounds = array<i64: 2, 1, 1>, scalar_prefetch = 0 : i64, scratch_operands = 4 : i64, tpu.core_type = #tpu.core_type<tc>, window_params = [{transform_indices = @transform_0, window_bounds = array<i64: 1, 16, 128>}, {transform_indices = @transform_1, window_bounds = array<i64: 1, 16, 128>}, {transform_indices = @transform_2, window_bounds = array<i64: 1, 16, 128>}, {transform_indices = @transform_3, window_bounds = array<i64: 1, 16, 128>}]} {
    %c0_i32 = arith.constant 0 : i32
    %0 = arith.cmpi eq, %arg2, %c0_i32 : i32
    %1 = arith.extui %0 : i1 to i32
    %c0_i32_0 = arith.constant 0 : i32
    %2 = arith.cmpi ne, %1, %c0_i32_0 : i32
    scf.if %2 {
      %cst_28 = arith.constant 0xFF800000 : f32
      %36 = vector.broadcast %cst_28 : f32 to vector<8x16xf32>
      %c0_29 = arith.constant 0 : index
      %c0_30 = arith.constant 0 : index
      %37 = vector.load %arg8[%c0_29, %c0_30] : memref<8x16xf32, #tpu.memory_space<vmem>>, vector<8x16xf32>
      tpu.vector_store %arg8[%c0_29, %c0_30], %36 {strides = array<i32>} : memref<8x16xf32, #tpu.memory_space<vmem>>, vector<8x16xf32>,
      %cst_31 = arith.constant 0.000000e+00 : f32
      %38 = vector.broadcast %cst_31 : f32 to vector<8x16xf32>
      %c0_32 = arith.constant 0 : index
      %c0_33 = arith.constant 0 : index
      %39 = vector.load %arg9[%c0_32, %c0_33] : memref<8x16xf32, #tpu.memory_space<vmem>>, vector<8x16xf32>
      tpu.vector_store %arg9[%c0_32, %c0_33], %38 {strides = array<i32>} : memref<8x16xf32, #tpu.memory_space<vmem>>, vector<8x16xf32>,
      %cst_34 = arith.constant 0.000000e+00 : f32
      %40 = vector.broadcast %cst_34 : f32 to vector<8x16x16xf32>
      %c0_35 = arith.constant 0 : index
      %c0_36 = arith.constant 0 : index
      %c0_37 = arith.constant 0 : index
      %41 = vector.load %arg10[%c0_35, %c0_36, %c0_37] : memref<8x16x16xf32, #tpu.memory_space<vmem>>, vector<8x16x16xf32>
      tpu.vector_store %arg10[%c0_35, %c0_36, %c0_37], %40 {strides = array<i32>} : memref<8x16x16xf32, #tpu.memory_space<vmem>>, vector<8x16x16xf32>,
      %c0_38 = arith.constant 0 : index
      %c0_39 = arith.constant 0 : index
      %c0_40 = arith.constant 0 : index
      %42 = vector.load %arg3[%c0_38, %c0_39, %c0_40] : memref<1x16x128xf32, #tpu.memory_space<vmem>>, vector<1x16x128xf32>
      %43 = vector.shape_cast %42 : vector<1x16x128xf32> to vector<16x128xf32>
      %44 = vector.shape_cast %43 : vector<16x128xf32> to vector<16x8x16xf32>
      %45 = tpu.transpose %44, [1, 0, 2] : vector<16x8x16xf32> -> vector<8x16x16xf32>
      %c0_41 = arith.constant 0 : index
      %c0_42 = arith.constant 0 : index
      %c0_43 = arith.constant 0 : index
      %46 = vector.load %arg7[%c0_41, %c0_42, %c0_43] : memref<8x16x16xf32, #tpu.memory_space<vmem>>, vector<8x16x16xf32>
      tpu.vector_store %arg7[%c0_41, %c0_42, %c0_43], %45 {strides = array<i32>} : memref<8x16x16xf32, #tpu.memory_space<vmem>>, vector<8x16x16xf32>,
    } else {
    }
    %c0 = arith.constant 0 : index
    %c0_1 = arith.constant 0 : index
    %c0_2 = arith.constant 0 : index
    %3 = vector.load %arg4[%c0, %c0_1, %c0_2] : memref<1x16x128xf32, #tpu.memory_space<vmem>>, vector<1x16x128xf32>
    %4 = vector.shape_cast %3 : vector<1x16x128xf32> to vector<16x128xf32>
    %c0_3 = arith.constant 0 : index
    %c0_4 = arith.constant 0 : index
    %c0_5 = arith.constant 0 : index
    %5 = vector.load %arg5[%c0_3, %c0_4, %c0_5] : memref<1x16x128xf32, #tpu.memory_space<vmem>>, vector<1x16x128xf32>
    %6 = vector.shape_cast %5 : vector<1x16x128xf32> to vector<16x128xf32>
    %7 = vector.shape_cast %4 : vector<16x128xf32> to vector<16x8x16xf32>
    %8 = vector.shape_cast %6 : vector<16x128xf32> to vector<16x8x16xf32>
    %c0_6 = arith.constant 0 : index
    %c0_7 = arith.constant 0 : index
    %c0_8 = arith.constant 0 : index
    %9 = vector.load %arg7[%c0_6, %c0_7, %c0_8] : memref<8x16x16xf32, #tpu.memory_space<vmem>>, vector<8x16x16xf32>
    "tpu.trace_start"() <{level = 10 : i32, message = "hqd,khd->hqk"}> : () -> ()
    %cst = arith.constant dense<0.000000e+00> : vector<8x16x16xf32>
    %10 = tpu.matmul %9, %7, %cst {dimension_numbers = #tpu.dot_dimension_numbers<[2], [2], [1], [0], [0, 0, 0, 1, 1, 0], [0], [1]>} : vector<8x16x16xf32>, vector<16x8x16xf32>, vector<8x16x16xf32> -> vector<8x16x16xf32>
    "tpu.trace_stop"() : () -> ()
    %c0_9 = arith.constant 0 : index
    %c0_10 = arith.constant 0 : index
    %11 = vector.load %arg8[%c0_9, %c0_10] : memref<8x16xf32, #tpu.memory_space<vmem>>, vector<8x16xf32>
    %cst_11 = arith.constant dense<0xFF800000> : vector<8x16xf32>
    %12 = vector.multi_reduction <maximumf>, %10, %cst_11 [2] : vector<8x16x16xf32> to vector<8x16xf32>
    %13 = arith.maximumf %11, %12 : vector<8x16xf32>
    %14 = arith.subf %11, %13 : vector<8x16xf32>
    %15 = math.exp %14 : vector<8x16xf32>
    %16 = vector.shape_cast %13 : vector<8x16xf32> to vector<8x16x1xf32>
    %17 = vector.broadcast %16 : vector<8x16x1xf32> to vector<8x16x16xf32>
    %18 = arith.subf %10, %17 : vector<8x16x16xf32>
    %19 = math.exp %18 : vector<8x16x16xf32>
    %c0_12 = arith.constant 0 : index
    %c0_13 = arith.constant 0 : index
    %20 = vector.load %arg9[%c0_12, %c0_13] : memref<8x16xf32, #tpu.memory_space<vmem>>, vector<8x16xf32>
    %21 = arith.mulf %15, %20 : vector<8x16xf32>
    %cst_14 = arith.constant dense<0.000000e+00> : vector<8x16xf32>
    %22 = vector.multi_reduction <add>, %19, %cst_14 [2] : vector<8x16x16xf32> to vector<8x16xf32>
    %23 = arith.addf %21, %22 : vector<8x16xf32>
    %c0_15 = arith.constant 0 : index
    %c0_16 = arith.constant 0 : index
    %24 = vector.load %arg9[%c0_15, %c0_16] : memref<8x16xf32, #tpu.memory_space<vmem>>, vector<8x16xf32>
    tpu.vector_store %arg9[%c0_15, %c0_16], %23 {strides = array<i32>} : memref<8x16xf32, #tpu.memory_space<vmem>>, vector<8x16xf32>,
    %25 = vector.shape_cast %15 : vector<8x16xf32> to vector<8x16x1xf32>
    %c0_17 = arith.constant 0 : index
    %c0_18 = arith.constant 0 : index
    %c0_19 = arith.constant 0 : index
    %26 = vector.load %arg10[%c0_17, %c0_18, %c0_19] : memref<8x16x16xf32, #tpu.memory_space<vmem>>, vector<8x16x16xf32>
    %27 = vector.broadcast %25 : vector<8x16x1xf32> to vector<8x16x16xf32>
    %28 = arith.mulf %27, %26 : vector<8x16x16xf32>
    "tpu.trace_start"() <{level = 10 : i32, message = "hqk,khd->hqd"}> : () -> ()
    %cst_20 = arith.constant dense<0.000000e+00> : vector<8x16x16xf32>
    %29 = tpu.matmul %19, %8, %cst_20 {dimension_numbers = #tpu.dot_dimension_numbers<[2], [0], [1], [2], [0, 0, 0, 1, 1, 2], [0], [1]>} : vector<8x16x16xf32>, vector<16x8x16xf32>, vector<8x16x16xf32> -> vector<8x16x16xf32>
    "tpu.trace_stop"() : () -> ()
    %30 = arith.addf %28, %29 : vector<8x16x16xf32>
    %c0_21 = arith.constant 0 : index
    %c0_22 = arith.constant 0 : index
    %c0_23 = arith.constant 0 : index
    %31 = vector.load %arg10[%c0_21, %c0_22, %c0_23] : memref<8x16x16xf32, #tpu.memory_space<vmem>>, vector<8x16x16xf32>
    tpu.vector_store %arg10[%c0_21, %c0_22, %c0_23], %30 {strides = array<i32>} : memref<8x16x16xf32, #tpu.memory_space<vmem>>, vector<8x16x16xf32>,
    %c0_24 = arith.constant 0 : index
    %c0_25 = arith.constant 0 : index
    %32 = vector.load %arg8[%c0_24, %c0_25] : memref<8x16xf32, #tpu.memory_space<vmem>>, vector<8x16xf32>
    tpu.vector_store %arg8[%c0_24, %c0_25], %13 {strides = array<i32>} : memref<8x16xf32, #tpu.memory_space<vmem>>, vector<8x16xf32>,
    %c0_i32_26 = arith.constant 0 : i32
    %33 = arith.cmpi eq, %arg2, %c0_i32_26 : i32
    %34 = arith.extui %33 : i1 to i32
    %c0_i32_27 = arith.constant 0 : i32
    %35 = arith.cmpi ne, %34, %c0_i32_27 : i32
    scf.if %35 {
      %c0_28 = arith.constant 0 : index
      %c0_29 = arith.constant 0 : index
      %36 = vector.load %arg9[%c0_28, %c0_29] : memref<8x16xf32, #tpu.memory_space<vmem>>, vector<8x16xf32>
      %37 = tpu.reciprocal %36 : vector<8x16xf32> -> vector<8x16xf32>
      %c0_30 = arith.constant 0 : index
      %c0_31 = arith.constant 0 : index
      %c0_32 = arith.constant 0 : index
      %38 = vector.load %arg10[%c0_30, %c0_31, %c0_32] : memref<8x16x16xf32, #tpu.memory_space<vmem>>, vector<8x16x16xf32>
      %39 = vector.shape_cast %37 : vector<8x16xf32> to vector<8x16x1xf32>
      %40 = vector.broadcast %39 : vector<8x16x1xf32> to vector<8x16x16xf32>
      %41 = arith.mulf %38, %40 : vector<8x16x16xf32>
      %42 = tpu.transpose %41, [1, 0, 2] : vector<8x16x16xf32> -> vector<16x8x16xf32>
      %43 = vector.shape_cast %42 : vector<16x8x16xf32> to vector<16x128xf32>
      %c0_33 = arith.constant 0 : index
      %c0_34 = arith.constant 0 : index
      %c0_35 = arith.constant 0 : index
      %44 = vector.load %arg6[%c0_33, %c0_34, %c0_35] : memref<1x16x128xf32, #tpu.memory_space<vmem>>, vector<1x16x128xf32>
      %45 = vector.shape_cast %44 : vector<1x16x128xf32> to vector<16x128xf32>
      %46 = vector.shape_cast %43 : vector<16x128xf32> to vector<1x16x128xf32>
      tpu.vector_store %arg6[%c0_33, %c0_34, %c0_35], %46 {strides = array<i32>} : memref<1x16x128xf32, #tpu.memory_space<vmem>>, vector<1x16x128xf32>,
    } else {
    }
    return
  }
  func.func @transform_0(%arg0: i32, %arg1: i32, %arg2: i32) -> (i32, i32, i32) {
    %c0_i32 = arith.constant 0 : i32
    %c0_i32_0 = arith.constant 0 : i32
    return %arg0, %arg1, %c0_i32 : i32, i32, i32
  }
  func.func @transform_1(%arg0: i32, %arg1: i32, %arg2: i32) -> (i32, i32, i32) {
    %c1_i32 = arith.constant 1 : i32
    %c0_i32 = arith.constant 0 : i32
    return %arg0, %arg2, %c1_i32 : i32, i32, i32
  }
  func.func @transform_2(%arg0: i32, %arg1: i32, %arg2: i32) -> (i32, i32, i32) {
    %c2_i32 = arith.constant 2 : i32
    %c0_i32 = arith.constant 0 : i32
    return %arg0, %arg2, %c2_i32 : i32, i32, i32
  }
  func.func @transform_3(%arg0: i32, %arg1: i32, %arg2: i32) -> (i32, i32, i32) {
    %c0_i32 = arith.constant 0 : i32
    %c0_i32_0 = arith.constant 0 : i32
    return %arg0, %arg1, %c0_i32 : i32, i32, i32
  }
}

</mosaic_0001>

<llo_original>
// kernel: attention_forward.3
$region0: #{attention_forward.3}
  #allocation0 [shape = 'u32[]', space=smem, size = 0x4, offset = 0x4, fixed_abs, tag = 'smem constant byte address 0x4 - core index']
  #allocation1 [shape = 'u32[72,128]{1,0:T(1,128)}', space=vmem, size = 0x9000, scoped, tag = 'internal scratch']
  #allocation2 [shape = 'f32[32,384]{1,0:T(8,128)}', space=vmem, size = 0xc000, scoped, tag = 'scratch operand']
  %s0 = inlined_call_operand.vmem [shape: f32[32,128], index: 0, kind: input, shape index: {}]
  %s1 = inlined_call_operand.vmem [shape: f32[128,384], index: 1, kind: input, shape index: {}]
  %s2 = inlined_call_operand.vmem [shape: f32[1,384], index: 2, kind: input, shape index: {}]
  %s3 = inlined_call_operand.vmem [shape: f32[32,384], index: 3, kind: output, shape index: {}]
  %s4 = sld [smem:[#allocation0]]
  $region30: #{attention_forward.3} parent=0
    _
  %s6 = ssub.s32 1, %s4
  %s7 = scalar_select 0, %s6, %s4
  // Predicated region
  $region2: #{attention_forward.3} parent=0 // pred_check
    _
  $region3: #{attention_forward.3} parent=0 // pred_check_branch
    %9 = sbr.rel (0) target = $region5
  $region4: #{attention_forward.3} parent=0 // pred_region
    _
  $region5: #{attention_forward.3} parent=0 // pred_fallthru
    _
  // Predicated region
  $region6: #{attention_forward.3} parent=0 // pred_check
    _
  $region7: #{attention_forward.3} parent=0 // pred_check_branch
    %11 = sbr.rel (0) target = $region9
  $region8: #{attention_forward.3} parent=0 // pred_region
    _
  $region9: #{attention_forward.3} parent=0 // pred_fallthru
    _
  // Predicated region
  $region10: #{attention_forward.3} parent=0 // pred_check
    _
  $region11: #{attention_forward.3} parent=0 // pred_check_branch
    %13 = sbr.rel (0) target = $region13
  $region12: #{attention_forward.3} parent=0 // pred_region
    _
  $region13: #{attention_forward.3} parent=0 // pred_fallthru
    _
  %p14 = scmp.eq.s32.totalorder 0, 0
  // Predicated region
  $region14: #{attention_forward.3} parent=0 // pred_check
    %p15 = pneg %p14
  $region15: #{attention_forward.3} parent=0 // pred_check_branch
    %17 = sbr.rel (%p15) target = $region17
  $region16: #{attention_forward.3} parent=0 // pred_region
    %18 = vst [vmem:[#allocation2] sm:$0xff] 0.0
    %19 = vst [vmem:[#allocation2 + $0x8] sm:$0xff] 0.0
    %20 = vst [vmem:[#allocation2 + $0x10] sm:$0xff] 0.0
    %21 = vst [vmem:[#allocation2 + $0x18] sm:$0xff] 0.0
    %22 = vst [vmem:[#allocation2 + $0x20] sm:$0xff] 0.0
    %23 = vst [vmem:[#allocation2 + $0x28] sm:$0xff] 0.0
    %24 = vst [vmem:[#allocation2 + $0x30] sm:$0xff] 0.0
    %25 = vst [vmem:[#allocation2 + $0x38] sm:$0xff] 0.0
    %26 = vst [vmem:[#allocation2 + $0x40] sm:$0xff] 0.0
    %27 = vst [vmem:[#allocation2 + $0x48] sm:$0xff] 0.0
    %28 = vst [vmem:[#allocation2 + $0x50] sm:$0xff] 0.0
    %29 = vst [vmem:[#allocation2 + $0x58] sm:$0xff] 0.0
  $region17: #{attention_forward.3} parent=0 // pred_fallthru
    _
  %v30 = vld [vmem:[#allocation2] sm:$0xff]
  %v31 = vld [vmem:[#allocation2 + $0x8] sm:$0xff]
  %v32 = vld [vmem:[#allocation2 + $0x10] sm:$0xff]
  %v33 = vld [vmem:[#allocation2 + $0x18] sm:$0xff]
  %v34 = vld [vmem:[#allocation2 + $0x20] sm:$0xff]
  %v35 = vld [vmem:[#allocation2 + $0x28] sm:$0xff]
  %v36 = vld [vmem:[#allocation2 + $0x30] sm:$0xff]
  %v37 = vld [vmem:[#allocation2 + $0x38] sm:$0xff]
  %v38 = vld [vmem:[#allocation2 + $0x40] sm:$0xff]
  %v39 = vld [vmem:[#allocation2 + $0x48] sm:$0xff]
  %v40 = vld [vmem:[#allocation2 + $0x50] sm:$0xff]
  %v41 = vld [vmem:[#allocation2 + $0x58] sm:$0xff]
  %v42 = vld [vmem:[%s0] sm:$0xff]
  %v43 = vld [vmem:[%s0 + $0x8] sm:$0xff]
  %v44 = vld [vmem:[%s0 + $0x10] sm:$0xff]
  %v45 = vld [vmem:[%s0 + $0x18] sm:$0xff]
  %v46 = vld [vmem:[%s1] sm:$0xff]
  %v47 = vld [vmem:[%s1 + $0x8] sm:$0xff]
  %v48 = vld [vmem:[%s1 + $0x10] sm:$0xff]
  %v49 = vld [vmem:[%s1 + $0x18] sm:$0xff]
  %v50 = vld [vmem:[%s1 + $0x20] sm:$0xff]
  %v51 = vld [vmem:[%s1 + $0x28] sm:$0xff]
  %v52 = vld [vmem:[%s1 + $0x30] sm:$0xff]
  %v53 = vld [vmem:[%s1 + $0x38] sm:$0xff]
  %v54 = vld [vmem:[%s1 + $0x40] sm:$0xff]
  %v55 = vld [vmem:[%s1 + $0x48] sm:$0xff]
  %v56 = vld [vmem:[%s1 + $0x50] sm:$0xff]
  %v57 = vld [vmem:[%s1 + $0x58] sm:$0xff]
  %v58 = vld [vmem:[%s1 + $0x60] sm:$0xff]
  %v59 = vld [vmem:[%s1 + $0x68] sm:$0xff]
  %v60 = vld [vmem:[%s1 + $0x70] sm:$0xff]
  %v61 = vld [vmem:[%s1 + $0x78] sm:$0xff]
  %v62 = vld [vmem:[%s1 + $0x80] sm:$0xff]
  %v63 = vld [vmem:[%s1 + $0x88] sm:$0xff]
  %v64 = vld [vmem:[%s1 + $0x90] sm:$0xff]
  %v65 = vld [vmem:[%s1 + $0x98] sm:$0xff]
  %v66 = vld [vmem:[%s1 + $0xa0] sm:$0xff]
  %v67 = vld [vmem:[%s1 + $0xa8] sm:$0xff]
  %v68 = vld [vmem:[%s1 + $0xb0] sm:$0xff]
  %v69 = vld [vmem:[%s1 + $0xb8] sm:$0xff]
  %v70 = vld [vmem:[%s1 + $0xc0] sm:$0xff]
  %v71 = vld [vmem:[%s1 + $0xc8] sm:$0xff]
  %v72 = vld [vmem:[%s1 + $0xd0] sm:$0xff]
  %v73 = vld [vmem:[%s1 + $0xd8] sm:$0xff]
  %v74 = vld [vmem:[%s1 + $0xe0] sm:$0xff]
  %v75 = vld [vmem:[%s1 + $0xe8] sm:$0xff]
  %v76 = vld [vmem:[%s1 + $0xf0] sm:$0xff]
  %v77 = vld [vmem:[%s1 + $0xf8] sm:$0xff]
  %v78 = vld [vmem:[%s1 + $0x100] sm:$0xff]
  %v79 = vld [vmem:[%s1 + $0x108] sm:$0xff]
  %v80 = vld [vmem:[%s1 + $0x110] sm:$0xff]
  %v81 = vld [vmem:[%s1 + $0x118] sm:$0xff]
  %v82 = vld [vmem:[%s1 + $0x120] sm:$0xff]
  %v83 = vld [vmem:[%s1 + $0x128] sm:$0xff]
  %v84 = vld [vmem:[%s1 + $0x130] sm:$0xff]
  %v85 = vld [vmem:[%s1 + $0x138] sm:$0xff]
  %v86 = vld [vmem:[%s1 + $0x140] sm:$0xff]
  %v87 = vld [vmem:[%s1 + $0x148] sm:$0xff]
  %v88 = vld [vmem:[%s1 + $0x150] sm:$0xff]
  %v89 = vld [vmem:[%s1 + $0x158] sm:$0xff]
  %v90 = vld [vmem:[%s1 + $0x160] sm:$0xff]
  %v91 = vld [vmem:[%s1 + $0x168] sm:$0xff]
  %v92 = vld [vmem:[%s1 + $0x170] sm:$0xff]
  %v93 = vld [vmem:[%s1 + $0x178] sm:$0xff]
  %94 = vmatpush.msra.mxu0 %v91
  %95 = vmatpush.msra.mxu0 %v88
  %96 = vmatpush.msra.mxu0 %v85
  %97 = vmatpush.msra.mxu0 %v82
  %98 = vmatpush.msra.mxu0 %v79
  %99 = vmatpush.msra.mxu0 %v76
  %100 = vmatpush.msra.mxu0 %v73
  %101 = vmatpush.msra.mxu0 %v70
  %102 = vmatpush.msra.mxu0 %v67
  %103 = vmatpush.msra.mxu0 %v64
  %104 = vmatpush.msra.mxu0 %v61
  %105 = vmatpush.msra.mxu0 %v58
  %106 = vmatpush.msra.mxu0 %v55
  %107 = vmatpush.msra.mxu0 %v52
  %108 = vmatpush.msra.mxu0 %v49
  %109 = vmatpush.msra.mxu0 %v46
  %110 = vmatmul.f32.gmra.mxu0 %v42
  %v111 = vpop.f32.mrf.mxu0
  %v112 = vadd.f32 0.0, %v111
  %113 = vmatmul.f32.gmra.mxu0 %v43
  %v114 = vpop.f32.mrf.mxu0
  %v115 = vadd.f32 0.0, %v114
  %116 = vmatmul.f32.gmra.mxu0 %v44
  %v117 = vpop.f32.mrf.mxu0
  %v118 = vadd.f32 0.0, %v117
  %119 = vmatmul.f32.gmra.mxu0 %v45
  %v120 = vpop.f32.mrf.mxu0
  %v121 = vadd.f32 0.0, %v120
  %122 = vdwg.mxu0
  %123 = vmatpush.msra.mxu0 %v92
  %124 = vmatpush.msra.mxu0 %v89
  %125 = vmatpush.msra.mxu0 %v86
  %126 = vmatpush.msra.mxu0 %v83
  %127 = vmatpush.msra.mxu0 %v80
  %128 = vmatpush.msra.mxu0 %v77
  %129 = vmatpush.msra.mxu0 %v74
  %130 = vmatpush.msra.mxu0 %v71
  %131 = vmatpush.msra.mxu0 %v68
  %132 = vmatpush.msra.mxu0 %v65
  %133 = vmatpush.msra.mxu0 %v62
  %134 = vmatpush.msra.mxu0 %v59
  %135 = vmatpush.msra.mxu0 %v56
  %136 = vmatpush.msra.mxu0 %v53
  %137 = vmatpush.msra.mxu0 %v50
  %138 = vmatpush.msra.mxu0 %v47
  %139 = vmatmul.f32.gmra.mxu0 %v42
  %v140 = vpop.f32.mrf.mxu0
  %v141 = vadd.f32 0.0, %v140
  %142 = vmatmul.f32.gmra.mxu0 %v43
  %v143 = vpop.f32.mrf.mxu0
  %v144 = vadd.f32 0.0, %v143
  %145 = vmatmul.f32.gmra.mxu0 %v44
  %v146 = vpop.f32.mrf.mxu0
  %v147 = vadd.f32 0.0, %v146
  %148 = vmatmul.f32.gmra.mxu0 %v45
  %v149 = vpop.f32.mrf.mxu0
  %v150 = vadd.f32 0.0, %v149
  %151 = vdwg.mxu0
  %152 = vmatpush.msra.mxu0 %v93
  %153 = vmatpush.msra.mxu0 %v90
  %154 = vmatpush.msra.mxu0 %v87
  %155 = vmatpush.msra.mxu0 %v84
  %156 = vmatpush.msra.mxu0 %v81
  %157 = vmatpush.msra.mxu0 %v78
  %158 = vmatpush.msra.mxu0 %v75
  %159 = vmatpush.msra.mxu0 %v72
  %160 = vmatpush.msra.mxu0 %v69
  %161 = vmatpush.msra.mxu0 %v66
  %162 = vmatpush.msra.mxu0 %v63
  %163 = vmatpush.msra.mxu0 %v60
  %164 = vmatpush.msra.mxu0 %v57
  %165 = vmatpush.msra.mxu0 %v54
  %166 = vmatpush.msra.mxu0 %v51
  %167 = vmatpush.msra.mxu0 %v48
  %168 = vmatmul.f32.gmra.mxu0 %v42
  %v169 = vpop.f32.mrf.mxu0
  %v170 = vadd.f32 0.0, %v169
  %171 = vmatmul.f32.gmra.mxu0 %v43
  %v172 = vpop.f32.mrf.mxu0
  %v173 = vadd.f32 0.0, %v172
  %174 = vmatmul.f32.gmra.mxu0 %v44
  %v175 = vpop.f32.mrf.mxu0
  %v176 = vadd.f32 0.0, %v175
  %177 = vmatmul.f32.gmra.mxu0 %v45
  %v178 = vpop.f32.mrf.mxu0
  %v179 = vadd.f32 0.0, %v178
  %180 = vdwg.mxu0
  %v181 = vadd.f32 %v30, %v112
  %v182 = vadd.f32 %v31, %v141
  %v183 = vadd.f32 %v32, %v170
  %v184 = vadd.f32 %v33, %v115
  %v185 = vadd.f32 %v34, %v144
  %v186 = vadd.f32 %v35, %v173
  %v187 = vadd.f32 %v36, %v118
  %v188 = vadd.f32 %v37, %v147
  %v189 = vadd.f32 %v38, %v176
  %v190 = vadd.f32 %v39, %v121
  %v191 = vadd.f32 %v40, %v150
  %v192 = vadd.f32 %v41, %v179
  %193 = vst [vmem:[#allocation2] sm:$0xff] %v181
  %194 = vst [vmem:[#allocation2 + $0x8] sm:$0xff] %v182
  %195 = vst [vmem:[#allocation2 + $0x10] sm:$0xff] %v183
  %196 = vst [vmem:[#allocation2 + $0x18] sm:$0xff] %v184
  %197 = vst [vmem:[#allocation2 + $0x20] sm:$0xff] %v185
  %198 = vst [vmem:[#allocation2 + $0x28] sm:$0xff] %v186
  %199 = vst [vmem:[#allocation2 + $0x30] sm:$0xff] %v187
  %200 = vst [vmem:[#allocation2 + $0x38] sm:$0xff] %v188
  %201 = vst [vmem:[#allocation2 + $0x40] sm:$0xff] %v189
  %202 = vst [vmem:[#allocation2 + $0x48] sm:$0xff] %v190
  %203 = vst [vmem:[#allocation2 + $0x50] sm:$0xff] %v191
  %204 = vst [vmem:[#allocation2 + $0x58] sm:$0xff] %v192
  // Predicated region
  $region18: #{attention_forward.3} parent=0 // pred_check
    %p205 = pneg %p14
  $region19: #{attention_forward.3} parent=0 // pred_check_branch
    %207 = sbr.rel (%p205) target = $region21
  $region20: #{attention_forward.3} parent=0 // pred_region
    %v208 = vld [vmem:[#allocation2] sm:$0xff]
    %v209 = vld [vmem:[#allocation2 + $0x8] sm:$0xff]
    %v210 = vld [vmem:[#allocation2 + $0x10] sm:$0xff]
    %v211 = vld [vmem:[#allocation2 + $0x18] sm:$0xff]
    %v212 = vld [vmem:[#allocation2 + $0x20] sm:$0xff]
    %v213 = vld [vmem:[#allocation2 + $0x28] sm:$0xff]
    %v214 = vld [vmem:[#allocation2 + $0x30] sm:$0xff]
    %v215 = vld [vmem:[#allocation2 + $0x38] sm:$0xff]
    %v216 = vld [vmem:[#allocation2 + $0x40] sm:$0xff]
    %v217 = vld [vmem:[#allocation2 + $0x48] sm:$0xff]
    %v218 = vld [vmem:[#allocation2 + $0x50] sm:$0xff]
    %v219 = vld [vmem:[#allocation2 + $0x58] sm:$0xff]
    %v220 = vld [vmem:[%s2] sm:$0x7]
    %v222 = vperm.slane %v220, 0
    %v223 = vperm.slane %v220, 1
    %v224 = vperm.slane %v220, 2
    %v228 = vadd.f32 %v208, %v222
    %v229 = vadd.f32 %v209, %v223
    %v230 = vadd.f32 %v210, %v224
    %v231 = vadd.f32 %v211, %v222
    %v232 = vadd.f32 %v212, %v223
    %v233 = vadd.f32 %v213, %v224
    %v234 = vadd.f32 %v214, %v222
    %v235 = vadd.f32 %v215, %v223
    %v236 = vadd.f32 %v216, %v224
    %v237 = vadd.f32 %v217, %v222
    %v238 = vadd.f32 %v218, %v223
    %v239 = vadd.f32 %v219, %v224
    %240 = vst [vmem:[%s3] sm:$0xff] %v228
    %241 = vst [vmem:[%s3 + $0x8] sm:$0xff] %v229
    %242 = vst [vmem:[%s3 + $0x10] sm:$0xff] %v230
    %243 = vst [vmem:[%s3 + $0x18] sm:$0xff] %v231
    %244 = vst [vmem:[%s3 + $0x20] sm:$0xff] %v232
    %245 = vst [vmem:[%s3 + $0x28] sm:$0xff] %v233
    %246 = vst [vmem:[%s3 + $0x30] sm:$0xff] %v234
    %247 = vst [vmem:[%s3 + $0x38] sm:$0xff] %v235
    %248 = vst [vmem:[%s3 + $0x40] sm:$0xff] %v236
    %249 = vst [vmem:[%s3 + $0x48] sm:$0xff] %v237
    %250 = vst [vmem:[%s3 + $0x50] sm:$0xff] %v238
    %251 = vst [vmem:[%s3 + $0x58] sm:$0xff] %v239
  $region21: #{attention_forward.3} parent=0 // pred_fallthru
    _
  // Predicated region
  $region22: #{attention_forward.3} parent=0 // pred_check
    _
  $region23: #{attention_forward.3} parent=0 // pred_check_branch
    %253 = sbr.rel (0) target = $region25
  $region24: #{attention_forward.3} parent=0 // pred_region
    _
  $region25: #{attention_forward.3} parent=0 // pred_fallthru
    _
  // Predicated region
  $region26: #{attention_forward.3} parent=0 // pred_check
    _
  $region27: #{attention_forward.3} parent=0 // pred_check_branch
    %255 = sbr.rel (0) target = $region29
  $region28: #{attention_forward.3} parent=0 // pred_region
    _
  $region29: #{attention_forward.3} parent=0 // pred_fallthru
    _

// kernel: attention_forward.5
$region0: #{attention_forward.5}
  #allocation0 [shape = 'u32[]', space=smem, size = 0x4, offset = 0x4, fixed_abs, tag = 'smem constant byte address 0x4 - core index']
  #allocation1 [shape = 'u32[72,128]{1,0:T(1,128)}', space=vmem, size = 0x9000, scoped, tag = 'internal scratch']
  #allocation2 [shape = 'f32[32,128]{1,0:T(8,128)}', space=vmem, size = 0x4000, scoped, tag = 'scratch operand']
  %s0 = inlined_call_operand.vmem [shape: f32[32,128], index: 0, kind: input, shape index: {}]
  %s1 = inlined_call_operand.vmem [shape: f32[128,128], index: 1, kind: input, shape index: {}]
  %s2 = inlined_call_operand.vmem [shape: f32[1,128], index: 2, kind: input, shape index: {}]
  %s3 = inlined_call_operand.hbm [shape: f32[32,128], index: 3, kind: output, shape index: {}]
  %s4 = sld [smem:[#allocation0]]
  $region30: #{attention_forward.5} parent=0
    _
  %s6 = ssub.s32 1, %s4
  %s7 = scalar_select 0, %s6, %s4
  $region1: #{attention_forward.5} parent=0
    #allocation3 [shape = 'u8[16384]{0}', space=vmem, size = 0x4000, scoped, tag = 'output window, operand 0, single buffered']
    #allocation4 [shape = 's32[1]{0}', space=sflag, size = 0x4, scoped, tag = 'scoped memory for attention_forward.5']
    %8 = vsyncpa [#allocation4], 0
    // Predicated region
    $region2: #{attention_forward.5} parent=1 // pred_check
      _
    $region3: #{attention_forward.5} parent=1 // pred_check_branch
      %10 = sbr.rel (0) target = $region5
    $region4: #{attention_forward.5} parent=1 // pred_region
      _
    $region5: #{attention_forward.5} parent=1 // pred_fallthru
      _
    // Predicated region
    $region6: #{attention_forward.5} parent=1 // pred_check
      _
    $region7: #{attention_forward.5} parent=1 // pred_check_branch
      %12 = sbr.rel (0) target = $region9
    $region8: #{attention_forward.5} parent=1 // pred_region
      _
    $region9: #{attention_forward.5} parent=1 // pred_fallthru
      _
    // Predicated region
    $region10: #{attention_forward.5} parent=1 // pred_check
      _
    $region11: #{attention_forward.5} parent=1 // pred_check_branch
      %14 = sbr.rel (0) target = $region13
    $region12: #{attention_forward.5} parent=1 // pred_region
      _
    $region13: #{attention_forward.5} parent=1 // pred_fallthru
      _
    %p15 = scmp.eq.s32.totalorder 0, 0
    // Predicated region
    $region14: #{attention_forward.5} parent=1 // pred_check
      %p16 = pneg %p15
    $region15: #{attention_forward.5} parent=1 // pred_check_branch
      %18 = sbr.rel (%p16) target = $region17
    $region16: #{attention_forward.5} parent=1 // pred_region
      %19 = vst [vmem:[#allocation2] sm:$0xff] 0.0
      %20 = vst [vmem:[#allocation2 + $0x8] sm:$0xff] 0.0
      %21 = vst [vmem:[#allocation2 + $0x10] sm:$0xff] 0.0
      %22 = vst [vmem:[#allocation2 + $0x18] sm:$0xff] 0.0
    $region17: #{attention_forward.5} parent=1 // pred_fallthru
      _
    %v23 = vld [vmem:[#allocation2] sm:$0xff]
    %v24 = vld [vmem:[#allocation2 + $0x8] sm:$0xff]
    %v25 = vld [vmem:[#allocation2 + $0x10] sm:$0xff]
    %v26 = vld [vmem:[#allocation2 + $0x18] sm:$0xff]
    %v27 = vld [vmem:[%s0] sm:$0xff]
    %v28 = vld [vmem:[%s0 + $0x8] sm:$0xff]
    %v29 = vld [vmem:[%s0 + $0x10] sm:$0xff]
    %v30 = vld [vmem:[%s0 + $0x18] sm:$0xff]
    %v31 = vld [vmem:[%s1] sm:$0xff]
    %v32 = vld [vmem:[%s1 + $0x8] sm:$0xff]
    %v33 = vld [vmem:[%s1 + $0x10] sm:$0xff]
    %v34 = vld [vmem:[%s1 + $0x18] sm:$0xff]
    %v35 = vld [vmem:[%s1 + $0x20] sm:$0xff]
    %v36 = vld [vmem:[%s1 + $0x28] sm:$0xff]
    %v37 = vld [vmem:[%s1 + $0x30] sm:$0xff]
    %v38 = vld [vmem:[%s1 + $0x38] sm:$0xff]
    %v39 = vld [vmem:[%s1 + $0x40] sm:$0xff]
    %v40 = vld [vmem:[%s1 + $0x48] sm:$0xff]
    %v41 = vld [vmem:[%s1 + $0x50] sm:$0xff]
    %v42 = vld [vmem:[%s1 + $0x58] sm:$0xff]
    %v43 = vld [vmem:[%s1 + $0x60] sm:$0xff]
    %v44 = vld [vmem:[%s1 + $0x68] sm:$0xff]
    %v45 = vld [vmem:[%s1 + $0x70] sm:$0xff]
    %v46 = vld [vmem:[%s1 + $0x78] sm:$0xff]
    %47 = vmatpush.msra.mxu0 %v46
    %48 = vmatpush.msra.mxu0 %v45
    %49 = vmatpush.msra.mxu0 %v44
    %50 = vmatpush.msra.mxu0 %v43
    %51 = vmatpush.msra.mxu0 %v42
    %52 = vmatpush.msra.mxu0 %v41
    %53 = vmatpush.msra.mxu0 %v40
    %54 = vmatpush.msra.mxu0 %v39
    %55 = vmatpush.msra.mxu0 %v38
    %56 = vmatpush.msra.mxu0 %v37
    %57 = vmatpush.msra.mxu0 %v36
    %58 = vmatpush.msra.mxu0 %v35
    %59 = vmatpush.msra.mxu0 %v34
    %60 = vmatpush.msra.mxu0 %v33
    %61 = vmatpush.msra.mxu0 %v32
    %62 = vmatpush.msra.mxu0 %v31
    %63 = vmatmul.f32.gmra.mxu0 %v27
    %v64 = vpop.f32.mrf.mxu0
    %v65 = vadd.f32 0.0, %v64
    %66 = vmatmul.f32.gmra.mxu0 %v28
    %v67 = vpop.f32.mrf.mxu0
    %v68 = vadd.f32 0.0, %v67
    %69 = vmatmul.f32.gmra.mxu0 %v29
    %v70 = vpop.f32.mrf.mxu0
    %v71 = vadd.f32 0.0, %v70
    %72 = vmatmul.f32.gmra.mxu0 %v30
    %v73 = vpop.f32.mrf.mxu0
    %v74 = vadd.f32 0.0, %v73
    %75 = vdwg.mxu0
    %v76 = vadd.f32 %v23, %v65
    %v77 = vadd.f32 %v24, %v68
    %v78 = vadd.f32 %v25, %v71
    %v79 = vadd.f32 %v26, %v74
    %80 = vst [vmem:[#allocation2] sm:$0xff] %v76
    %81 = vst [vmem:[#allocation2 + $0x8] sm:$0xff] %v77
    %82 = vst [vmem:[#allocation2 + $0x10] sm:$0xff] %v78
    %83 = vst [vmem:[#allocation2 + $0x18] sm:$0xff] %v79
    // Predicated region
    $region18: #{attention_forward.5} parent=1 // pred_check
      %p84 = pneg %p15
    $region19: #{attention_forward.5} parent=1 // pred_check_branch
      %86 = sbr.rel (%p84) target = $region21
    $region20: #{attention_forward.5} parent=1 // pred_region
      %v87 = vld [vmem:[#allocation2] sm:$0xff]
      %v88 = vld [vmem:[#allocation2 + $0x8] sm:$0xff]
      %v89 = vld [vmem:[#allocation2 + $0x10] sm:$0xff]
      %v90 = vld [vmem:[#allocation2 + $0x18] sm:$0xff]
      %v91 = vld [vmem:[%s2] sm:$0x1]
      %v93 = vperm.slane %v91, 0
      %v95 = vadd.f32 %v87, %v93
      %v96 = vadd.f32 %v88, %v93
      %v97 = vadd.f32 %v89, %v93
      %v98 = vadd.f32 %v90, %v93
      %99 = vst [vmem:[#allocation3] sm:$0xff] %v95
      %100 = vst [vmem:[#allocation3 + $0x8] sm:$0xff] %v96
      %101 = vst [vmem:[#allocation3 + $0x10] sm:$0xff] %v97
      %102 = vst [vmem:[#allocation3 + $0x18] sm:$0xff] %v98
    $region21: #{attention_forward.5} parent=1 // pred_fallthru
      _
    // Predicated region
    $region22: #{attention_forward.5} parent=1 // pred_check
      _
    $region23: #{attention_forward.5} parent=1 // pred_check_branch
      %104 = sbr.rel (0) target = $region25
    $region24: #{attention_forward.5} parent=1 // pred_region
      %106 = vsyncadd [#allocation4], 0
      %s107 = sshll.u32 [#allocation3], 4
      %s108 = int_to_ptr.vmem [resolvable:$true] %s107
      %s109 = sshll.u32 %s3, 4
      %s110 = int_to_ptr.hbm [resolvable:$true] %s109
      %115 = dma.vmem_to_hbm [thread:$0]  %s108, 512, %s110, [#allocation4], 128, 128, 8
    $region25: #{attention_forward.5} parent=1 // pred_fallthru
      _
    // Predicated region
    $region26: #{attention_forward.5} parent=1 // pred_check
      _
    $region27: #{attention_forward.5} parent=1 // pred_check_branch
      %117 = sbr.rel (0) target = $region29
    $region28: #{attention_forward.5} parent=1 // pred_region
      %119 = dma.done [#allocation4], 512
    $region29: #{attention_forward.5} parent=1 // pred_fallthru
      _
    %120 = vsyncpa [#allocation4], 1

// kernel: attention_forward.4
$region0: #{attention_forward.4}
  #allocation0 [shape = 'u32[]', space=smem, size = 0x4, offset = 0x4, fixed_abs, tag = 'smem constant byte address 0x4 - core index']
  #allocation1 [shape = 'u32[72,128]{1,0:T(1,128)}', space=vmem, size = 0x9000, scoped, tag = 'internal scratch']
  #allocation2 [shape = 'f32[8,16,16]{2,1,0:T(8,128)}', space=vmem, size = 0x10000, scoped, tag = 'scratch operand']
  #allocation3 [shape = 'f32[8,16]{1,0:T(8,128)}', space=vmem, size = 0x1000, scoped, tag = 'scratch operand']
  #allocation4 [shape = 'f32[8,16]{1,0:T(8,128)}', space=vmem, size = 0x1000, scoped, tag = 'scratch operand']
  #allocation5 [shape = 'f32[8,16,16]{2,1,0:T(8,128)}', space=vmem, size = 0x10000, scoped, tag = 'scratch operand']
  %s0 = inlined_call_operand.vmem [shape: f32[2,16,384], index: 0, kind: input, shape index: {}, may-alias: {0,1,2}]
  %s1 = inlined_call_operand.vmem [shape: f32[2,16,384], index: 1, kind: input, shape index: {}, may-alias: {0,1,2}]
  %s2 = inlined_call_operand.vmem [shape: f32[2,16,384], index: 2, kind: input, shape index: {}, may-alias: {0,1,2}]
  %s3 = inlined_call_operand.vmem [shape: f32[2,16,128], index: 3, kind: output, shape index: {}]
  %s4 = sld [smem:[#allocation0]]
  $region167: #{attention_forward.4} parent=0
    _
  %s6 = ssub.s32 1, %s4
  %s7 = scalar_select 0, %s6, %s4
  $region1: #{attention_forward.4} parent=0
    #allocation6 [shape = 'u8[16384]{0}', space=vmem, size = 0x4000, scoped, tag = 'input window, operand 0']
    #allocation7 [shape = 'u8[16384]{0}', space=vmem, size = 0x4000, scoped, tag = 'input window, operand 1']
    #allocation8 [shape = 'u8[16384]{0}', space=vmem, size = 0x4000, scoped, tag = 'input window, operand 2']
    loop: start=0, step=1, limit=4
    $region2: #{attention_forward.4} parent=1 // loop_pre_header
      _
    $region3: #{attention_forward.4} parent=1 // loop_header
      %s9 = sphi 0, %s13
      %p10 = scmp.ge.s32.totalorder %s9, 4
      %s16 = sphi 0, %s35
      %s17 = sphi 0, %s31
      %s18 = sphi 0, %s27
      %s19 = sphi 0, %s16
      %s20 = sphi 0, %s17
      %s21 = sphi 0, %s18
      %s22 = sphi 0, %s19
      %s23 = sphi 0, %s20
      %s24 = sphi 0, %s21
      %s40 = sphi 0, %s42
      %s43 = sphi 0, %s40
      %s44 = sphi 0, %s43
      %s60 = sphi 0, %s44
      %s68 = sphi 0, %s70
      %s71 = sphi 0, %s68
      %s72 = sphi 0, %s71
      %s88 = sphi 0, %s72
      %s96 = sphi 0, %s98
      %s99 = sphi 0, %s96
      %s100 = sphi 0, %s99
      %s116 = sphi 0, %s100
      %s124 = sphi 0, %s126
      %s127 = sphi 0, %s124
      %s128 = sphi 0, %s127
      %s144 = sphi 0, %s128
    $region4: #{attention_forward.4} parent=1 // loop_header_branch
      %12 = sbr.rel (%p10) target = $region8
    $region5: #{attention_forward.4} parent=1 // loop_body
      %s14 = ssub.s32 %s9, 1
      %s15 = ssub.s32 %s9, 2
      %s25 = sadd.s32 1, %s18
      %p26 = scmp.ge.s32.totalorder %s25, 1
      %s27 = scalar_select %p26, 0, %s25
      %s28 = sadd.s32 1, %s17
      %s29 = scalar_select %p26, %s28, %s17
      %p30 = scmp.ge.s32.totalorder %s29, 1
      %s31 = scalar_select %p30, 0, %s29
      %s32 = sadd.s32 1, %s16
      %s33 = scalar_select %p30, %s32, %s16
      %p34 = scmp.ge.s32.totalorder %s33, 2
      %s35 = scalar_select %p34, 0, %s33
      %s36 = ssub.s32 %s16, %s35
      %s37 = ssub.s32 %s17, %s31
      %s38 = sor.u32 %s36, %s37
      %p39 = scmp.eq.s32.totalorder %s38, 0
      %s41 = sadd.s32 %s40, 1
      %s42 = scalar_select %p39, %s40, %s41
      %p45 = pneg %p39
      %p46 = scmp.eq.s32.totalorder %s9, 1
      %p47 = por %p45, %p46
      %p48 = scmp.ne.s32.totalorder %s40, %s43
      %p49 = scmp.eq.s32.totalorder %s9, 0
      %p50 = por %p48, %p49
      %p51 = scmp.ne.s32.totalorder %s40, %s43
      %p52 = scmp.eq.s32.totalorder %s14, 1
      %p53 = por %p51, %p52
      %p54 = scmp.ne.s32.totalorder %s43, %s44
      %p55 = scmp.eq.s32.totalorder %s14, 0
      %p56 = por %p54, %p55
      %p57 = scmp.ne.s32.totalorder %s43, %s44
      %p58 = scmp.eq.s32.totalorder %s15, 1
      %p59 = por %p57, %p58
      %p61 = scmp.ne.s32.totalorder %s44, %s60
      %p62 = scmp.eq.s32.totalorder %s15, 0
      %p63 = por %p61, %p62
      %s64 = ssub.s32 %s16, %s35
      %s65 = ssub.s32 %s18, %s27
      %s66 = sor.u32 %s64, %s65
      %p67 = scmp.eq.s32.totalorder %s66, 0
      %s69 = sadd.s32 %s68, 1
      %s70 = scalar_select %p67, %s68, %s69
      %p73 = pneg %p67
      %p74 = scmp.eq.s32.totalorder %s9, 1
      %p75 = por %p73, %p74
      %p76 = scmp.ne.s32.totalorder %s68, %s71
      %p77 = scmp.eq.s32.totalorder %s9, 0
      %p78 = por %p76, %p77
      %p79 = scmp.ne.s32.totalorder %s68, %s71
      %p80 = scmp.eq.s32.totalorder %s14, 1
      %p81 = por %p79, %p80
      %p82 = scmp.ne.s32.totalorder %s71, %s72
      %p83 = scmp.eq.s32.totalorder %s14, 0
      %p84 = por %p82, %p83
      %p85 = scmp.ne.s32.totalorder %s71, %s72
      %p86 = scmp.eq.s32.totalorder %s15, 1
      %p87 = por %p85, %p86
      %p89 = scmp.ne.s32.totalorder %s72, %s88
      %p90 = scmp.eq.s32.totalorder %s15, 0
      %p91 = por %p89, %p90
      %s92 = ssub.s32 %s16, %s35
      %s93 = ssub.s32 %s18, %s27
      %s94 = sor.u32 %s92, %s93
      %p95 = scmp.eq.s32.totalorder %s94, 0
      %s97 = sadd.s32 %s96, 1
      %s98 = scalar_select %p95, %s96, %s97
      %p101 = pneg %p95
      %p102 = scmp.eq.s32.totalorder %s9, 1
      %p103 = por %p101, %p102
      %p104 = scmp.ne.s32.totalorder %s96, %s99
      %p105 = scmp.eq.s32.totalorder %s9, 0
      %p106 = por %p104, %p105
      %p107 = scmp.ne.s32.totalorder %s96, %s99
      %p108 = scmp.eq.s32.totalorder %s14, 1
      %p109 = por %p107, %p108
      %p110 = scmp.ne.s32.totalorder %s99, %s100
      %p111 = scmp.eq.s32.totalorder %s14, 0
      %p112 = por %p110, %p111
      %p113 = scmp.ne.s32.totalorder %s99, %s100
      %p114 = scmp.eq.s32.totalorder %s15, 1
      %p115 = por %p113, %p114
      %p117 = scmp.ne.s32.totalorder %s100, %s116
      %p118 = scmp.eq.s32.totalorder %s15, 0
      %p119 = por %p117, %p118
      %s120 = ssub.s32 %s16, %s35
      %s121 = ssub.s32 %s17, %s31
      %s122 = sor.u32 %s120, %s121
      %p123 = scmp.eq.s32.totalorder %s122, 0
      %s125 = sadd.s32 %s124, 1
      %s126 = scalar_select %p123, %s124, %s125
      %p129 = pneg %p123
      %p130 = scmp.eq.s32.totalorder %s9, 1
      %p131 = por %p129, %p130
      %p132 = scmp.ne.s32.totalorder %s124, %s127
      %p133 = scmp.eq.s32.totalorder %s9, 0
      %p134 = por %p132, %p133
      %p135 = scmp.ne.s32.totalorder %s124, %s127
      %p136 = scmp.eq.s32.totalorder %s14, 1
      %p137 = por %p135, %p136
      %p138 = scmp.ne.s32.totalorder %s127, %s128
      %p139 = scmp.eq.s32.totalorder %s14, 0
      %p140 = por %p138, %p139
      %p141 = scmp.ne.s32.totalorder %s127, %s128
      %p142 = scmp.eq.s32.totalorder %s15, 1
      %p143 = por %p141, %p142
      %p145 = scmp.ne.s32.totalorder %s128, %s144
      %p146 = scmp.eq.s32.totalorder %s15, 0
      %p147 = por %p145, %p146
      %p148 = scmp.le.s32.totalorder 1, %s9
      %p149 = scmp.lt.s32.totalorder %s9, 3
      %p150 = pnand %p148, %p149
      %p151 = pneg %p150
      // Predicated region
      $region9: #{attention_forward.4} parent=5 // pred_check
        _
      $region10: #{attention_forward.4} parent=5 // pred_check_branch
        %153 = sbr.rel (%p150) target = $region12
      $region11: #{attention_forward.4} parent=5 // pred_region
        %s154 = ssub.s32 %s9, 1
      $region12: #{attention_forward.4} parent=5 // pred_fallthru
        _
      %p155 = scmp.lt.s32.totalorder %s9, 2
      // Predicated region
      $region13: #{attention_forward.4} parent=5 // pred_check
        %p156 = pneg %p155
      $region14: #{attention_forward.4} parent=5 // pred_check_branch
        %158 = sbr.rel (%p156) target = $region16
      $region15: #{attention_forward.4} parent=5 // pred_region
        // Predicated region
        $region17: #{attention_forward.4} parent=15 // pred_check
          %p159 = pneg %p50
        $region18: #{attention_forward.4} parent=15 // pred_check_branch
          %161 = sbr.rel (%p159) target = $region20
        $region19: #{attention_forward.4} parent=15 // pred_region
          %s162 = sand.u32 %s40, 1
          %s163 = sand.u32 %s40, 1
          %s164 = smul.addr %s163, 16
          %s165 = scalar_lea.vmem [#allocation6], %s164
          %s166 = smul.u32 2, %s17
          %s167 = smul.addr %s166, 3
          %s168 = smul.addr %s16, 6
          %s169 = sadd.s32 %s167, %s168
          %s170 = smul.addr %s169, 8
          %s171 = scalar_lea.vmem %s0, %s170
          // Predicated region
          $region21: #{attention_forward.4} parent=19 // pred_check
            _
          $region22: #{attention_forward.4} parent=19 // pred_check_branch
            %173 = sbr.rel (0) target = $region24
          $region23: #{attention_forward.4} parent=19 // pred_region
            // Predicated region
            $region25: #{attention_forward.4} parent=23 // pred_check
              _
            $region26: #{attention_forward.4} parent=23 // pred_check_branch
              %175 = sbr.rel (0) target = $region28
            $region27: #{attention_forward.4} parent=23 // pred_region
              // Predicated region
              $region40: #{attention_forward.4} parent=27 // pred_check
                _
              $region41: #{attention_forward.4} parent=27 // pred_check_branch
                %193 = sbr.rel (0) target = $region43
              $region42: #{attention_forward.4} parent=27 // pred_region
                loop: start=0, step=1, limit=1
                $region44: #{attention_forward.4} parent=42 // loop_pre_header
                  _
                $region45: #{attention_forward.4} parent=42 // loop_header
                  %s195 = sphi 0, %s199
                  %p196 = scmp.ge.s32.totalorder %s195, 1
                  %s200 = sphi %s171, %s171
                  %s201 = sphi %s165, %s165
                $region46: #{attention_forward.4} parent=42 // loop_header_branch
                  %198 = sbr.rel (%p196) target = $region50
                $region47: #{attention_forward.4} parent=42 // loop_body
                  %v202 = vld [vmem:[%s200] sm:$0xff]
                  %203 = vst [vmem:[%s201] sm:$0xff] %v202
                  %v204 = vld [vmem:[%s200 + $0x18] sm:$0xff]
                  %205 = vst [vmem:[%s201 + $0x8] sm:$0xff] %v204
                $region48: #{attention_forward.4} parent=42 // loop_footer
                  %s199 = sadd.s32 1, %s195
                $region49: #{attention_forward.4} parent=42 // loop_footer_branch
                  %194 = sbr.rel target = $region45
                $region50: #{attention_forward.4} parent=42 // loop_exit
                  _
              $region43: #{attention_forward.4} parent=27 // pred_fallthru
                _
              // Predicated region
              $region51: #{attention_forward.4} parent=27 // pred_check
                _
              $region52: #{attention_forward.4} parent=27 // pred_check_branch
                %207 = sbr.rel target = $region54
              $region53: #{attention_forward.4} parent=27 // pred_region
                _
              $region54: #{attention_forward.4} parent=27 // pred_fallthru
                _
            $region28: #{attention_forward.4} parent=23 // pred_fallthru
              _
            // Predicated region
            $region29: #{attention_forward.4} parent=23 // pred_check
              _
            $region30: #{attention_forward.4} parent=23 // pred_check_branch
              %177 = sbr.rel target = $region32
            $region31: #{attention_forward.4} parent=23 // pred_region
              %s179 = ssub.s32 256, 1
              loop: start=0, step=1, limit=1
              $region33: #{attention_forward.4} parent=31 // loop_pre_header
                _
              $region34: #{attention_forward.4} parent=31 // loop_header
                %s181 = sphi 0, %s185
                %p182 = scmp.ge.s32.totalorder %s181, 1
                %s186 = sphi %s171, %s171
                %s187 = sphi %s165, %s165
              $region35: #{attention_forward.4} parent=31 // loop_header_branch
                %184 = sbr.rel (%p182) target = $region39
              $region36: #{attention_forward.4} parent=31 // loop_body
                %v188 = vld [vmem:[%s186] sm:%s179]
                %189 = vst [vmem:[%s187] sm:%s179] %v188
                %v190 = vld [vmem:[%s186 + $0x18] sm:%s179]
                %191 = vst [vmem:[%s187 + $0x8] sm:%s179] %v190
              $region37: #{attention_forward.4} parent=31 // loop_footer
                %s185 = sadd.s32 1, %s181
              $region38: #{attention_forward.4} parent=31 // loop_footer_branch
                %180 = sbr.rel target = $region34
              $region39: #{attention_forward.4} parent=31 // loop_exit
                _
            $region32: #{attention_forward.4} parent=23 // pred_fallthru
              _
          $region24: #{attention_forward.4} parent=19 // pred_fallthru
            _
          %208 = vnop
        $region20: #{attention_forward.4} parent=15 // pred_fallthru
          _
        // Predicated region
        $region55: #{attention_forward.4} parent=15 // pred_check
          %p209 = pneg %p78
        $region56: #{attention_forward.4} parent=15 // pred_check_branch
          %211 = sbr.rel (%p209) target = $region58
        $region57: #{attention_forward.4} parent=15 // pred_region
          %s212 = sand.u32 %s68, 1
          %s213 = sand.u32 %s68, 1
          %s214 = smul.addr %s213, 16
          %s215 = scalar_lea.vmem [#allocation7], %s214
          %s216 = smul.u32 2, %s18
          %s217 = smul.addr %s216, 3
          %s218 = sadd.s32 1, %s217
          %s219 = smul.addr %s16, 6
          %s220 = sadd.s32 %s218, %s219
          %s221 = smul.addr %s220, 8
          %s222 = scalar_lea.vmem %s1, %s221
          // Predicated region
          $region59: #{attention_forward.4} parent=57 // pred_check
            _
          $region60: #{attention_forward.4} parent=57 // pred_check_branch
            %224 = sbr.rel (0) target = $region62
          $region61: #{attention_forward.4} parent=57 // pred_region
            // Predicated region
            $region63: #{attention_forward.4} parent=61 // pred_check
              _
            $region64: #{attention_forward.4} parent=61 // pred_check_branch
              %226 = sbr.rel (0) target = $region66
            $region65: #{attention_forward.4} parent=61 // pred_region
              // Predicated region
              $region78: #{attention_forward.4} parent=65 // pred_check
                _
              $region79: #{attention_forward.4} parent=65 // pred_check_branch
                %244 = sbr.rel (0) target = $region81
              $region80: #{attention_forward.4} parent=65 // pred_region
                loop: start=0, step=1, limit=1
                $region82: #{attention_forward.4} parent=80 // loop_pre_header
                  _
                $region83: #{attention_forward.4} parent=80 // loop_header
                  %s246 = sphi 0, %s250
                  %p247 = scmp.ge.s32.totalorder %s246, 1
                  %s251 = sphi %s222, %s222
                  %s252 = sphi %s215, %s215
                $region84: #{attention_forward.4} parent=80 // loop_header_branch
                  %249 = sbr.rel (%p247) target = $region88
                $region85: #{attention_forward.4} parent=80 // loop_body
                  %v253 = vld [vmem:[%s251] sm:$0xff]
                  %254 = vst [vmem:[%s252] sm:$0xff] %v253
                  %v255 = vld [vmem:[%s251 + $0x18] sm:$0xff]
                  %256 = vst [vmem:[%s252 + $0x8] sm:$0xff] %v255
                $region86: #{attention_forward.4} parent=80 // loop_footer
                  %s250 = sadd.s32 1, %s246
                $region87: #{attention_forward.4} parent=80 // loop_footer_branch
                  %245 = sbr.rel target = $region83
                $region88: #{attention_forward.4} parent=80 // loop_exit
                  _
              $region81: #{attention_forward.4} parent=65 // pred_fallthru
                _
              // Predicated region
              $region89: #{attention_forward.4} parent=65 // pred_check
                _
              $region90: #{attention_forward.4} parent=65 // pred_check_branch
                %258 = sbr.rel target = $region92
              $region91: #{attention_forward.4} parent=65 // pred_region
                _
              $region92: #{attention_forward.4} parent=65 // pred_fallthru
                _
            $region66: #{attention_forward.4} parent=61 // pred_fallthru
              _
            // Predicated region
            $region67: #{attention_forward.4} parent=61 // pred_check
              _
            $region68: #{attention_forward.4} parent=61 // pred_check_branch
              %228 = sbr.rel target = $region70
            $region69: #{attention_forward.4} parent=61 // pred_region
              %s230 = ssub.s32 256, 1
              loop: start=0, step=1, limit=1
              $region71: #{attention_forward.4} parent=69 // loop_pre_header
                _
              $region72: #{attention_forward.4} parent=69 // loop_header
                %s232 = sphi 0, %s236
                %p233 = scmp.ge.s32.totalorder %s232, 1
                %s237 = sphi %s222, %s222
                %s238 = sphi %s215, %s215
              $region73: #{attention_forward.4} parent=69 // loop_header_branch
                %235 = sbr.rel (%p233) target = $region77
              $region74: #{attention_forward.4} parent=69 // loop_body
                %v239 = vld [vmem:[%s237] sm:%s230]
                %240 = vst [vmem:[%s238] sm:%s230] %v239
                %v241 = vld [vmem:[%s237 + $0x18] sm:%s230]
                %242 = vst [vmem:[%s238 + $0x8] sm:%s230] %v241
              $region75: #{attention_forward.4} parent=69 // loop_footer
                %s236 = sadd.s32 1, %s232
              $region76: #{attention_forward.4} parent=69 // loop_footer_branch
                %231 = sbr.rel target = $region72
              $region77: #{attention_forward.4} parent=69 // loop_exit
                _
            $region70: #{attention_forward.4} parent=61 // pred_fallthru
              _
          $region62: #{attention_forward.4} parent=57 // pred_fallthru
            _
          %259 = vnop
        $region58: #{attention_forward.4} parent=15 // pred_fallthru
          _
        // Predicated region
        $region93: #{attention_forward.4} parent=15 // pred_check
          %p260 = pneg %p106
        $region94: #{attention_forward.4} parent=15 // pred_check_branch
          %262 = sbr.rel (%p260) target = $region96
        $region95: #{attention_forward.4} parent=15 // pred_region
          %s263 = sand.u32 %s96, 1
          %s264 = sand.u32 %s96, 1
          %s265 = smul.addr %s264, 16
          %s266 = scalar_lea.vmem [#allocation8], %s265
          %s267 = smul.u32 2, %s18
          %s268 = smul.addr %s267, 3
          %s269 = sadd.s32 2, %s268
          %s270 = smul.addr %s16, 6
          %s271 = sadd.s32 %s269, %s270
          %s272 = smul.addr %s271, 8
          %s273 = scalar_lea.vmem %s2, %s272
          // Predicated region
          $region97: #{attention_forward.4} parent=95 // pred_check
            _
          $region98: #{attention_forward.4} parent=95 // pred_check_branch
            %275 = sbr.rel (0) target = $region100
          $region99: #{attention_forward.4} parent=95 // pred_region
            // Predicated region
            $region101: #{attention_forward.4} parent=99 // pred_check
              _
            $region102: #{attention_forward.4} parent=99 // pred_check_branch
              %277 = sbr.rel (0) target = $region104
            $region103: #{attention_forward.4} parent=99 // pred_region
              // Predicated region
              $region116: #{attention_forward.4} parent=103 // pred_check
                _
              $region117: #{attention_forward.4} parent=103 // pred_check_branch
                %295 = sbr.rel (0) target = $region119
              $region118: #{attention_forward.4} parent=103 // pred_region
                loop: start=0, step=1, limit=1
                $region120: #{attention_forward.4} parent=118 // loop_pre_header
                  _
                $region121: #{attention_forward.4} parent=118 // loop_header
                  %s297 = sphi 0, %s301
                  %p298 = scmp.ge.s32.totalorder %s297, 1
                  %s302 = sphi %s273, %s273
                  %s303 = sphi %s266, %s266
                $region122: #{attention_forward.4} parent=118 // loop_header_branch
                  %300 = sbr.rel (%p298) target = $region126
                $region123: #{attention_forward.4} parent=118 // loop_body
                  %v304 = vld [vmem:[%s302] sm:$0xff]
                  %305 = vst [vmem:[%s303] sm:$0xff] %v304
                  %v306 = vld [vmem:[%s302 + $0x18] sm:$0xff]
                  %307 = vst [vmem:[%s303 + $0x8] sm:$0xff] %v306
                $region124: #{attention_forward.4} parent=118 // loop_footer
                  %s301 = sadd.s32 1, %s297
                $region125: #{attention_forward.4} parent=118 // loop_footer_branch
                  %296 = sbr.rel target = $region121
                $region126: #{attention_forward.4} parent=118 // loop_exit
                  _
              $region119: #{attention_forward.4} parent=103 // pred_fallthru
                _
              // Predicated region
              $region127: #{attention_forward.4} parent=103 // pred_check
                _
              $region128: #{attention_forward.4} parent=103 // pred_check_branch
                %309 = sbr.rel target = $region130
              $region129: #{attention_forward.4} parent=103 // pred_region
                _
              $region130: #{attention_forward.4} parent=103 // pred_fallthru
                _
            $region104: #{attention_forward.4} parent=99 // pred_fallthru
              _
            // Predicated region
            $region105: #{attention_forward.4} parent=99 // pred_check
              _
            $region106: #{attention_forward.4} parent=99 // pred_check_branch
              %279 = sbr.rel target = $region108
            $region107: #{attention_forward.4} parent=99 // pred_region
              %s281 = ssub.s32 256, 1
              loop: start=0, step=1, limit=1
              $region109: #{attention_forward.4} parent=107 // loop_pre_header
                _
              $region110: #{attention_forward.4} parent=107 // loop_header
                %s283 = sphi 0, %s287
                %p284 = scmp.ge.s32.totalorder %s283, 1
                %s288 = sphi %s273, %s273
                %s289 = sphi %s266, %s266
              $region111: #{attention_forward.4} parent=107 // loop_header_branch
                %286 = sbr.rel (%p284) target = $region115
              $region112: #{attention_forward.4} parent=107 // loop_body
                %v290 = vld [vmem:[%s288] sm:%s281]
                %291 = vst [vmem:[%s289] sm:%s281] %v290
                %v292 = vld [vmem:[%s288 + $0x18] sm:%s281]
                %293 = vst [vmem:[%s289 + $0x8] sm:%s281] %v292
              $region113: #{attention_forward.4} parent=107 // loop_footer
                %s287 = sadd.s32 1, %s283
              $region114: #{attention_forward.4} parent=107 // loop_footer_branch
                %282 = sbr.rel target = $region110
              $region115: #{attention_forward.4} parent=107 // loop_exit
                _
            $region108: #{attention_forward.4} parent=99 // pred_fallthru
              _
          $region100: #{attention_forward.4} parent=95 // pred_fallthru
            _
          %310 = vnop
        $region96: #{attention_forward.4} parent=15 // pred_fallthru
          _
      $region16: #{attention_forward.4} parent=5 // pred_fallthru
        _
      %p311 = scmp.le.s32.totalorder 1, %s9
      %p312 = scmp.lt.s32.totalorder %s9, 3
      %p313 = pnand %p311, %p312
      %p314 = pneg %p313
      // Predicated region
      $region131: #{attention_forward.4} parent=5 // pred_check
        _
      $region132: #{attention_forward.4} parent=5 // pred_check_branch
        %316 = sbr.rel (%p313) target = $region134
      $region133: #{attention_forward.4} parent=5 // pred_region
        %s317 = ssub.s32 %s9, 1
        %s318 = sand.u32 %s43, 1
        %s319 = sand.u32 %s43, 1
        %s320 = smul.addr %s319, 16
        %s321 = scalar_lea.vmem [#allocation6], %s320
        // Predicated region
        $region135: #{attention_forward.4} parent=133 // pred_check
          %p322 = pneg %p56
        $region136: #{attention_forward.4} parent=133 // pred_check_branch
          %324 = sbr.rel (%p322) target = $region138
        $region137: #{attention_forward.4} parent=133 // pred_region
          _
        $region138: #{attention_forward.4} parent=133 // pred_fallthru
          _
        %s325 = sand.u32 %s71, 1
        %s326 = sand.u32 %s71, 1
        %s327 = smul.addr %s326, 16
        %s328 = scalar_lea.vmem [#allocation7], %s327
        // Predicated region
        $region139: #{attention_forward.4} parent=133 // pred_check
          %p329 = pneg %p84
        $region140: #{attention_forward.4} parent=133 // pred_check_branch
          %331 = sbr.rel (%p329) target = $region142
        $region141: #{attention_forward.4} parent=133 // pred_region
          _
        $region142: #{attention_forward.4} parent=133 // pred_fallthru
          _
        %s332 = sand.u32 %s99, 1
        %s333 = sand.u32 %s99, 1
        %s334 = smul.addr %s333, 16
        %s335 = scalar_lea.vmem [#allocation8], %s334
        // Predicated region
        $region143: #{attention_forward.4} parent=133 // pred_check
          %p336 = pneg %p112
        $region144: #{attention_forward.4} parent=133 // pred_check_branch
          %338 = sbr.rel (%p336) target = $region146
        $region145: #{attention_forward.4} parent=133 // pred_region
          _
        $region146: #{attention_forward.4} parent=133 // pred_fallthru
          _
        %s339 = sand.u32 %s43, 1
        %s340 = sand.u32 %s43, 1
        %s341 = smul.addr %s340, 16
        %s342 = scalar_lea.vmem [#allocation6], %s341
        %p343 = pneg %p56
        %p344 = pneg %p53
        %s345 = sand.u32 %s71, 1
        %s346 = sand.u32 %s71, 1
        %s347 = smul.addr %s346, 16
        %s348 = scalar_lea.vmem [#allocation7], %s347
        %p349 = pneg %p84
        %p350 = pneg %p81
        %s351 = sand.u32 %s99, 1
        %s352 = sand.u32 %s99, 1
        %s353 = smul.addr %s352, 16
        %s354 = scalar_lea.vmem [#allocation8], %s353
        %p355 = pneg %p112
        %p356 = pneg %p109
        %p357 = pneg %p140
        %p358 = pneg %p137
        %s359 = smul.u32 2, %s20
        %p360 = scmp.lt.s32.totalorder %s19, 1
        %s361 = scalar_select %p360, %s19, 1
        %p362 = scmp.lt.s32.totalorder %s359, 1
        %s363 = scalar_select %p362, %s359, 1
        %s364 = smul.addr %s361, 2
        %s365 = sadd.s32 %s363, %s364
        %s366 = smul.addr %s365, 8
        %s367 = scalar_lea.vmem %s3, %s366
        %s368 = smul.u32 2, %s20
        %s369 = smul.u32 2, %s21
        %s370 = smul.u32 2, %s21
        %s371 = smul.u32 2, %s20
        %p372 = scmp.lt.s32.totalorder %s19, 1
        %s373 = scalar_select %p372, %s19, 1
        %p374 = scmp.lt.s32.totalorder %s371, 1
        %s375 = scalar_select %p374, %s371, 1
        %s376 = smul.addr %s373, 2
        %s377 = sadd.s32 %s375, %s376
        %s378 = smul.addr %s377, 8
        %s379 = scalar_lea.vmem %s3, %s378
        %s380 = smul.u32 2, %s20
        %p381 = scmp.eq.s32.totalorder %s21, 0
        // Predicated region
        $region147: #{attention_forward.4} parent=133 // pred_check
          %p382 = pneg %p381
        $region148: #{attention_forward.4} parent=133 // pred_check_branch
          %384 = sbr.rel (%p382) target = $region150
        $region149: #{attention_forward.4} parent=133 // pred_region
          %vm385 = vcmask 130048
          %386 = vst.msk [vmem:[#allocation3] sm:$0xff] %vm385, -inf
          %387 = vst.msk [vmem:[#allocation4] sm:$0xff] %vm385, 0.0
          %388 = vst.msk [vmem:[#allocation5] sm:$0xff] %vm385, 0.0
          %389 = vst.msk [vmem:[#allocation5 + $0x8] sm:$0xff] %vm385, 0.0
          %390 = vst.msk [vmem:[#allocation5 + $0x10] sm:$0xff] %vm385, 0.0
          %391 = vst.msk [vmem:[#allocation5 + $0x18] sm:$0xff] %vm385, 0.0
          %392 = vst.msk [vmem:[#allocation5 + $0x20] sm:$0xff] %vm385, 0.0
          %393 = vst.msk [vmem:[#allocation5 + $0x28] sm:$0xff] %vm385, 0.0
          %394 = vst.msk [vmem:[#allocation5 + $0x30] sm:$0xff] %vm385, 0.0
          %395 = vst.msk [vmem:[#allocation5 + $0x38] sm:$0xff] %vm385, 0.0
          %396 = vst.msk [vmem:[#allocation5 + $0x40] sm:$0xff] %vm385, 0.0
          %397 = vst.msk [vmem:[#allocation5 + $0x48] sm:$0xff] %vm385, 0.0
          %398 = vst.msk [vmem:[#allocation5 + $0x50] sm:$0xff] %vm385, 0.0
          %399 = vst.msk [vmem:[#allocation5 + $0x58] sm:$0xff] %vm385, 0.0
          %400 = vst.msk [vmem:[#allocation5 + $0x60] sm:$0xff] %vm385, 0.0
          %401 = vst.msk [vmem:[#allocation5 + $0x68] sm:$0xff] %vm385, 0.0
          %402 = vst.msk [vmem:[#allocation5 + $0x70] sm:$0xff] %vm385, 0.0
          %403 = vst.msk [vmem:[#allocation5 + $0x78] sm:$0xff] %vm385, 0.0
          %v404 = vld [vmem:[%s321] sm:$0xff]
          %v405 = vld [vmem:[%s321 + $0x8] sm:$0xff]
          %408 = vrot.lane.b32.xlu0 %v404, 112
          %v409 = vpop.permute.xlu0 %408
          %410 = vrot.lane.b32.xlu0 %v405, 112
          %v411 = vpop.permute.xlu0 %410
          %414 = vrot.lane.b32.xlu0 %v404, 96
          %v415 = vpop.permute.xlu0 %414
          %416 = vrot.lane.b32.xlu0 %v405, 96
          %v417 = vpop.permute.xlu0 %416
          %420 = vrot.lane.b32.xlu0 %v404, 80
          %v421 = vpop.permute.xlu0 %420
          %422 = vrot.lane.b32.xlu0 %v405, 80
          %v423 = vpop.permute.xlu0 %422
          %426 = vrot.lane.b32.xlu0 %v404, 64
          %v427 = vpop.permute.xlu0 %426
          %428 = vrot.lane.b32.xlu0 %v405, 64
          %v429 = vpop.permute.xlu0 %428
          %432 = vrot.lane.b32.xlu0 %v404, 48
          %v433 = vpop.permute.xlu0 %432
          %434 = vrot.lane.b32.xlu0 %v405, 48
          %v435 = vpop.permute.xlu0 %434
          %438 = vrot.lane.b32.xlu0 %v404, 32
          %v439 = vpop.permute.xlu0 %438
          %440 = vrot.lane.b32.xlu0 %v405, 32
          %v441 = vpop.permute.xlu0 %440
          %444 = vrot.lane.b32.xlu0 %v404, 16
          %v445 = vpop.permute.xlu0 %444
          %446 = vrot.lane.b32.xlu0 %v405, 16
          %v447 = vpop.permute.xlu0 %446
          %v450 = vrot.slane %v415, 4
          %vm451 = vcmask 1047556
          %v452 = vsel %vm451, %v450, %v404
          %v453 = vrot.slane %v404, 4
          %v454 = vsel %vm451, %v415, %v453
          %v456 = vunpack.c.l.s4 1983009808
          %v457 = vunpack.c.0.s8 %v456
          %v458 = vperm.slane %v452, %v457
          %v460 = vunpack.c.l.s4 1983009808
          %v461 = vunpack.c.0.s8 %v460
          %v462 = vperm.slane %v454, %v461
          %v463 = vrot.slane %v421, 4
          %v464 = vsel %vm451, %v463, %v409
          %v465 = vrot.slane %v409, 4
          %v466 = vsel %vm451, %v421, %v465
          %v468 = vunpack.c.l.s4 1983009808
          %v469 = vunpack.c.0.s8 %v468
          %v470 = vperm.slane %v464, %v469
          %v472 = vunpack.c.l.s4 1983009808
          %v473 = vunpack.c.0.s8 %v472
          %v474 = vperm.slane %v466, %v473
          %v475 = vrot.slane %v439, 4
          %v476 = vsel %vm451, %v475, %v427
          %v477 = vrot.slane %v427, 4
          %v478 = vsel %vm451, %v439, %v477
          %v480 = vunpack.c.l.s4 1983009808
          %v481 = vunpack.c.0.s8 %v480
          %v482 = vperm.slane %v476, %v481
          %v484 = vunpack.c.l.s4 1983009808
          %v485 = vunpack.c.0.s8 %v484
          %v486 = vperm.slane %v478, %v485
          %v487 = vrot.slane %v445, 4
          %v488 = vsel %vm451, %v487, %v433
          %v489 = vrot.slane %v433, 4
          %v490 = vsel %vm451, %v445, %v489
          %v492 = vunpack.c.l.s4 1983009808
          %v493 = vunpack.c.0.s8 %v492
          %v494 = vperm.slane %v488, %v493
          %v496 = vunpack.c.l.s4 1983009808
          %v497 = vunpack.c.0.s8 %v496
          %v498 = vperm.slane %v490, %v497
          %v499 = vrot.slane %v470, 4
          %v500 = vsel %vm451, %v499, %v458
          %v501 = vrot.slane %v458, 4
          %v502 = vsel %vm451, %v470, %v501
          %v504 = vunpack.c.l.s4 1934713408
          %v505 = vunpack.c.0.s8 %v504
          %v506 = vperm.slane %v500, %v505
          %v508 = vunpack.c.l.s4 1934713408
          %v509 = vunpack.c.0.s8 %v508
          %v510 = vperm.slane %v502, %v509
          %v511 = vrot.slane %v474, 4
          %v512 = vsel %vm451, %v511, %v462
          %v513 = vrot.slane %v462, 4
          %v514 = vsel %vm451, %v474, %v513
          %v516 = vunpack.c.l.s4 1934713408
          %v517 = vunpack.c.0.s8 %v516
          %v518 = vperm.slane %v512, %v517
          %v520 = vunpack.c.l.s4 1934713408
          %v521 = vunpack.c.0.s8 %v520
          %v522 = vperm.slane %v514, %v521
          %v523 = vrot.slane %v494, 4
          %v524 = vsel %vm451, %v523, %v482
          %v525 = vrot.slane %v482, 4
          %v526 = vsel %vm451, %v494, %v525
          %v528 = vunpack.c.l.s4 1934713408
          %v529 = vunpack.c.0.s8 %v528
          %v530 = vperm.slane %v524, %v529
          %v532 = vunpack.c.l.s4 1934713408
          %v533 = vunpack.c.0.s8 %v532
          %v534 = vperm.slane %v526, %v533
          %v535 = vrot.slane %v498, 4
          %v536 = vsel %vm451, %v535, %v486
          %v537 = vrot.slane %v486, 4
          %v538 = vsel %vm451, %v498, %v537
          %v540 = vunpack.c.l.s4 1934713408
          %v541 = vunpack.c.0.s8 %v540
          %v542 = vperm.slane %v536, %v541
          %v544 = vunpack.c.l.s4 1934713408
          %v545 = vunpack.c.0.s8 %v544
          %v546 = vperm.slane %v538, %v545
          %v547 = vrot.slane %v530, 4
          %v548 = vsel %vm451, %v547, %v506
          %v549 = vrot.slane %v506, 4
          %v550 = vsel %vm451, %v530, %v549
          %v551 = vrot.slane %v534, 4
          %v552 = vsel %vm451, %v551, %v510
          %v553 = vrot.slane %v510, 4
          %v554 = vsel %vm451, %v534, %v553
          %v555 = vrot.slane %v542, 4
          %v556 = vsel %vm451, %v555, %v518
          %v557 = vrot.slane %v518, 4
          %v558 = vsel %vm451, %v542, %v557
          %v559 = vrot.slane %v546, 4
          %v560 = vsel %vm451, %v559, %v522
          %v561 = vrot.slane %v522, 4
          %v562 = vsel %vm451, %v546, %v561
          %v563 = vrot.slane %v417, 4
          %v564 = vsel %vm451, %v563, %v405
          %v565 = vrot.slane %v405, 4
          %v566 = vsel %vm451, %v417, %v565
          %v568 = vunpack.c.l.s4 1983009808
          %v569 = vunpack.c.0.s8 %v568
          %v570 = vperm.slane %v564, %v569
          %v572 = vunpack.c.l.s4 1983009808
          %v573 = vunpack.c.0.s8 %v572
          %v574 = vperm.slane %v566, %v573
          %v575 = vrot.slane %v423, 4
          %v576 = vsel %vm451, %v575, %v411
          %v577 = vrot.slane %v411, 4
          %v578 = vsel %vm451, %v423, %v577
          %v580 = vunpack.c.l.s4 1983009808
          %v581 = vunpack.c.0.s8 %v580
          %v582 = vperm.slane %v576, %v581
          %v584 = vunpack.c.l.s4 1983009808
          %v585 = vunpack.c.0.s8 %v584
          %v586 = vperm.slane %v578, %v585
          %v587 = vrot.slane %v441, 4
          %v588 = vsel %vm451, %v587, %v429
          %v589 = vrot.slane %v429, 4
          %v590 = vsel %vm451, %v441, %v589
          %v592 = vunpack.c.l.s4 1983009808
          %v593 = vunpack.c.0.s8 %v592
          %v594 = vperm.slane %v588, %v593
          %v596 = vunpack.c.l.s4 1983009808
          %v597 = vunpack.c.0.s8 %v596
          %v598 = vperm.slane %v590, %v597
          %v599 = vrot.slane %v447, 4
          %v600 = vsel %vm451, %v599, %v435
          %v601 = vrot.slane %v435, 4
          %v602 = vsel %vm451, %v447, %v601
          %v604 = vunpack.c.l.s4 1983009808
          %v605 = vunpack.c.0.s8 %v604
          %v606 = vperm.slane %v600, %v605
          %v608 = vunpack.c.l.s4 1983009808
          %v609 = vunpack.c.0.s8 %v608
          %v610 = vperm.slane %v602, %v609
          %v611 = vrot.slane %v582, 4
          %v612 = vsel %vm451, %v611, %v570
          %v613 = vrot.slane %v570, 4
          %v614 = vsel %vm451, %v582, %v613
          %v616 = vunpack.c.l.s4 1934713408
          %v617 = vunpack.c.0.s8 %v616
          %v618 = vperm.slane %v612, %v617
          %v620 = vunpack.c.l.s4 1934713408
          %v621 = vunpack.c.0.s8 %v620
          %v622 = vperm.slane %v614, %v621
          %v623 = vrot.slane %v586, 4
          %v624 = vsel %vm451, %v623, %v574
          %v625 = vrot.slane %v574, 4
          %v626 = vsel %vm451, %v586, %v625
          %v628 = vunpack.c.l.s4 1934713408
          %v629 = vunpack.c.0.s8 %v628
          %v630 = vperm.slane %v624, %v629
          %v632 = vunpack.c.l.s4 1934713408
          %v633 = vunpack.c.0.s8 %v632
          %v634 = vperm.slane %v626, %v633
          %v635 = vrot.slane %v606, 4
          %v636 = vsel %vm451, %v635, %v594
          %v637 = vrot.slane %v594, 4
          %v638 = vsel %vm451, %v606, %v637
          %v640 = vunpack.c.l.s4 1934713408
          %v641 = vunpack.c.0.s8 %v640
          %v642 = vperm.slane %v636, %v641
          %v644 = vunpack.c.l.s4 1934713408
          %v645 = vunpack.c.0.s8 %v644
          %v646 = vperm.slane %v638, %v645
          %v647 = vrot.slane %v610, 4
          %v648 = vsel %vm451, %v647, %v598
          %v649 = vrot.slane %v598, 4
          %v650 = vsel %vm451, %v610, %v649
          %v652 = vunpack.c.l.s4 1934713408
          %v653 = vunpack.c.0.s8 %v652
          %v654 = vperm.slane %v648, %v653
          %v656 = vunpack.c.l.s4 1934713408
          %v657 = vunpack.c.0.s8 %v656
          %v658 = vperm.slane %v650, %v657
          %v659 = vrot.slane %v642, 4
          %v660 = vsel %vm451, %v659, %v618
          %v661 = vrot.slane %v618, 4
          %v662 = vsel %vm451, %v642, %v661
          %v663 = vrot.slane %v646, 4
          %v664 = vsel %vm451, %v663, %v622
          %v665 = vrot.slane %v622, 4
          %v666 = vsel %vm451, %v646, %v665
          %v667 = vrot.slane %v654, 4
          %v668 = vsel %vm451, %v667, %v630
          %v669 = vrot.slane %v630, 4
          %v670 = vsel %vm451, %v654, %v669
          %v671 = vrot.slane %v658, 4
          %v672 = vsel %vm451, %v671, %v634
          %v673 = vrot.slane %v634, 4
          %v674 = vsel %vm451, %v658, %v673
          %v675 = vrot.slane %v552, 4
          %v676 = vsel %vm451, %v675, %v548
          %v677 = vrot.slane %v548, 4
          %v678 = vsel %vm451, %v552, %v677
          %v680 = vunpack.c.l.s4 1983009808
          %v681 = vunpack.c.0.s8 %v680
          %v682 = vperm.slane %v676, %v681
          %v684 = vunpack.c.l.s4 1983009808
          %v685 = vunpack.c.0.s8 %v684
          %v686 = vperm.slane %v678, %v685
          %v687 = vrot.slane %v554, 4
          %v688 = vsel %vm451, %v687, %v550
          %v689 = vrot.slane %v550, 4
          %v690 = vsel %vm451, %v554, %v689
          %v692 = vunpack.c.l.s4 1983009808
          %v693 = vunpack.c.0.s8 %v692
          %v694 = vperm.slane %v688, %v693
          %v696 = vunpack.c.l.s4 1983009808
          %v697 = vunpack.c.0.s8 %v696
          %v698 = vperm.slane %v690, %v697
          %v699 = vrot.slane %v560, 4
          %v700 = vsel %vm451, %v699, %v556
          %v701 = vrot.slane %v556, 4
          %v702 = vsel %vm451, %v560, %v701
          %v704 = vunpack.c.l.s4 1983009808
          %v705 = vunpack.c.0.s8 %v704
          %v706 = vperm.slane %v700, %v705
          %v708 = vunpack.c.l.s4 1983009808
          %v709 = vunpack.c.0.s8 %v708
          %v710 = vperm.slane %v702, %v709
          %v711 = vrot.slane %v562, 4
          %v712 = vsel %vm451, %v711, %v558
          %v713 = vrot.slane %v558, 4
          %v714 = vsel %vm451, %v562, %v713
          %v716 = vunpack.c.l.s4 1983009808
          %v717 = vunpack.c.0.s8 %v716
          %v718 = vperm.slane %v712, %v717
          %v720 = vunpack.c.l.s4 1983009808
          %v721 = vunpack.c.0.s8 %v720
          %v722 = vperm.slane %v714, %v721
          %v723 = vrot.slane %v694, 4
          %v724 = vsel %vm451, %v723, %v682
          %v725 = vrot.slane %v682, 4
          %v726 = vsel %vm451, %v694, %v725
          %v728 = vunpack.c.l.s4 1934713408
          %v729 = vunpack.c.0.s8 %v728
          %v730 = vperm.slane %v724, %v729
          %v732 = vunpack.c.l.s4 1934713408
          %v733 = vunpack.c.0.s8 %v732
          %v734 = vperm.slane %v726, %v733
          %v735 = vrot.slane %v698, 4
          %v736 = vsel %vm451, %v735, %v686
          %v737 = vrot.slane %v686, 4
          %v738 = vsel %vm451, %v698, %v737
          %v740 = vunpack.c.l.s4 1934713408
          %v741 = vunpack.c.0.s8 %v740
          %v742 = vperm.slane %v736, %v741
          %v744 = vunpack.c.l.s4 1934713408
          %v745 = vunpack.c.0.s8 %v744
          %v746 = vperm.slane %v738, %v745
          %v747 = vrot.slane %v718, 4
          %v748 = vsel %vm451, %v747, %v706
          %v749 = vrot.slane %v706, 4
          %v750 = vsel %vm451, %v718, %v749
          %v752 = vunpack.c.l.s4 1934713408
          %v753 = vunpack.c.0.s8 %v752
          %v754 = vperm.slane %v748, %v753
          %v756 = vunpack.c.l.s4 1934713408
          %v757 = vunpack.c.0.s8 %v756
          %v758 = vperm.slane %v750, %v757
          %v759 = vrot.slane %v722, 4
          %v760 = vsel %vm451, %v759, %v710
          %v761 = vrot.slane %v710, 4
          %v762 = vsel %vm451, %v722, %v761
          %v764 = vunpack.c.l.s4 1934713408
          %v765 = vunpack.c.0.s8 %v764
          %v766 = vperm.slane %v760, %v765
          %v768 = vunpack.c.l.s4 1934713408
          %v769 = vunpack.c.0.s8 %v768
          %v770 = vperm.slane %v762, %v769
          %v771 = vrot.slane %v754, 4
          %v772 = vsel %vm451, %v771, %v730
          %v773 = vrot.slane %v730, 4
          %v774 = vsel %vm451, %v754, %v773
          %v775 = vrot.slane %v758, 4
          %v776 = vsel %vm451, %v775, %v734
          %v777 = vrot.slane %v734, 4
          %v778 = vsel %vm451, %v758, %v777
          %v779 = vrot.slane %v766, 4
          %v780 = vsel %vm451, %v779, %v742
          %v781 = vrot.slane %v742, 4
          %v782 = vsel %vm451, %v766, %v781
          %v783 = vrot.slane %v770, 4
          %v784 = vsel %vm451, %v783, %v746
          %v785 = vrot.slane %v746, 4
          %v786 = vsel %vm451, %v770, %v785
          %v787 = vrot.slane %v664, 4
          %v788 = vsel %vm451, %v787, %v660
          %v789 = vrot.slane %v660, 4
          %v790 = vsel %vm451, %v664, %v789
          %v792 = vunpack.c.l.s4 1983009808
          %v793 = vunpack.c.0.s8 %v792
          %v794 = vperm.slane %v788, %v793
          %v796 = vunpack.c.l.s4 1983009808
          %v797 = vunpack.c.0.s8 %v796
          %v798 = vperm.slane %v790, %v797
          %v799 = vrot.slane %v666, 4
          %v800 = vsel %vm451, %v799, %v662
          %v801 = vrot.slane %v662, 4
          %v802 = vsel %vm451, %v666, %v801
          %v804 = vunpack.c.l.s4 1983009808
          %v805 = vunpack.c.0.s8 %v804
          %v806 = vperm.slane %v800, %v805
          %v808 = vunpack.c.l.s4 1983009808
          %v809 = vunpack.c.0.s8 %v808
          %v810 = vperm.slane %v802, %v809
          %v811 = vrot.slane %v672, 4
          %v812 = vsel %vm451, %v811, %v668
          %v813 = vrot.slane %v668, 4
          %v814 = vsel %vm451, %v672, %v813
          %v816 = vunpack.c.l.s4 1983009808
          %v817 = vunpack.c.0.s8 %v816
          %v818 = vperm.slane %v812, %v817
          %v820 = vunpack.c.l.s4 1983009808
          %v821 = vunpack.c.0.s8 %v820
          %v822 = vperm.slane %v814, %v821
          %v823 = vrot.slane %v674, 4
          %v824 = vsel %vm451, %v823, %v670
          %v825 = vrot.slane %v670, 4
          %v826 = vsel %vm451, %v674, %v825
          %v828 = vunpack.c.l.s4 1983009808
          %v829 = vunpack.c.0.s8 %v828
          %v830 = vperm.slane %v824, %v829
          %v832 = vunpack.c.l.s4 1983009808
          %v833 = vunpack.c.0.s8 %v832
          %v834 = vperm.slane %v826, %v833
          %v835 = vrot.slane %v806, 4
          %v836 = vsel %vm451, %v835, %v794
          %v837 = vrot.slane %v794, 4
          %v838 = vsel %vm451, %v806, %v837
          %v840 = vunpack.c.l.s4 1934713408
          %v841 = vunpack.c.0.s8 %v840
          %v842 = vperm.slane %v836, %v841
          %v844 = vunpack.c.l.s4 1934713408
          %v845 = vunpack.c.0.s8 %v844
          %v846 = vperm.slane %v838, %v845
          %v847 = vrot.slane %v810, 4
          %v848 = vsel %vm451, %v847, %v798
          %v849 = vrot.slane %v798, 4
          %v850 = vsel %vm451, %v810, %v849
          %v852 = vunpack.c.l.s4 1934713408
          %v853 = vunpack.c.0.s8 %v852
          %v854 = vperm.slane %v848, %v853
          %v856 = vunpack.c.l.s4 1934713408
          %v857 = vunpack.c.0.s8 %v856
          %v858 = vperm.slane %v850, %v857
          %v859 = vrot.slane %v830, 4
          %v860 = vsel %vm451, %v859, %v818
          %v861 = vrot.slane %v818, 4
          %v862 = vsel %vm451, %v830, %v861
          %v864 = vunpack.c.l.s4 1934713408
          %v865 = vunpack.c.0.s8 %v864
          %v866 = vperm.slane %v860, %v865
          %v868 = vunpack.c.l.s4 1934713408
          %v869 = vunpack.c.0.s8 %v868
          %v870 = vperm.slane %v862, %v869
          %v871 = vrot.slane %v834, 4
          %v872 = vsel %vm451, %v871, %v822
          %v873 = vrot.slane %v822, 4
          %v874 = vsel %vm451, %v834, %v873
          %v876 = vunpack.c.l.s4 1934713408
          %v877 = vunpack.c.0.s8 %v876
          %v878 = vperm.slane %v872, %v877
          %v880 = vunpack.c.l.s4 1934713408
          %v881 = vunpack.c.0.s8 %v880
          %v882 = vperm.slane %v874, %v881
          %v883 = vrot.slane %v866, 4
          %v884 = vsel %vm451, %v883, %v842
          %v885 = vrot.slane %v842, 4
          %v886 = vsel %vm451, %v866, %v885
          %v887 = vrot.slane %v870, 4
          %v888 = vsel %vm451, %v887, %v846
          %v889 = vrot.slane %v846, 4
          %v890 = vsel %vm451, %v870, %v889
          %v891 = vrot.slane %v878, 4
          %v892 = vsel %vm451, %v891, %v854
          %v893 = vrot.slane %v854, 4
          %v894 = vsel %vm451, %v878, %v893
          %v895 = vrot.slane %v882, 4
          %v896 = vsel %vm451, %v895, %v858
          %v897 = vrot.slane %v858, 4
          %v898 = vsel %vm451, %v882, %v897
          %899 = vst.msk [vmem:[#allocation2] sm:$0xff] %vm385, %v772
          %900 = vst.msk [vmem:[#allocation2 + $0x8] sm:$0xff] %vm385, %v884
          %901 = vst.msk [vmem:[#allocation2 + $0x10] sm:$0xff] %vm385, %v774
          %902 = vst.msk [vmem:[#allocation2 + $0x18] sm:$0xff] %vm385, %v886
          %903 = vst.msk [vmem:[#allocation2 + $0x20] sm:$0xff] %vm385, %v776
          %904 = vst.msk [vmem:[#allocation2 + $0x28] sm:$0xff] %vm385, %v888
          %905 = vst.msk [vmem:[#allocation2 + $0x30] sm:$0xff] %vm385, %v778
          %906 = vst.msk [vmem:[#allocation2 + $0x38] sm:$0xff] %vm385, %v890
          %907 = vst.msk [vmem:[#allocation2 + $0x40] sm:$0xff] %vm385, %v780
          %908 = vst.msk [vmem:[#allocation2 + $0x48] sm:$0xff] %vm385, %v892
          %909 = vst.msk [vmem:[#allocation2 + $0x50] sm:$0xff] %vm385, %v782
          %910 = vst.msk [vmem:[#allocation2 + $0x58] sm:$0xff] %vm385, %v894
          %911 = vst.msk [vmem:[#allocation2 + $0x60] sm:$0xff] %vm385, %v784
          %912 = vst.msk [vmem:[#allocation2 + $0x68] sm:$0xff] %vm385, %v896
          %913 = vst.msk [vmem:[#allocation2 + $0x70] sm:$0xff] %vm385, %v786
          %914 = vst.msk [vmem:[#allocation2 + $0x78] sm:$0xff] %vm385, %v898
        $region150: #{attention_forward.4} parent=133 // pred_fallthru
          _
        %v915 = vld [vmem:[%s328] sm:$0xff]
        %v916 = vld [vmem:[%s328 + $0x8] sm:$0xff]
        %v917 = vld [vmem:[%s335] sm:$0xff]
        %v918 = vld [vmem:[%s335 + $0x8] sm:$0xff]
        %921 = vrot.lane.b32.xlu0 %v915, 112
        %v922 = vpop.permute.xlu0 %921
        %923 = vrot.lane.b32.xlu0 %v916, 112
        %v924 = vpop.permute.xlu0 %923
        %927 = vrot.lane.b32.xlu0 %v915, 96
        %v928 = vpop.permute.xlu0 %927
        %929 = vrot.lane.b32.xlu0 %v916, 96
        %v930 = vpop.permute.xlu0 %929
        %933 = vrot.lane.b32.xlu0 %v915, 80
        %v934 = vpop.permute.xlu0 %933
        %935 = vrot.lane.b32.xlu0 %v916, 80
        %v936 = vpop.permute.xlu0 %935
        %939 = vrot.lane.b32.xlu0 %v915, 64
        %v940 = vpop.permute.xlu0 %939
        %941 = vrot.lane.b32.xlu0 %v916, 64
        %v942 = vpop.permute.xlu0 %941
        %945 = vrot.lane.b32.xlu0 %v915, 48
        %v946 = vpop.permute.xlu0 %945
        %947 = vrot.lane.b32.xlu0 %v916, 48
        %v948 = vpop.permute.xlu0 %947
        %951 = vrot.lane.b32.xlu0 %v915, 32
        %v952 = vpop.permute.xlu0 %951
        %953 = vrot.lane.b32.xlu0 %v916, 32
        %v954 = vpop.permute.xlu0 %953
        %957 = vrot.lane.b32.xlu0 %v915, 16
        %v958 = vpop.permute.xlu0 %957
        %959 = vrot.lane.b32.xlu0 %v916, 16
        %v960 = vpop.permute.xlu0 %959
        %v963 = vrot.slane %v928, 4
        %vm964 = vcmask 1047556
        %v965 = vsel %vm964, %v963, %v915
        %v966 = vrot.slane %v915, 4
        %v967 = vsel %vm964, %v928, %v966
        %v969 = vunpack.c.l.s4 1983009808
        %v970 = vunpack.c.0.s8 %v969
        %v971 = vperm.slane %v965, %v970
        %v973 = vunpack.c.l.s4 1983009808
        %v974 = vunpack.c.0.s8 %v973
        %v975 = vperm.slane %v967, %v974
        %v976 = vrot.slane %v934, 4
        %v977 = vsel %vm964, %v976, %v922
        %v978 = vrot.slane %v922, 4
        %v979 = vsel %vm964, %v934, %v978
        %v981 = vunpack.c.l.s4 1983009808
        %v982 = vunpack.c.0.s8 %v981
        %v983 = vperm.slane %v977, %v982
        %v985 = vunpack.c.l.s4 1983009808
        %v986 = vunpack.c.0.s8 %v985
        %v987 = vperm.slane %v979, %v986
        %v988 = vrot.slane %v952, 4
        %v989 = vsel %vm964, %v988, %v940
        %v990 = vrot.slane %v940, 4
        %v991 = vsel %vm964, %v952, %v990
        %v993 = vunpack.c.l.s4 1983009808
        %v994 = vunpack.c.0.s8 %v993
        %v995 = vperm.slane %v989, %v994
        %v997 = vunpack.c.l.s4 1983009808
        %v998 = vunpack.c.0.s8 %v997
        %v999 = vperm.slane %v991, %v998
        %v1000 = vrot.slane %v958, 4
        %v1001 = vsel %vm964, %v1000, %v946
        %v1002 = vrot.slane %v946, 4
        %v1003 = vsel %vm964, %v958, %v1002
        %v1005 = vunpack.c.l.s4 1983009808
        %v1006 = vunpack.c.0.s8 %v1005
        %v1007 = vperm.slane %v1001, %v1006
        %v1009 = vunpack.c.l.s4 1983009808
        %v1010 = vunpack.c.0.s8 %v1009
        %v1011 = vperm.slane %v1003, %v1010
        %v1012 = vrot.slane %v983, 4
        %v1013 = vsel %vm964, %v1012, %v971
        %v1014 = vrot.slane %v971, 4
        %v1015 = vsel %vm964, %v983, %v1014
        %v1017 = vunpack.c.l.s4 1934713408
        %v1018 = vunpack.c.0.s8 %v1017
        %v1019 = vperm.slane %v1013, %v1018
        %v1021 = vunpack.c.l.s4 1934713408
        %v1022 = vunpack.c.0.s8 %v1021
        %v1023 = vperm.slane %v1015, %v1022
        %v1024 = vrot.slane %v987, 4
        %v1025 = vsel %vm964, %v1024, %v975
        %v1026 = vrot.slane %v975, 4
        %v1027 = vsel %vm964, %v987, %v1026
        %v1029 = vunpack.c.l.s4 1934713408
        %v1030 = vunpack.c.0.s8 %v1029
        %v1031 = vperm.slane %v1025, %v1030
        %v1033 = vunpack.c.l.s4 1934713408
        %v1034 = vunpack.c.0.s8 %v1033
        %v1035 = vperm.slane %v1027, %v1034
        %v1036 = vrot.slane %v1007, 4
        %v1037 = vsel %vm964, %v1036, %v995
        %v1038 = vrot.slane %v995, 4
        %v1039 = vsel %vm964, %v1007, %v1038
        %v1041 = vunpack.c.l.s4 1934713408
        %v1042 = vunpack.c.0.s8 %v1041
        %v1043 = vperm.slane %v1037, %v1042
        %v1045 = vunpack.c.l.s4 1934713408
        %v1046 = vunpack.c.0.s8 %v1045
        %v1047 = vperm.slane %v1039, %v1046
        %v1048 = vrot.slane %v1011, 4
        %v1049 = vsel %vm964, %v1048, %v999
        %v1050 = vrot.slane %v999, 4
        %v1051 = vsel %vm964, %v1011, %v1050
        %v1053 = vunpack.c.l.s4 1934713408
        %v1054 = vunpack.c.0.s8 %v1053
        %v1055 = vperm.slane %v1049, %v1054
        %v1057 = vunpack.c.l.s4 1934713408
        %v1058 = vunpack.c.0.s8 %v1057
        %v1059 = vperm.slane %v1051, %v1058
        %v1060 = vrot.slane %v1043, 4
        %v1061 = vsel %vm964, %v1060, %v1019
        %v1062 = vrot.slane %v1019, 4
        %v1063 = vsel %vm964, %v1043, %v1062
        %v1064 = vrot.slane %v1047, 4
        %v1065 = vsel %vm964, %v1064, %v1023
        %v1066 = vrot.slane %v1023, 4
        %v1067 = vsel %vm964, %v1047, %v1066
        %v1068 = vrot.slane %v1055, 4
        %v1069 = vsel %vm964, %v1068, %v1031
        %v1070 = vrot.slane %v1031, 4
        %v1071 = vsel %vm964, %v1055, %v1070
        %v1072 = vrot.slane %v1059, 4
        %v1073 = vsel %vm964, %v1072, %v1035
        %v1074 = vrot.slane %v1035, 4
        %v1075 = vsel %vm964, %v1059, %v1074
        %v1076 = vrot.slane %v930, 4
        %v1077 = vsel %vm964, %v1076, %v916
        %v1078 = vrot.slane %v916, 4
        %v1079 = vsel %vm964, %v930, %v1078
        %v1081 = vunpack.c.l.s4 1983009808
        %v1082 = vunpack.c.0.s8 %v1081
        %v1083 = vperm.slane %v1077, %v1082
        %v1085 = vunpack.c.l.s4 1983009808
        %v1086 = vunpack.c.0.s8 %v1085
        %v1087 = vperm.slane %v1079, %v1086
        %v1088 = vrot.slane %v936, 4
        %v1089 = vsel %vm964, %v1088, %v924
        %v1090 = vrot.slane %v924, 4
        %v1091 = vsel %vm964, %v936, %v1090
        %v1093 = vunpack.c.l.s4 1983009808
        %v1094 = vunpack.c.0.s8 %v1093
        %v1095 = vperm.slane %v1089, %v1094
        %v1097 = vunpack.c.l.s4 1983009808
        %v1098 = vunpack.c.0.s8 %v1097
        %v1099 = vperm.slane %v1091, %v1098
        %v1100 = vrot.slane %v954, 4
        %v1101 = vsel %vm964, %v1100, %v942
        %v1102 = vrot.slane %v942, 4
        %v1103 = vsel %vm964, %v954, %v1102
        %v1105 = vunpack.c.l.s4 1983009808
        %v1106 = vunpack.c.0.s8 %v1105
        %v1107 = vperm.slane %v1101, %v1106
        %v1109 = vunpack.c.l.s4 1983009808
        %v1110 = vunpack.c.0.s8 %v1109
        %v1111 = vperm.slane %v1103, %v1110
        %v1112 = vrot.slane %v960, 4
        %v1113 = vsel %vm964, %v1112, %v948
        %v1114 = vrot.slane %v948, 4
        %v1115 = vsel %vm964, %v960, %v1114
        %v1117 = vunpack.c.l.s4 1983009808
        %v1118 = vunpack.c.0.s8 %v1117
        %v1119 = vperm.slane %v1113, %v1118
        %v1121 = vunpack.c.l.s4 1983009808
        %v1122 = vunpack.c.0.s8 %v1121
        %v1123 = vperm.slane %v1115, %v1122
        %v1124 = vrot.slane %v1095, 4
        %v1125 = vsel %vm964, %v1124, %v1083
        %v1126 = vrot.slane %v1083, 4
        %v1127 = vsel %vm964, %v1095, %v1126
        %v1129 = vunpack.c.l.s4 1934713408
        %v1130 = vunpack.c.0.s8 %v1129
        %v1131 = vperm.slane %v1125, %v1130
        %v1133 = vunpack.c.l.s4 1934713408
        %v1134 = vunpack.c.0.s8 %v1133
        %v1135 = vperm.slane %v1127, %v1134
        %v1136 = vrot.slane %v1099, 4
        %v1137 = vsel %vm964, %v1136, %v1087
        %v1138 = vrot.slane %v1087, 4
        %v1139 = vsel %vm964, %v1099, %v1138
        %v1141 = vunpack.c.l.s4 1934713408
        %v1142 = vunpack.c.0.s8 %v1141
        %v1143 = vperm.slane %v1137, %v1142
        %v1145 = vunpack.c.l.s4 1934713408
        %v1146 = vunpack.c.0.s8 %v1145
        %v1147 = vperm.slane %v1139, %v1146
        %v1148 = vrot.slane %v1119, 4
        %v1149 = vsel %vm964, %v1148, %v1107
        %v1150 = vrot.slane %v1107, 4
        %v1151 = vsel %vm964, %v1119, %v1150
        %v1153 = vunpack.c.l.s4 1934713408
        %v1154 = vunpack.c.0.s8 %v1153
        %v1155 = vperm.slane %v1149, %v1154
        %v1157 = vunpack.c.l.s4 1934713408
        %v1158 = vunpack.c.0.s8 %v1157
        %v1159 = vperm.slane %v1151, %v1158
        %v1160 = vrot.slane %v1123, 4
        %v1161 = vsel %vm964, %v1160, %v1111
        %v1162 = vrot.slane %v1111, 4
        %v1163 = vsel %vm964, %v1123, %v1162
        %v1165 = vunpack.c.l.s4 1934713408
        %v1166 = vunpack.c.0.s8 %v1165
        %v1167 = vperm.slane %v1161, %v1166
        %v1169 = vunpack.c.l.s4 1934713408
        %v1170 = vunpack.c.0.s8 %v1169
        %v1171 = vperm.slane %v1163, %v1170
        %v1172 = vrot.slane %v1155, 4
        %v1173 = vsel %vm964, %v1172, %v1131
        %v1174 = vrot.slane %v1131, 4
        %v1175 = vsel %vm964, %v1155, %v1174
        %v1176 = vrot.slane %v1159, 4
        %v1177 = vsel %vm964, %v1176, %v1135
        %v1178 = vrot.slane %v1135, 4
        %v1179 = vsel %vm964, %v1159, %v1178
        %v1180 = vrot.slane %v1167, 4
        %v1181 = vsel %vm964, %v1180, %v1143
        %v1182 = vrot.slane %v1143, 4
        %v1183 = vsel %vm964, %v1167, %v1182
        %v1184 = vrot.slane %v1171, 4
        %v1185 = vsel %vm964, %v1184, %v1147
        %v1186 = vrot.slane %v1147, 4
        %v1187 = vsel %vm964, %v1171, %v1186
        %1190 = vrot.lane.b32.xlu0 %v917, 112
        %v1191 = vpop.permute.xlu0 %1190
        %1192 = vrot.lane.b32.xlu0 %v918, 112
        %v1193 = vpop.permute.xlu0 %1192
        %1196 = vrot.lane.b32.xlu0 %v917, 96
        %v1197 = vpop.permute.xlu0 %1196
        %1198 = vrot.lane.b32.xlu0 %v918, 96
        %v1199 = vpop.permute.xlu0 %1198
        %1202 = vrot.lane.b32.xlu0 %v917, 80
        %v1203 = vpop.permute.xlu0 %1202
        %1204 = vrot.lane.b32.xlu0 %v918, 80
        %v1205 = vpop.permute.xlu0 %1204
        %1208 = vrot.lane.b32.xlu0 %v917, 64
        %v1209 = vpop.permute.xlu0 %1208
        %1210 = vrot.lane.b32.xlu0 %v918, 64
        %v1211 = vpop.permute.xlu0 %1210
        %1214 = vrot.lane.b32.xlu0 %v917, 48
        %v1215 = vpop.permute.xlu0 %1214
        %1216 = vrot.lane.b32.xlu0 %v918, 48
        %v1217 = vpop.permute.xlu0 %1216
        %1220 = vrot.lane.b32.xlu0 %v917, 32
        %v1221 = vpop.permute.xlu0 %1220
        %1222 = vrot.lane.b32.xlu0 %v918, 32
        %v1223 = vpop.permute.xlu0 %1222
        %1226 = vrot.lane.b32.xlu0 %v917, 16
        %v1227 = vpop.permute.xlu0 %1226
        %1228 = vrot.lane.b32.xlu0 %v918, 16
        %v1229 = vpop.permute.xlu0 %1228
        %v1232 = vrot.slane %v1197, 4
        %v1233 = vsel %vm964, %v1232, %v917
        %v1234 = vrot.slane %v917, 4
        %v1235 = vsel %vm964, %v1197, %v1234
        %v1237 = vunpack.c.l.s4 1983009808
        %v1238 = vunpack.c.0.s8 %v1237
        %v1239 = vperm.slane %v1233, %v1238
        %v1241 = vunpack.c.l.s4 1983009808
        %v1242 = vunpack.c.0.s8 %v1241
        %v1243 = vperm.slane %v1235, %v1242
        %v1244 = vrot.slane %v1203, 4
        %v1245 = vsel %vm964, %v1244, %v1191
        %v1246 = vrot.slane %v1191, 4
        %v1247 = vsel %vm964, %v1203, %v1246
        %v1249 = vunpack.c.l.s4 1983009808
        %v1250 = vunpack.c.0.s8 %v1249
        %v1251 = vperm.slane %v1245, %v1250
        %v1253 = vunpack.c.l.s4 1983009808
        %v1254 = vunpack.c.0.s8 %v1253
        %v1255 = vperm.slane %v1247, %v1254
        %v1256 = vrot.slane %v1221, 4
        %v1257 = vsel %vm964, %v1256, %v1209
        %v1258 = vrot.slane %v1209, 4
        %v1259 = vsel %vm964, %v1221, %v1258
        %v1261 = vunpack.c.l.s4 1983009808
        %v1262 = vunpack.c.0.s8 %v1261
        %v1263 = vperm.slane %v1257, %v1262
        %v1265 = vunpack.c.l.s4 1983009808
        %v1266 = vunpack.c.0.s8 %v1265
        %v1267 = vperm.slane %v1259, %v1266
        %v1268 = vrot.slane %v1227, 4
        %v1269 = vsel %vm964, %v1268, %v1215
        %v1270 = vrot.slane %v1215, 4
        %v1271 = vsel %vm964, %v1227, %v1270
        %v1273 = vunpack.c.l.s4 1983009808
        %v1274 = vunpack.c.0.s8 %v1273
        %v1275 = vperm.slane %v1269, %v1274
        %v1277 = vunpack.c.l.s4 1983009808
        %v1278 = vunpack.c.0.s8 %v1277
        %v1279 = vperm.slane %v1271, %v1278
        %v1280 = vrot.slane %v1251, 4
        %v1281 = vsel %vm964, %v1280, %v1239
        %v1282 = vrot.slane %v1239, 4
        %v1283 = vsel %vm964, %v1251, %v1282
        %v1285 = vunpack.c.l.s4 1934713408
        %v1286 = vunpack.c.0.s8 %v1285
        %v1287 = vperm.slane %v1281, %v1286
        %v1289 = vunpack.c.l.s4 1934713408
        %v1290 = vunpack.c.0.s8 %v1289
        %v1291 = vperm.slane %v1283, %v1290
        %v1292 = vrot.slane %v1255, 4
        %v1293 = vsel %vm964, %v1292, %v1243
        %v1294 = vrot.slane %v1243, 4
        %v1295 = vsel %vm964, %v1255, %v1294
        %v1297 = vunpack.c.l.s4 1934713408
        %v1298 = vunpack.c.0.s8 %v1297
        %v1299 = vperm.slane %v1293, %v1298
        %v1301 = vunpack.c.l.s4 1934713408
        %v1302 = vunpack.c.0.s8 %v1301
        %v1303 = vperm.slane %v1295, %v1302
        %v1304 = vrot.slane %v1275, 4
        %v1305 = vsel %vm964, %v1304, %v1263
        %v1306 = vrot.slane %v1263, 4
        %v1307 = vsel %vm964, %v1275, %v1306
        %v1309 = vunpack.c.l.s4 1934713408
        %v1310 = vunpack.c.0.s8 %v1309
        %v1311 = vperm.slane %v1305, %v1310
        %v1313 = vunpack.c.l.s4 1934713408
        %v1314 = vunpack.c.0.s8 %v1313
        %v1315 = vperm.slane %v1307, %v1314
        %v1316 = vrot.slane %v1279, 4
        %v1317 = vsel %vm964, %v1316, %v1267
        %v1318 = vrot.slane %v1267, 4
        %v1319 = vsel %vm964, %v1279, %v1318
        %v1321 = vunpack.c.l.s4 1934713408
        %v1322 = vunpack.c.0.s8 %v1321
        %v1323 = vperm.slane %v1317, %v1322
        %v1325 = vunpack.c.l.s4 1934713408
        %v1326 = vunpack.c.0.s8 %v1325
        %v1327 = vperm.slane %v1319, %v1326
        %v1328 = vrot.slane %v1311, 4
        %v1329 = vsel %vm964, %v1328, %v1287
        %v1330 = vrot.slane %v1287, 4
        %v1331 = vsel %vm964, %v1311, %v1330
        %v1332 = vrot.slane %v1315, 4
        %v1333 = vsel %vm964, %v1332, %v1291
        %v1334 = vrot.slane %v1291, 4
        %v1335 = vsel %vm964, %v1315, %v1334
        %v1336 = vrot.slane %v1323, 4
        %v1337 = vsel %vm964, %v1336, %v1299
        %v1338 = vrot.slane %v1299, 4
        %v1339 = vsel %vm964, %v1323, %v1338
        %v1340 = vrot.slane %v1327, 4
        %v1341 = vsel %vm964, %v1340, %v1303
        %v1342 = vrot.slane %v1303, 4
        %v1343 = vsel %vm964, %v1327, %v1342
        %v1344 = vrot.slane %v1199, 4
        %v1345 = vsel %vm964, %v1344, %v918
        %v1346 = vrot.slane %v918, 4
        %v1347 = vsel %vm964, %v1199, %v1346
        %v1349 = vunpack.c.l.s4 1983009808
        %v1350 = vunpack.c.0.s8 %v1349
        %v1351 = vperm.slane %v1345, %v1350
        %v1353 = vunpack.c.l.s4 1983009808
        %v1354 = vunpack.c.0.s8 %v1353
        %v1355 = vperm.slane %v1347, %v1354
        %v1356 = vrot.slane %v1205, 4
        %v1357 = vsel %vm964, %v1356, %v1193
        %v1358 = vrot.slane %v1193, 4
        %v1359 = vsel %vm964, %v1205, %v1358
        %v1361 = vunpack.c.l.s4 1983009808
        %v1362 = vunpack.c.0.s8 %v1361
        %v1363 = vperm.slane %v1357, %v1362
        %v1365 = vunpack.c.l.s4 1983009808
        %v1366 = vunpack.c.0.s8 %v1365
        %v1367 = vperm.slane %v1359, %v1366
        %v1368 = vrot.slane %v1223, 4
        %v1369 = vsel %vm964, %v1368, %v1211
        %v1370 = vrot.slane %v1211, 4
        %v1371 = vsel %vm964, %v1223, %v1370
        %v1373 = vunpack.c.l.s4 1983009808
        %v1374 = vunpack.c.0.s8 %v1373
        %v1375 = vperm.slane %v1369, %v1374
        %v1377 = vunpack.c.l.s4 1983009808
        %v1378 = vunpack.c.0.s8 %v1377
        %v1379 = vperm.slane %v1371, %v1378
        %v1380 = vrot.slane %v1229, 4
        %v1381 = vsel %vm964, %v1380, %v1217
        %v1382 = vrot.slane %v1217, 4
        %v1383 = vsel %vm964, %v1229, %v1382
        %v1385 = vunpack.c.l.s4 1983009808
        %v1386 = vunpack.c.0.s8 %v1385
        %v1387 = vperm.slane %v1381, %v1386
        %v1389 = vunpack.c.l.s4 1983009808
        %v1390 = vunpack.c.0.s8 %v1389
        %v1391 = vperm.slane %v1383, %v1390
        %v1392 = vrot.slane %v1363, 4
        %v1393 = vsel %vm964, %v1392, %v1351
        %v1394 = vrot.slane %v1351, 4
        %v1395 = vsel %vm964, %v1363, %v1394
        %v1397 = vunpack.c.l.s4 1934713408
        %v1398 = vunpack.c.0.s8 %v1397
        %v1399 = vperm.slane %v1393, %v1398
        %v1401 = vunpack.c.l.s4 1934713408
        %v1402 = vunpack.c.0.s8 %v1401
        %v1403 = vperm.slane %v1395, %v1402
        %v1404 = vrot.slane %v1367, 4
        %v1405 = vsel %vm964, %v1404, %v1355
        %v1406 = vrot.slane %v1355, 4
        %v1407 = vsel %vm964, %v1367, %v1406
        %v1409 = vunpack.c.l.s4 1934713408
        %v1410 = vunpack.c.0.s8 %v1409
        %v1411 = vperm.slane %v1405, %v1410
        %v1413 = vunpack.c.l.s4 1934713408
        %v1414 = vunpack.c.0.s8 %v1413
        %v1415 = vperm.slane %v1407, %v1414
        %v1416 = vrot.slane %v1387, 4
        %v1417 = vsel %vm964, %v1416, %v1375
        %v1418 = vrot.slane %v1375, 4
        %v1419 = vsel %vm964, %v1387, %v1418
        %v1421 = vunpack.c.l.s4 1934713408
        %v1422 = vunpack.c.0.s8 %v1421
        %v1423 = vperm.slane %v1417, %v1422
        %v1425 = vunpack.c.l.s4 1934713408
        %v1426 = vunpack.c.0.s8 %v1425
        %v1427 = vperm.slane %v1419, %v1426
        %v1428 = vrot.slane %v1391, 4
        %v1429 = vsel %vm964, %v1428, %v1379
        %v1430 = vrot.slane %v1379, 4
        %v1431 = vsel %vm964, %v1391, %v1430
        %v1433 = vunpack.c.l.s4 1934713408
        %v1434 = vunpack.c.0.s8 %v1433
        %v1435 = vperm.slane %v1429, %v1434
        %v1437 = vunpack.c.l.s4 1934713408
        %v1438 = vunpack.c.0.s8 %v1437
        %v1439 = vperm.slane %v1431, %v1438
        %v1440 = vrot.slane %v1423, 4
        %v1441 = vsel %vm964, %v1440, %v1399
        %v1442 = vrot.slane %v1399, 4
        %v1443 = vsel %vm964, %v1423, %v1442
        %v1444 = vrot.slane %v1427, 4
        %v1445 = vsel %vm964, %v1444, %v1403
        %v1446 = vrot.slane %v1403, 4
        %v1447 = vsel %vm964, %v1427, %v1446
        %v1448 = vrot.slane %v1435, 4
        %v1449 = vsel %vm964, %v1448, %v1411
        %v1450 = vrot.slane %v1411, 4
        %v1451 = vsel %vm964, %v1435, %v1450
        %v1452 = vrot.slane %v1439, 4
        %v1453 = vsel %vm964, %v1452, %v1415
        %v1454 = vrot.slane %v1415, 4
        %v1455 = vsel %vm964, %v1439, %v1454
        %v1456 = vld [vmem:[#allocation2] sm:$0xff]
        %v1457 = vld [vmem:[#allocation2 + $0x8] sm:$0xff]
        %v1458 = vld [vmem:[#allocation2 + $0x10] sm:$0xff]
        %v1459 = vld [vmem:[#allocation2 + $0x18] sm:$0xff]
        %v1460 = vld [vmem:[#allocation2 + $0x20] sm:$0xff]
        %v1461 = vld [vmem:[#allocation2 + $0x28] sm:$0xff]
        %v1462 = vld [vmem:[#allocation2 + $0x30] sm:$0xff]
        %v1463 = vld [vmem:[#allocation2 + $0x38] sm:$0xff]
        %v1464 = vld [vmem:[#allocation2 + $0x40] sm:$0xff]
        %v1465 = vld [vmem:[#allocation2 + $0x48] sm:$0xff]
        %v1466 = vld [vmem:[#allocation2 + $0x50] sm:$0xff]
        %v1467 = vld [vmem:[#allocation2 + $0x58] sm:$0xff]
        %v1468 = vld [vmem:[#allocation2 + $0x60] sm:$0xff]
        %v1469 = vld [vmem:[#allocation2 + $0x68] sm:$0xff]
        %v1470 = vld [vmem:[#allocation2 + $0x70] sm:$0xff]
        %v1471 = vld [vmem:[#allocation2 + $0x78] sm:$0xff]
        %1472 = vxpose.xlu0.b32.start [1/16] %v1061, 128
        %1473 = vxpose.xlu0.b32.cont [2/16] 0.0, 128
        %1474 = vxpose.xlu0.b32.cont [3/16] 0.0, 128
        %1475 = vxpose.xlu0.b32.cont [4/16] 0.0, 128
        %1476 = vxpose.xlu0.b32.cont [5/16] 0.0, 128
        %1477 = vxpose.xlu0.b32.cont [6/16] 0.0, 128
        %1478 = vxpose.xlu0.b32.cont [7/16] 0.0, 128
        %1479 = vxpose.xlu0.b32.cont [8/16] 0.0, 128
        %1480 = vxpose.xlu0.b32.cont [9/16] 0.0, 128
        %1481 = vxpose.xlu0.b32.cont [10/16] 0.0, 128
        %1482 = vxpose.xlu0.b32.cont [11/16] 0.0, 128
        %1483 = vxpose.xlu0.b32.cont [12/16] 0.0, 128
        %1484 = vxpose.xlu0.b32.cont [13/16] 0.0, 128
        %1485 = vxpose.xlu0.b32.cont [14/16] 0.0, 128
        %1486 = vxpose.xlu0.b32.cont [15/16] 0.0, 128
        %1487 = vxpose.xlu0.b32.end [16/16] 0.0, 128
        %v1488 = vpop.trf.xlu0
        %v1489 = vpop.trf.xlu0
        %v1490 = vpop.trf.xlu0
        %v1491 = vpop.trf.xlu0
        %v1492 = vpop.trf.xlu0
        %v1493 = vpop.trf.xlu0
        %v1494 = vpop.trf.xlu0
        %v1495 = vpop.trf.xlu0
        %v1496 = vpop.trf.xlu0
        %v1497 = vpop.trf.xlu0
        %v1498 = vpop.trf.xlu0
        %v1499 = vpop.trf.xlu0
        %v1500 = vpop.trf.xlu0
        %v1501 = vpop.trf.xlu0
        %v1502 = vpop.trf.xlu0
        %v1503 = vpop.trf.xlu0
        %1504 = vxpose.xlu0.b32.start [1/16] %v1063, 128
        %1505 = vxpose.xlu0.b32.cont [2/16] 0.0, 128
        %1506 = vxpose.xlu0.b32.cont [3/16] 0.0, 128
        %1507 = vxpose.xlu0.b32.cont [4/16] 0.0, 128
        %1508 = vxpose.xlu0.b32.cont [5/16] 0.0, 128
        %1509 = vxpose.xlu0.b32.cont [6/16] 0.0, 128
        %1510 = vxpose.xlu0.b32.cont [7/16] 0.0, 128
        %1511 = vxpose.xlu0.b32.cont [8/16] 0.0, 128
        %1512 = vxpose.xlu0.b32.cont [9/16] 0.0, 128
        %1513 = vxpose.xlu0.b32.cont [10/16] 0.0, 128
        %1514 = vxpose.xlu0.b32.cont [11/16] 0.0, 128
        %1515 = vxpose.xlu0.b32.cont [12/16] 0.0, 128
        %1516 = vxpose.xlu0.b32.cont [13/16] 0.0, 128
        %1517 = vxpose.xlu0.b32.cont [14/16] 0.0, 128
        %1518 = vxpose.xlu0.b32.cont [15/16] 0.0, 128
        %1519 = vxpose.xlu0.b32.end [16/16] 0.0, 128
        %v1520 = vpop.trf.xlu0
        %v1521 = vpop.trf.xlu0
        %v1522 = vpop.trf.xlu0
        %v1523 = vpop.trf.xlu0
        %v1524 = vpop.trf.xlu0
        %v1525 = vpop.trf.xlu0
        %v1526 = vpop.trf.xlu0
        %v1527 = vpop.trf.xlu0
        %v1528 = vpop.trf.xlu0
        %v1529 = vpop.trf.xlu0
        %v1530 = vpop.trf.xlu0
        %v1531 = vpop.trf.xlu0
        %v1532 = vpop.trf.xlu0
        %v1533 = vpop.trf.xlu0
        %v1534 = vpop.trf.xlu0
        %v1535 = vpop.trf.xlu0
        %1536 = vxpose.xlu0.b32.start [1/16] %v1065, 128
        %1537 = vxpose.xlu0.b32.cont [2/16] 0.0, 128
        %1538 = vxpose.xlu0.b32.cont [3/16] 0.0, 128
        %1539 = vxpose.xlu0.b32.cont [4/16] 0.0, 128
        %1540 = vxpose.xlu0.b32.cont [5/16] 0.0, 128
        %1541 = vxpose.xlu0.b32.cont [6/16] 0.0, 128
        %1542 = vxpose.xlu0.b32.cont [7/16] 0.0, 128
        %1543 = vxpose.xlu0.b32.cont [8/16] 0.0, 128
        %1544 = vxpose.xlu0.b32.cont [9/16] 0.0, 128
        %1545 = vxpose.xlu0.b32.cont [10/16] 0.0, 128
        %1546 = vxpose.xlu0.b32.cont [11/16] 0.0, 128
        %1547 = vxpose.xlu0.b32.cont [12/16] 0.0, 128
        %1548 = vxpose.xlu0.b32.cont [13/16] 0.0, 128
        %1549 = vxpose.xlu0.b32.cont [14/16] 0.0, 128
        %1550 = vxpose.xlu0.b32.cont [15/16] 0.0, 128
        %1551 = vxpose.xlu0.b32.end [16/16] 0.0, 128
        %v1552 = vpop.trf.xlu0
        %v1553 = vpop.trf.xlu0
        %v1554 = vpop.trf.xlu0
        %v1555 = vpop.trf.xlu0
        %v1556 = vpop.trf.xlu0
        %v1557 = vpop.trf.xlu0
        %v1558 = vpop.trf.xlu0
        %v1559 = vpop.trf.xlu0
        %v1560 = vpop.trf.xlu0
        %v1561 = vpop.trf.xlu0
        %v1562 = vpop.trf.xlu0
        %v1563 = vpop.trf.xlu0
        %v1564 = vpop.trf.xlu0
        %v1565 = vpop.trf.xlu0
        %v1566 = vpop.trf.xlu0
        %v1567 = vpop.trf.xlu0
        %1568 = vxpose.xlu0.b32.start [1/16] %v1067, 128
        %1569 = vxpose.xlu0.b32.cont [2/16] 0.0, 128
        %1570 = vxpose.xlu0.b32.cont [3/16] 0.0, 128
        %1571 = vxpose.xlu0.b32.cont [4/16] 0.0, 128
        %1572 = vxpose.xlu0.b32.cont [5/16] 0.0, 128
        %1573 = vxpose.xlu0.b32.cont [6/16] 0.0, 128
        %1574 = vxpose.xlu0.b32.cont [7/16] 0.0, 128
        %1575 = vxpose.xlu0.b32.cont [8/16] 0.0, 128
        %1576 = vxpose.xlu0.b32.cont [9/16] 0.0, 128
        %1577 = vxpose.xlu0.b32.cont [10/16] 0.0, 128
        %1578 = vxpose.xlu0.b32.cont [11/16] 0.0, 128
        %1579 = vxpose.xlu0.b32.cont [12/16] 0.0, 128
        %1580 = vxpose.xlu0.b32.cont [13/16] 0.0, 128
        %1581 = vxpose.xlu0.b32.cont [14/16] 0.0, 128
        %1582 = vxpose.xlu0.b32.cont [15/16] 0.0, 128
        %1583 = vxpose.xlu0.b32.end [16/16] 0.0, 128
        %v1584 = vpop.trf.xlu0
        %v1585 = vpop.trf.xlu0
        %v1586 = vpop.trf.xlu0
        %v1587 = vpop.trf.xlu0
        %v1588 = vpop.trf.xlu0
        %v1589 = vpop.trf.xlu0
        %v1590 = vpop.trf.xlu0
        %v1591 = vpop.trf.xlu0
        %v1592 = vpop.trf.xlu0
        %v1593 = vpop.trf.xlu0
        %v1594 = vpop.trf.xlu0
        %v1595 = vpop.trf.xlu0
        %v1596 = vpop.trf.xlu0
        %v1597 = vpop.trf.xlu0
        %v1598 = vpop.trf.xlu0
        %v1599 = vpop.trf.xlu0
        %1600 = vxpose.xlu0.b32.start [1/16] %v1069, 128
        %1601 = vxpose.xlu0.b32.cont [2/16] 0.0, 128
        %1602 = vxpose.xlu0.b32.cont [3/16] 0.0, 128
        %1603 = vxpose.xlu0.b32.cont [4/16] 0.0, 128
        %1604 = vxpose.xlu0.b32.cont [5/16] 0.0, 128
        %1605 = vxpose.xlu0.b32.cont [6/16] 0.0, 128
        %1606 = vxpose.xlu0.b32.cont [7/16] 0.0, 128
        %1607 = vxpose.xlu0.b32.cont [8/16] 0.0, 128
        %1608 = vxpose.xlu0.b32.cont [9/16] 0.0, 128
        %1609 = vxpose.xlu0.b32.cont [10/16] 0.0, 128
        %1610 = vxpose.xlu0.b32.cont [11/16] 0.0, 128
        %1611 = vxpose.xlu0.b32.cont [12/16] 0.0, 128
        %1612 = vxpose.xlu0.b32.cont [13/16] 0.0, 128
        %1613 = vxpose.xlu0.b32.cont [14/16] 0.0, 128
        %1614 = vxpose.xlu0.b32.cont [15/16] 0.0, 128
        %1615 = vxpose.xlu0.b32.end [16/16] 0.0, 128
        %v1616 = vpop.trf.xlu0
        %v1617 = vpop.trf.xlu0
        %v1618 = vpop.trf.xlu0
        %v1619 = vpop.trf.xlu0
        %v1620 = vpop.trf.xlu0
        %v1621 = vpop.trf.xlu0
        %v1622 = vpop.trf.xlu0
        %v1623 = vpop.trf.xlu0
        %v1624 = vpop.trf.xlu0
        %v1625 = vpop.trf.xlu0
        %v1626 = vpop.trf.xlu0
        %v1627 = vpop.trf.xlu0
        %v1628 = vpop.trf.xlu0
        %v1629 = vpop.trf.xlu0
        %v1630 = vpop.trf.xlu0
        %v1631 = vpop.trf.xlu0
        %1632 = vxpose.xlu0.b32.start [1/16] %v1071, 128
        %1633 = vxpose.xlu0.b32.cont [2/16] 0.0, 128
        %1634 = vxpose.xlu0.b32.cont [3/16] 0.0, 128
        %1635 = vxpose.xlu0.b32.cont [4/16] 0.0, 128
        %1636 = vxpose.xlu0.b32.cont [5/16] 0.0, 128
        %1637 = vxpose.xlu0.b32.cont [6/16] 0.0, 128
        %1638 = vxpose.xlu0.b32.cont [7/16] 0.0, 128
        %1639 = vxpose.xlu0.b32.cont [8/16] 0.0, 128
        %1640 = vxpose.xlu0.b32.cont [9/16] 0.0, 128
        %1641 = vxpose.xlu0.b32.cont [10/16] 0.0, 128
        %1642 = vxpose.xlu0.b32.cont [11/16] 0.0, 128
        %1643 = vxpose.xlu0.b32.cont [12/16] 0.0, 128
        %1644 = vxpose.xlu0.b32.cont [13/16] 0.0, 128
        %1645 = vxpose.xlu0.b32.cont [14/16] 0.0, 128
        %1646 = vxpose.xlu0.b32.cont [15/16] 0.0, 128
        %1647 = vxpose.xlu0.b32.end [16/16] 0.0, 128
        %v1648 = vpop.trf.xlu0
        %v1649 = vpop.trf.xlu0
        %v1650 = vpop.trf.xlu0
        %v1651 = vpop.trf.xlu0
        %v1652 = vpop.trf.xlu0
        %v1653 = vpop.trf.xlu0
        %v1654 = vpop.trf.xlu0
        %v1655 = vpop.trf.xlu0
        %v1656 = vpop.trf.xlu0
        %v1657 = vpop.trf.xlu0
        %v1658 = vpop.trf.xlu0
        %v1659 = vpop.trf.xlu0
        %v1660 = vpop.trf.xlu0
        %v1661 = vpop.trf.xlu0
        %v1662 = vpop.trf.xlu0
        %v1663 = vpop.trf.xlu0
        %1664 = vxpose.xlu0.b32.start [1/16] %v1073, 128
        %1665 = vxpose.xlu0.b32.cont [2/16] 0.0, 128
        %1666 = vxpose.xlu0.b32.cont [3/16] 0.0, 128
        %1667 = vxpose.xlu0.b32.cont [4/16] 0.0, 128
        %1668 = vxpose.xlu0.b32.cont [5/16] 0.0, 128
        %1669 = vxpose.xlu0.b32.cont [6/16] 0.0, 128
        %1670 = vxpose.xlu0.b32.cont [7/16] 0.0, 128
        %1671 = vxpose.xlu0.b32.cont [8/16] 0.0, 128
        %1672 = vxpose.xlu0.b32.cont [9/16] 0.0, 128
        %1673 = vxpose.xlu0.b32.cont [10/16] 0.0, 128
        %1674 = vxpose.xlu0.b32.cont [11/16] 0.0, 128
        %1675 = vxpose.xlu0.b32.cont [12/16] 0.0, 128
        %1676 = vxpose.xlu0.b32.cont [13/16] 0.0, 128
        %1677 = vxpose.xlu0.b32.cont [14/16] 0.0, 128
        %1678 = vxpose.xlu0.b32.cont [15/16] 0.0, 128
        %1679 = vxpose.xlu0.b32.end [16/16] 0.0, 128
        %v1680 = vpop.trf.xlu0
        %v1681 = vpop.trf.xlu0
        %v1682 = vpop.trf.xlu0
        %v1683 = vpop.trf.xlu0
        %v1684 = vpop.trf.xlu0
        %v1685 = vpop.trf.xlu0
        %v1686 = vpop.trf.xlu0
        %v1687 = vpop.trf.xlu0
        %v1688 = vpop.trf.xlu0
        %v1689 = vpop.trf.xlu0
        %v1690 = vpop.trf.xlu0
        %v1691 = vpop.trf.xlu0
        %v1692 = vpop.trf.xlu0
        %v1693 = vpop.trf.xlu0
        %v1694 = vpop.trf.xlu0
        %v1695 = vpop.trf.xlu0
        %1696 = vxpose.xlu0.b32.start [1/16] %v1075, 128
        %1697 = vxpose.xlu0.b32.cont [2/16] 0.0, 128
        %1698 = vxpose.xlu0.b32.cont [3/16] 0.0, 128
        %1699 = vxpose.xlu0.b32.cont [4/16] 0.0, 128
        %1700 = vxpose.xlu0.b32.cont [5/16] 0.0, 128
        %1701 = vxpose.xlu0.b32.cont [6/16] 0.0, 128
        %1702 = vxpose.xlu0.b32.cont [7/16] 0.0, 128
        %1703 = vxpose.xlu0.b32.cont [8/16] 0.0, 128
        %1704 = vxpose.xlu0.b32.cont [9/16] 0.0, 128
        %1705 = vxpose.xlu0.b32.cont [10/16] 0.0, 128
        %1706 = vxpose.xlu0.b32.cont [11/16] 0.0, 128
        %1707 = vxpose.xlu0.b32.cont [12/16] 0.0, 128
        %1708 = vxpose.xlu0.b32.cont [13/16] 0.0, 128
        %1709 = vxpose.xlu0.b32.cont [14/16] 0.0, 128
        %1710 = vxpose.xlu0.b32.cont [15/16] 0.0, 128
        %1711 = vxpose.xlu0.b32.end [16/16] 0.0, 128
        %v1712 = vpop.trf.xlu0
        %v1713 = vpop.trf.xlu0
        %v1714 = vpop.trf.xlu0
        %v1715 = vpop.trf.xlu0
        %v1716 = vpop.trf.xlu0
        %v1717 = vpop.trf.xlu0
        %v1718 = vpop.trf.xlu0
        %v1719 = vpop.trf.xlu0
        %v1720 = vpop.trf.xlu0
        %v1721 = vpop.trf.xlu0
        %v1722 = vpop.trf.xlu0
        %v1723 = vpop.trf.xlu0
        %v1724 = vpop.trf.xlu0
        %v1725 = vpop.trf.xlu0
        %v1726 = vpop.trf.xlu0
        %v1727 = vpop.trf.xlu0
        %1728 = vxpose.xlu0.b32.start [1/16] %v1173, 128
        %1729 = vxpose.xlu0.b32.cont [2/16] 0.0, 128
        %1730 = vxpose.xlu0.b32.cont [3/16] 0.0, 128
        %1731 = vxpose.xlu0.b32.cont [4/16] 0.0, 128
        %1732 = vxpose.xlu0.b32.cont [5/16] 0.0, 128
        %1733 = vxpose.xlu0.b32.cont [6/16] 0.0, 128
        %1734 = vxpose.xlu0.b32.cont [7/16] 0.0, 128
        %1735 = vxpose.xlu0.b32.cont [8/16] 0.0, 128
        %1736 = vxpose.xlu0.b32.cont [9/16] 0.0, 128
        %1737 = vxpose.xlu0.b32.cont [10/16] 0.0, 128
        %1738 = vxpose.xlu0.b32.cont [11/16] 0.0, 128
        %1739 = vxpose.xlu0.b32.cont [12/16] 0.0, 128
        %1740 = vxpose.xlu0.b32.cont [13/16] 0.0, 128
        %1741 = vxpose.xlu0.b32.cont [14/16] 0.0, 128
        %1742 = vxpose.xlu0.b32.cont [15/16] 0.0, 128
        %1743 = vxpose.xlu0.b32.end [16/16] 0.0, 128
        %v1744 = vpop.trf.xlu0
        %v1745 = vpop.trf.xlu0
        %v1746 = vpop.trf.xlu0
        %v1747 = vpop.trf.xlu0
        %v1748 = vpop.trf.xlu0
        %v1749 = vpop.trf.xlu0
        %v1750 = vpop.trf.xlu0
        %v1751 = vpop.trf.xlu0
        %v1752 = vpop.trf.xlu0
        %v1753 = vpop.trf.xlu0
        %v1754 = vpop.trf.xlu0
        %v1755 = vpop.trf.xlu0
        %v1756 = vpop.trf.xlu0
        %v1757 = vpop.trf.xlu0
        %v1758 = vpop.trf.xlu0
        %v1759 = vpop.trf.xlu0
        %1760 = vxpose.xlu0.b32.start [1/16] %v1175, 128
        %1761 = vxpose.xlu0.b32.cont [2/16] 0.0, 128
        %1762 = vxpose.xlu0.b32.cont [3/16] 0.0, 128
        %1763 = vxpose.xlu0.b32.cont [4/16] 0.0, 128
        %1764 = vxpose.xlu0.b32.cont [5/16] 0.0, 128
        %1765 = vxpose.xlu0.b32.cont [6/16] 0.0, 128
        %1766 = vxpose.xlu0.b32.cont [7/16] 0.0, 128
        %1767 = vxpose.xlu0.b32.cont [8/16] 0.0, 128
        %1768 = vxpose.xlu0.b32.cont [9/16] 0.0, 128
        %1769 = vxpose.xlu0.b32.cont [10/16] 0.0, 128
        %1770 = vxpose.xlu0.b32.cont [11/16] 0.0, 128
        %1771 = vxpose.xlu0.b32.cont [12/16] 0.0, 128
        %1772 = vxpose.xlu0.b32.cont [13/16] 0.0, 128
        %1773 = vxpose.xlu0.b32.cont [14/16] 0.0, 128
        %1774 = vxpose.xlu0.b32.cont [15/16] 0.0, 128
        %1775 = vxpose.xlu0.b32.end [16/16] 0.0, 128
        %v1776 = vpop.trf.xlu0
        %v1777 = vpop.trf.xlu0
        %v1778 = vpop.trf.xlu0
        %v1779 = vpop.trf.xlu0
        %v1780 = vpop.trf.xlu0
        %v1781 = vpop.trf.xlu0
        %v1782 = vpop.trf.xlu0
        %v1783 = vpop.trf.xlu0
        %v1784 = vpop.trf.xlu0
        %v1785 = vpop.trf.xlu0
        %v1786 = vpop.trf.xlu0
        %v1787 = vpop.trf.xlu0
        %v1788 = vpop.trf.xlu0
        %v1789 = vpop.trf.xlu0
        %v1790 = vpop.trf.xlu0
        %v1791 = vpop.trf.xlu0
        %1792 = vxpose.xlu0.b32.start [1/16] %v1177, 128
        %1793 = vxpose.xlu0.b32.cont [2/16] 0.0, 128
        %1794 = vxpose.xlu0.b32.cont [3/16] 0.0, 128
        %1795 = vxpose.xlu0.b32.cont [4/16] 0.0, 128
        %1796 = vxpose.xlu0.b32.cont [5/16] 0.0, 128
        %1797 = vxpose.xlu0.b32.cont [6/16] 0.0, 128
        %1798 = vxpose.xlu0.b32.cont [7/16] 0.0, 128
        %1799 = vxpose.xlu0.b32.cont [8/16] 0.0, 128
        %1800 = vxpose.xlu0.b32.cont [9/16] 0.0, 128
        %1801 = vxpose.xlu0.b32.cont [10/16] 0.0, 128
        %1802 = vxpose.xlu0.b32.cont [11/16] 0.0, 128
        %1803 = vxpose.xlu0.b32.cont [12/16] 0.0, 128
        %1804 = vxpose.xlu0.b32.cont [13/16] 0.0, 128
        %1805 = vxpose.xlu0.b32.cont [14/16] 0.0, 128
        %1806 = vxpose.xlu0.b32.cont [15/16] 0.0, 128
        %1807 = vxpose.xlu0.b32.end [16/16] 0.0, 128
        %v1808 = vpop.trf.xlu0
        %v1809 = vpop.trf.xlu0
        %v1810 = vpop.trf.xlu0
        %v1811 = vpop.trf.xlu0
        %v1812 = vpop.trf.xlu0
        %v1813 = vpop.trf.xlu0
        %v1814 = vpop.trf.xlu0
        %v1815 = vpop.trf.xlu0
        %v1816 = vpop.trf.xlu0
        %v1817 = vpop.trf.xlu0
        %v1818 = vpop.trf.xlu0
        %v1819 = vpop.trf.xlu0
        %v1820 = vpop.trf.xlu0
        %v1821 = vpop.trf.xlu0
        %v1822 = vpop.trf.xlu0
        %v1823 = vpop.trf.xlu0
        %1824 = vxpose.xlu0.b32.start [1/16] %v1179, 128
        %1825 = vxpose.xlu0.b32.cont [2/16] 0.0, 128
        %1826 = vxpose.xlu0.b32.cont [3/16] 0.0, 128
        %1827 = vxpose.xlu0.b32.cont [4/16] 0.0, 128
        %1828 = vxpose.xlu0.b32.cont [5/16] 0.0, 128
        %1829 = vxpose.xlu0.b32.cont [6/16] 0.0, 128
        %1830 = vxpose.xlu0.b32.cont [7/16] 0.0, 128
        %1831 = vxpose.xlu0.b32.cont [8/16] 0.0, 128
        %1832 = vxpose.xlu0.b32.cont [9/16] 0.0, 128
        %1833 = vxpose.xlu0.b32.cont [10/16] 0.0, 128
        %1834 = vxpose.xlu0.b32.cont [11/16] 0.0, 128
        %1835 = vxpose.xlu0.b32.cont [12/16] 0.0, 128
        %1836 = vxpose.xlu0.b32.cont [13/16] 0.0, 128
        %1837 = vxpose.xlu0.b32.cont [14/16] 0.0, 128
        %1838 = vxpose.xlu0.b32.cont [15/16] 0.0, 128
        %1839 = vxpose.xlu0.b32.end [16/16] 0.0, 128
        %v1840 = vpop.trf.xlu0
        %v1841 = vpop.trf.xlu0
        %v1842 = vpop.trf.xlu0
        %v1843 = vpop.trf.xlu0
        %v1844 = vpop.trf.xlu0
        %v1845 = vpop.trf.xlu0
        %v1846 = vpop.trf.xlu0
        %v1847 = vpop.trf.xlu0
        %v1848 = vpop.trf.xlu0
        %v1849 = vpop.trf.xlu0
        %v1850 = vpop.trf.xlu0
        %v1851 = vpop.trf.xlu0
        %v1852 = vpop.trf.xlu0
        %v1853 = vpop.trf.xlu0
        %v1854 = vpop.trf.xlu0
        %v1855 = vpop.trf.xlu0
        %1856 = vxpose.xlu0.b32.start [1/16] %v1181, 128
        %1857 = vxpose.xlu0.b32.cont [2/16] 0.0, 128
        %1858 = vxpose.xlu0.b32.cont [3/16] 0.0, 128
        %1859 = vxpose.xlu0.b32.cont [4/16] 0.0, 128
        %1860 = vxpose.xlu0.b32.cont [5/16] 0.0, 128
        %1861 = vxpose.xlu0.b32.cont [6/16] 0.0, 128
        %1862 = vxpose.xlu0.b32.cont [7/16] 0.0, 128
        %1863 = vxpose.xlu0.b32.cont [8/16] 0.0, 128
        %1864 = vxpose.xlu0.b32.cont [9/16] 0.0, 128
        %1865 = vxpose.xlu0.b32.cont [10/16] 0.0, 128
        %1866 = vxpose.xlu0.b32.cont [11/16] 0.0, 128
        %1867 = vxpose.xlu0.b32.cont [12/16] 0.0, 128
        %1868 = vxpose.xlu0.b32.cont [13/16] 0.0, 128
        %1869 = vxpose.xlu0.b32.cont [14/16] 0.0, 128
        %1870 = vxpose.xlu0.b32.cont [15/16] 0.0, 128
        %1871 = vxpose.xlu0.b32.end [16/16] 0.0, 128
        %v1872 = vpop.trf.xlu0
        %v1873 = vpop.trf.xlu0
        %v1874 = vpop.trf.xlu0
        %v1875 = vpop.trf.xlu0
        %v1876 = vpop.trf.xlu0
        %v1877 = vpop.trf.xlu0
        %v1878 = vpop.trf.xlu0
        %v1879 = vpop.trf.xlu0
        %v1880 = vpop.trf.xlu0
        %v1881 = vpop.trf.xlu0
        %v1882 = vpop.trf.xlu0
        %v1883 = vpop.trf.xlu0
        %v1884 = vpop.trf.xlu0
        %v1885 = vpop.trf.xlu0
        %v1886 = vpop.trf.xlu0
        %v1887 = vpop.trf.xlu0
        %1888 = vxpose.xlu0.b32.start [1/16] %v1183, 128
        %1889 = vxpose.xlu0.b32.cont [2/16] 0.0, 128
        %1890 = vxpose.xlu0.b32.cont [3/16] 0.0, 128
        %1891 = vxpose.xlu0.b32.cont [4/16] 0.0, 128
        %1892 = vxpose.xlu0.b32.cont [5/16] 0.0, 128
        %1893 = vxpose.xlu0.b32.cont [6/16] 0.0, 128
        %1894 = vxpose.xlu0.b32.cont [7/16] 0.0, 128
        %1895 = vxpose.xlu0.b32.cont [8/16] 0.0, 128
        %1896 = vxpose.xlu0.b32.cont [9/16] 0.0, 128
        %1897 = vxpose.xlu0.b32.cont [10/16] 0.0, 128
        %1898 = vxpose.xlu0.b32.cont [11/16] 0.0, 128
        %1899 = vxpose.xlu0.b32.cont [12/16] 0.0, 128
        %1900 = vxpose.xlu0.b32.cont [13/16] 0.0, 128
        %1901 = vxpose.xlu0.b32.cont [14/16] 0.0, 128
        %1902 = vxpose.xlu0.b32.cont [15/16] 0.0, 128
        %1903 = vxpose.xlu0.b32.end [16/16] 0.0, 128
        %v1904 = vpop.trf.xlu0
        %v1905 = vpop.trf.xlu0
        %v1906 = vpop.trf.xlu0
        %v1907 = vpop.trf.xlu0
        %v1908 = vpop.trf.xlu0
        %v1909 = vpop.trf.xlu0
        %v1910 = vpop.trf.xlu0
        %v1911 = vpop.trf.xlu0
        %v1912 = vpop.trf.xlu0
        %v1913 = vpop.trf.xlu0
        %v1914 = vpop.trf.xlu0
        %v1915 = vpop.trf.xlu0
        %v1916 = vpop.trf.xlu0
        %v1917 = vpop.trf.xlu0
        %v1918 = vpop.trf.xlu0
        %v1919 = vpop.trf.xlu0
        %1920 = vxpose.xlu0.b32.start [1/16] %v1185, 128
        %1921 = vxpose.xlu0.b32.cont [2/16] 0.0, 128
        %1922 = vxpose.xlu0.b32.cont [3/16] 0.0, 128
        %1923 = vxpose.xlu0.b32.cont [4/16] 0.0, 128
        %1924 = vxpose.xlu0.b32.cont [5/16] 0.0, 128
        %1925 = vxpose.xlu0.b32.cont [6/16] 0.0, 128
        %1926 = vxpose.xlu0.b32.cont [7/16] 0.0, 128
        %1927 = vxpose.xlu0.b32.cont [8/16] 0.0, 128
        %1928 = vxpose.xlu0.b32.cont [9/16] 0.0, 128
        %1929 = vxpose.xlu0.b32.cont [10/16] 0.0, 128
        %1930 = vxpose.xlu0.b32.cont [11/16] 0.0, 128
        %1931 = vxpose.xlu0.b32.cont [12/16] 0.0, 128
        %1932 = vxpose.xlu0.b32.cont [13/16] 0.0, 128
        %1933 = vxpose.xlu0.b32.cont [14/16] 0.0, 128
        %1934 = vxpose.xlu0.b32.cont [15/16] 0.0, 128
        %1935 = vxpose.xlu0.b32.end [16/16] 0.0, 128
        %v1936 = vpop.trf.xlu0
        %v1937 = vpop.trf.xlu0
        %v1938 = vpop.trf.xlu0
        %v1939 = vpop.trf.xlu0
        %v1940 = vpop.trf.xlu0
        %v1941 = vpop.trf.xlu0
        %v1942 = vpop.trf.xlu0
        %v1943 = vpop.trf.xlu0
        %v1944 = vpop.trf.xlu0
        %v1945 = vpop.trf.xlu0
        %v1946 = vpop.trf.xlu0
        %v1947 = vpop.trf.xlu0
        %v1948 = vpop.trf.xlu0
        %v1949 = vpop.trf.xlu0
        %v1950 = vpop.trf.xlu0
        %v1951 = vpop.trf.xlu0
        %1952 = vxpose.xlu0.b32.start [1/16] %v1187, 128
        %1953 = vxpose.xlu0.b32.cont [2/16] 0.0, 128
        %1954 = vxpose.xlu0.b32.cont [3/16] 0.0, 128
        %1955 = vxpose.xlu0.b32.cont [4/16] 0.0, 128
        %1956 = vxpose.xlu0.b32.cont [5/16] 0.0, 128
        %1957 = vxpose.xlu0.b32.cont [6/16] 0.0, 128
        %1958 = vxpose.xlu0.b32.cont [7/16] 0.0, 128
        %1959 = vxpose.xlu0.b32.cont [8/16] 0.0, 128
        %1960 = vxpose.xlu0.b32.cont [9/16] 0.0, 128
        %1961 = vxpose.xlu0.b32.cont [10/16] 0.0, 128
        %1962 = vxpose.xlu0.b32.cont [11/16] 0.0, 128
        %1963 = vxpose.xlu0.b32.cont [12/16] 0.0, 128
        %1964 = vxpose.xlu0.b32.cont [13/16] 0.0, 128
        %1965 = vxpose.xlu0.b32.cont [14/16] 0.0, 128
        %1966 = vxpose.xlu0.b32.cont [15/16] 0.0, 128
        %1967 = vxpose.xlu0.b32.end [16/16] 0.0, 128
        %v1968 = vpop.trf.xlu0
        %v1969 = vpop.trf.xlu0
        %v1970 = vpop.trf.xlu0
        %v1971 = vpop.trf.xlu0
        %v1972 = vpop.trf.xlu0
        %v1973 = vpop.trf.xlu0
        %v1974 = vpop.trf.xlu0
        %v1975 = vpop.trf.xlu0
        %v1976 = vpop.trf.xlu0
        %v1977 = vpop.trf.xlu0
        %v1978 = vpop.trf.xlu0
        %v1979 = vpop.trf.xlu0
        %v1980 = vpop.trf.xlu0
        %v1981 = vpop.trf.xlu0
        %v1982 = vpop.trf.xlu0
        %v1983 = vpop.trf.xlu0
        %v1984 = vrot.slane %v1552, 4
        %v1985 = vsel %vm964, %v1984, %v1488
        %v1986 = vrot.slane %v1488, 4
        %v1987 = vsel %vm964, %v1552, %v1986
        %v1989 = vunpack.c.l.s4 1983009808
        %v1990 = vunpack.c.0.s8 %v1989
        %v1991 = vperm.slane %v1985, %v1990
        %v1993 = vunpack.c.l.s4 1983009808
        %v1994 = vunpack.c.0.s8 %v1993
        %v1995 = vperm.slane %v1987, %v1994
        %v1996 = vrot.slane %v1584, 4
        %v1997 = vsel %vm964, %v1996, %v1520
        %v1998 = vrot.slane %v1520, 4
        %v1999 = vsel %vm964, %v1584, %v1998
        %v2001 = vunpack.c.l.s4 1983009808
        %v2002 = vunpack.c.0.s8 %v2001
        %v2003 = vperm.slane %v1997, %v2002
        %v2005 = vunpack.c.l.s4 1983009808
        %v2006 = vunpack.c.0.s8 %v2005
        %v2007 = vperm.slane %v1999, %v2006
        %v2008 = vrot.slane %v1680, 4
        %v2009 = vsel %vm964, %v2008, %v1616
        %v2010 = vrot.slane %v1616, 4
        %v2011 = vsel %vm964, %v1680, %v2010
        %v2013 = vunpack.c.l.s4 1983009808
        %v2014 = vunpack.c.0.s8 %v2013
        %v2015 = vperm.slane %v2009, %v2014
        %v2017 = vunpack.c.l.s4 1983009808
        %v2018 = vunpack.c.0.s8 %v2017
        %v2019 = vperm.slane %v2011, %v2018
        %v2020 = vrot.slane %v1712, 4
        %v2021 = vsel %vm964, %v2020, %v1648
        %v2022 = vrot.slane %v1648, 4
        %v2023 = vsel %vm964, %v1712, %v2022
        %v2025 = vunpack.c.l.s4 1983009808
        %v2026 = vunpack.c.0.s8 %v2025
        %v2027 = vperm.slane %v2021, %v2026
        %v2029 = vunpack.c.l.s4 1983009808
        %v2030 = vunpack.c.0.s8 %v2029
        %v2031 = vperm.slane %v2023, %v2030
        %v2032 = vrot.slane %v2003, 4
        %v2033 = vsel %vm964, %v2032, %v1991
        %v2034 = vrot.slane %v1991, 4
        %v2035 = vsel %vm964, %v2003, %v2034
        %v2037 = vunpack.c.l.s4 1934713408
        %v2038 = vunpack.c.0.s8 %v2037
        %v2039 = vperm.slane %v2033, %v2038
        %v2041 = vunpack.c.l.s4 1934713408
        %v2042 = vunpack.c.0.s8 %v2041
        %v2043 = vperm.slane %v2035, %v2042
        %v2044 = vrot.slane %v2007, 4
        %v2045 = vsel %vm964, %v2044, %v1995
        %v2046 = vrot.slane %v1995, 4
        %v2047 = vsel %vm964, %v2007, %v2046
        %v2049 = vunpack.c.l.s4 1934713408
        %v2050 = vunpack.c.0.s8 %v2049
        %v2051 = vperm.slane %v2045, %v2050
        %v2053 = vunpack.c.l.s4 1934713408
        %v2054 = vunpack.c.0.s8 %v2053
        %v2055 = vperm.slane %v2047, %v2054
        %v2056 = vrot.slane %v2027, 4
        %v2057 = vsel %vm964, %v2056, %v2015
        %v2058 = vrot.slane %v2015, 4
        %v2059 = vsel %vm964, %v2027, %v2058
        %v2061 = vunpack.c.l.s4 1934713408
        %v2062 = vunpack.c.0.s8 %v2061
        %v2063 = vperm.slane %v2057, %v2062
        %v2065 = vunpack.c.l.s4 1934713408
        %v2066 = vunpack.c.0.s8 %v2065
        %v2067 = vperm.slane %v2059, %v2066
        %v2068 = vrot.slane %v2031, 4
        %v2069 = vsel %vm964, %v2068, %v2019
        %v2070 = vrot.slane %v2019, 4
        %v2071 = vsel %vm964, %v2031, %v2070
        %v2073 = vunpack.c.l.s4 1934713408
        %v2074 = vunpack.c.0.s8 %v2073
        %v2075 = vperm.slane %v2069, %v2074
        %v2077 = vunpack.c.l.s4 1934713408
        %v2078 = vunpack.c.0.s8 %v2077
        %v2079 = vperm.slane %v2071, %v2078
        %v2080 = vrot.slane %v2063, 4
        %v2081 = vsel %vm964, %v2080, %v2039
        %v2082 = vrot.slane %v2039, 4
        %v2083 = vsel %vm964, %v2063, %v2082
        %v2084 = vrot.slane %v2067, 4
        %v2085 = vsel %vm964, %v2084, %v2043
        %v2086 = vrot.slane %v2043, 4
        %v2087 = vsel %vm964, %v2067, %v2086
        %v2088 = vrot.slane %v2075, 4
        %v2089 = vsel %vm964, %v2088, %v2051
        %v2090 = vrot.slane %v2051, 4
        %v2091 = vsel %vm964, %v2075, %v2090
        %v2092 = vrot.slane %v2079, 4
        %v2093 = vsel %vm964, %v2092, %v2055
        %v2094 = vrot.slane %v2055, 4
        %v2095 = vsel %vm964, %v2079, %v2094
        %v2096 = vrot.slane %v1808, 4
        %v2097 = vsel %vm964, %v2096, %v1744
        %v2098 = vrot.slane %v1744, 4
        %v2099 = vsel %vm964, %v1808, %v2098
        %v2101 = vunpack.c.l.s4 1983009808
        %v2102 = vunpack.c.0.s8 %v2101
        %v2103 = vperm.slane %v2097, %v2102
        %v2105 = vunpack.c.l.s4 1983009808
        %v2106 = vunpack.c.0.s8 %v2105
        %v2107 = vperm.slane %v2099, %v2106
        %v2108 = vrot.slane %v1840, 4
        %v2109 = vsel %vm964, %v2108, %v1776
        %v2110 = vrot.slane %v1776, 4
        %v2111 = vsel %vm964, %v1840, %v2110
        %v2113 = vunpack.c.l.s4 1983009808
        %v2114 = vunpack.c.0.s8 %v2113
        %v2115 = vperm.slane %v2109, %v2114
        %v2117 = vunpack.c.l.s4 1983009808
        %v2118 = vunpack.c.0.s8 %v2117
        %v2119 = vperm.slane %v2111, %v2118
        %v2120 = vrot.slane %v1936, 4
        %v2121 = vsel %vm964, %v2120, %v1872
        %v2122 = vrot.slane %v1872, 4
        %v2123 = vsel %vm964, %v1936, %v2122
        %v2125 = vunpack.c.l.s4 1983009808
        %v2126 = vunpack.c.0.s8 %v2125
        %v2127 = vperm.slane %v2121, %v2126
        %v2129 = vunpack.c.l.s4 1983009808
        %v2130 = vunpack.c.0.s8 %v2129
        %v2131 = vperm.slane %v2123, %v2130
        %v2132 = vrot.slane %v1968, 4
        %v2133 = vsel %vm964, %v2132, %v1904
        %v2134 = vrot.slane %v1904, 4
        %v2135 = vsel %vm964, %v1968, %v2134
        %v2137 = vunpack.c.l.s4 1983009808
        %v2138 = vunpack.c.0.s8 %v2137
        %v2139 = vperm.slane %v2133, %v2138
        %v2141 = vunpack.c.l.s4 1983009808
        %v2142 = vunpack.c.0.s8 %v2141
        %v2143 = vperm.slane %v2135, %v2142
        %v2144 = vrot.slane %v2115, 4
        %v2145 = vsel %vm964, %v2144, %v2103
        %v2146 = vrot.slane %v2103, 4
        %v2147 = vsel %vm964, %v2115, %v2146
        %v2149 = vunpack.c.l.s4 1934713408
        %v2150 = vunpack.c.0.s8 %v2149
        %v2151 = vperm.slane %v2145, %v2150
        %v2153 = vunpack.c.l.s4 1934713408
        %v2154 = vunpack.c.0.s8 %v2153
        %v2155 = vperm.slane %v2147, %v2154
        %v2156 = vrot.slane %v2119, 4
        %v2157 = vsel %vm964, %v2156, %v2107
        %v2158 = vrot.slane %v2107, 4
        %v2159 = vsel %vm964, %v2119, %v2158
        %v2161 = vunpack.c.l.s4 1934713408
        %v2162 = vunpack.c.0.s8 %v2161
        %v2163 = vperm.slane %v2157, %v2162
        %v2165 = vunpack.c.l.s4 1934713408
        %v2166 = vunpack.c.0.s8 %v2165
        %v2167 = vperm.slane %v2159, %v2166
        %v2168 = vrot.slane %v2139, 4
        %v2169 = vsel %vm964, %v2168, %v2127
        %v2170 = vrot.slane %v2127, 4
        %v2171 = vsel %vm964, %v2139, %v2170
        %v2173 = vunpack.c.l.s4 1934713408
        %v2174 = vunpack.c.0.s8 %v2173
        %v2175 = vperm.slane %v2169, %v2174
        %v2177 = vunpack.c.l.s4 1934713408
        %v2178 = vunpack.c.0.s8 %v2177
        %v2179 = vperm.slane %v2171, %v2178
        %v2180 = vrot.slane %v2143, 4
        %v2181 = vsel %vm964, %v2180, %v2131
        %v2182 = vrot.slane %v2131, 4
        %v2183 = vsel %vm964, %v2143, %v2182
        %v2185 = vunpack.c.l.s4 1934713408
        %v2186 = vunpack.c.0.s8 %v2185
        %v2187 = vperm.slane %v2181, %v2186
        %v2189 = vunpack.c.l.s4 1934713408
        %v2190 = vunpack.c.0.s8 %v2189
        %v2191 = vperm.slane %v2183, %v2190
        %v2192 = vrot.slane %v2175, 4
        %v2193 = vsel %vm964, %v2192, %v2151
        %v2194 = vrot.slane %v2151, 4
        %v2195 = vsel %vm964, %v2175, %v2194
        %v2196 = vrot.slane %v2179, 4
        %v2197 = vsel %vm964, %v2196, %v2155
        %v2198 = vrot.slane %v2155, 4
        %v2199 = vsel %vm964, %v2179, %v2198
        %v2200 = vrot.slane %v2187, 4
        %v2201 = vsel %vm964, %v2200, %v2163
        %v2202 = vrot.slane %v2163, 4
        %v2203 = vsel %vm964, %v2187, %v2202
        %v2204 = vrot.slane %v2191, 4
        %v2205 = vsel %vm964, %v2204, %v2167
        %v2206 = vrot.slane %v2167, 4
        %v2207 = vsel %vm964, %v2191, %v2206
        %v2208 = vrot.slane %v1553, 4
        %v2209 = vsel %vm964, %v2208, %v1489
        %v2210 = vrot.slane %v1489, 4
        %v2211 = vsel %vm964, %v1553, %v2210
        %v2213 = vunpack.c.l.s4 1983009808
        %v2214 = vunpack.c.0.s8 %v2213
        %v2215 = vperm.slane %v2209, %v2214
        %v2217 = vunpack.c.l.s4 1983009808
        %v2218 = vunpack.c.0.s8 %v2217
        %v2219 = vperm.slane %v2211, %v2218
        %v2220 = vrot.slane %v1585, 4
        %v2221 = vsel %vm964, %v2220, %v1521
        %v2222 = vrot.slane %v1521, 4
        %v2223 = vsel %vm964, %v1585, %v2222
        %v2225 = vunpack.c.l.s4 1983009808
        %v2226 = vunpack.c.0.s8 %v2225
        %v2227 = vperm.slane %v2221, %v2226
        %v2229 = vunpack.c.l.s4 1983009808
        %v2230 = vunpack.c.0.s8 %v2229
        %v2231 = vperm.slane %v2223, %v2230
        %v2232 = vrot.slane %v1681, 4
        %v2233 = vsel %vm964, %v2232, %v1617
        %v2234 = vrot.slane %v1617, 4
        %v2235 = vsel %vm964, %v1681, %v2234
        %v2237 = vunpack.c.l.s4 1983009808
        %v2238 = vunpack.c.0.s8 %v2237
        %v2239 = vperm.slane %v2233, %v2238
        %v2241 = vunpack.c.l.s4 1983009808
        %v2242 = vunpack.c.0.s8 %v2241
        %v2243 = vperm.slane %v2235, %v2242
        %v2244 = vrot.slane %v1713, 4
        %v2245 = vsel %vm964, %v2244, %v1649
        %v2246 = vrot.slane %v1649, 4
        %v2247 = vsel %vm964, %v1713, %v2246
        %v2249 = vunpack.c.l.s4 1983009808
        %v2250 = vunpack.c.0.s8 %v2249
        %v2251 = vperm.slane %v2245, %v2250
        %v2253 = vunpack.c.l.s4 1983009808
        %v2254 = vunpack.c.0.s8 %v2253
        %v2255 = vperm.slane %v2247, %v2254
        %v2256 = vrot.slane %v2227, 4
        %v2257 = vsel %vm964, %v2256, %v2215
        %v2258 = vrot.slane %v2215, 4
        %v2259 = vsel %vm964, %v2227, %v2258
        %v2261 = vunpack.c.l.s4 1934713408
        %v2262 = vunpack.c.0.s8 %v2261
        %v2263 = vperm.slane %v2257, %v2262
        %v2265 = vunpack.c.l.s4 1934713408
        %v2266 = vunpack.c.0.s8 %v2265
        %v2267 = vperm.slane %v2259, %v2266
        %v2268 = vrot.slane %v2231, 4
        %v2269 = vsel %vm964, %v2268, %v2219
        %v2270 = vrot.slane %v2219, 4
        %v2271 = vsel %vm964, %v2231, %v2270
        %v2273 = vunpack.c.l.s4 1934713408
        %v2274 = vunpack.c.0.s8 %v2273
        %v2275 = vperm.slane %v2269, %v2274
        %v2277 = vunpack.c.l.s4 1934713408
        %v2278 = vunpack.c.0.s8 %v2277
        %v2279 = vperm.slane %v2271, %v2278
        %v2280 = vrot.slane %v2251, 4
        %v2281 = vsel %vm964, %v2280, %v2239
        %v2282 = vrot.slane %v2239, 4
        %v2283 = vsel %vm964, %v2251, %v2282
        %v2285 = vunpack.c.l.s4 1934713408
        %v2286 = vunpack.c.0.s8 %v2285
        %v2287 = vperm.slane %v2281, %v2286
        %v2289 = vunpack.c.l.s4 1934713408
        %v2290 = vunpack.c.0.s8 %v2289
        %v2291 = vperm.slane %v2283, %v2290
        %v2292 = vrot.slane %v2255, 4
        %v2293 = vsel %vm964, %v2292, %v2243
        %v2294 = vrot.slane %v2243, 4
        %v2295 = vsel %vm964, %v2255, %v2294
        %v2297 = vunpack.c.l.s4 1934713408
        %v2298 = vunpack.c.0.s8 %v2297
        %v2299 = vperm.slane %v2293, %v2298
        %v2301 = vunpack.c.l.s4 1934713408
        %v2302 = vunpack.c.0.s8 %v2301
        %v2303 = vperm.slane %v2295, %v2302
        %v2304 = vrot.slane %v2287, 4
        %v2305 = vsel %vm964, %v2304, %v2263
        %v2306 = vrot.slane %v2263, 4
        %v2307 = vsel %vm964, %v2287, %v2306
        %v2308 = vrot.slane %v2291, 4
        %v2309 = vsel %vm964, %v2308, %v2267
        %v2310 = vrot.slane %v2267, 4
        %v2311 = vsel %vm964, %v2291, %v2310
        %v2312 = vrot.slane %v2299, 4
        %v2313 = vsel %vm964, %v2312, %v2275
        %v2314 = vrot.slane %v2275, 4
        %v2315 = vsel %vm964, %v2299, %v2314
        %v2316 = vrot.slane %v2303, 4
        %v2317 = vsel %vm964, %v2316, %v2279
        %v2318 = vrot.slane %v2279, 4
        %v2319 = vsel %vm964, %v2303, %v2318
        %v2320 = vrot.slane %v1809, 4
        %v2321 = vsel %vm964, %v2320, %v1745
        %v2322 = vrot.slane %v1745, 4
        %v2323 = vsel %vm964, %v1809, %v2322
        %v2325 = vunpack.c.l.s4 1983009808
        %v2326 = vunpack.c.0.s8 %v2325
        %v2327 = vperm.slane %v2321, %v2326
        %v2329 = vunpack.c.l.s4 1983009808
        %v2330 = vunpack.c.0.s8 %v2329
        %v2331 = vperm.slane %v2323, %v2330
        %v2332 = vrot.slane %v1841, 4
        %v2333 = vsel %vm964, %v2332, %v1777
        %v2334 = vrot.slane %v1777, 4
        %v2335 = vsel %vm964, %v1841, %v2334
        %v2337 = vunpack.c.l.s4 1983009808
        %v2338 = vunpack.c.0.s8 %v2337
        %v2339 = vperm.slane %v2333, %v2338
        %v2341 = vunpack.c.l.s4 1983009808
        %v2342 = vunpack.c.0.s8 %v2341
        %v2343 = vperm.slane %v2335, %v2342
        %v2344 = vrot.slane %v1937, 4
        %v2345 = vsel %vm964, %v2344, %v1873
        %v2346 = vrot.slane %v1873, 4
        %v2347 = vsel %vm964, %v1937, %v2346
        %v2349 = vunpack.c.l.s4 1983009808
        %v2350 = vunpack.c.0.s8 %v2349
        %v2351 = vperm.slane %v2345, %v2350
        %v2353 = vunpack.c.l.s4 1983009808
        %v2354 = vunpack.c.0.s8 %v2353
        %v2355 = vperm.slane %v2347, %v2354
        %v2356 = vrot.slane %v1969, 4
        %v2357 = vsel %vm964, %v2356, %v1905
        %v2358 = vrot.slane %v1905, 4
        %v2359 = vsel %vm964, %v1969, %v2358
        %v2361 = vunpack.c.l.s4 1983009808
        %v2362 = vunpack.c.0.s8 %v2361
        %v2363 = vperm.slane %v2357, %v2362
        %v2365 = vunpack.c.l.s4 1983009808
        %v2366 = vunpack.c.0.s8 %v2365
        %v2367 = vperm.slane %v2359, %v2366
        %v2368 = vrot.slane %v2339, 4
        %v2369 = vsel %vm964, %v2368, %v2327
        %v2370 = vrot.slane %v2327, 4
        %v2371 = vsel %vm964, %v2339, %v2370
        %v2373 = vunpack.c.l.s4 1934713408
        %v2374 = vunpack.c.0.s8 %v2373
        %v2375 = vperm.slane %v2369, %v2374
        %v2377 = vunpack.c.l.s4 1934713408
        %v2378 = vunpack.c.0.s8 %v2377
        %v2379 = vperm.slane %v2371, %v2378
        %v2380 = vrot.slane %v2343, 4
        %v2381 = vsel %vm964, %v2380, %v2331
        %v2382 = vrot.slane %v2331, 4
        %v2383 = vsel %vm964, %v2343, %v2382
        %v2385 = vunpack.c.l.s4 1934713408
        %v2386 = vunpack.c.0.s8 %v2385
        %v2387 = vperm.slane %v2381, %v2386
        %v2389 = vunpack.c.l.s4 1934713408
        %v2390 = vunpack.c.0.s8 %v2389
        %v2391 = vperm.slane %v2383, %v2390
        %v2392 = vrot.slane %v2363, 4
        %v2393 = vsel %vm964, %v2392, %v2351
        %v2394 = vrot.slane %v2351, 4
        %v2395 = vsel %vm964, %v2363, %v2394
        %v2397 = vunpack.c.l.s4 1934713408
        %v2398 = vunpack.c.0.s8 %v2397
        %v2399 = vperm.slane %v2393, %v2398
        %v2401 = vunpack.c.l.s4 1934713408
        %v2402 = vunpack.c.0.s8 %v2401
        %v2403 = vperm.slane %v2395, %v2402
        %v2404 = vrot.slane %v2367, 4
        %v2405 = vsel %vm964, %v2404, %v2355
        %v2406 = vrot.slane %v2355, 4
        %v2407 = vsel %vm964, %v2367, %v2406
        %v2409 = vunpack.c.l.s4 1934713408
        %v2410 = vunpack.c.0.s8 %v2409
        %v2411 = vperm.slane %v2405, %v2410
        %v2413 = vunpack.c.l.s4 1934713408
        %v2414 = vunpack.c.0.s8 %v2413
        %v2415 = vperm.slane %v2407, %v2414
        %v2416 = vrot.slane %v2399, 4
        %v2417 = vsel %vm964, %v2416, %v2375
        %v2418 = vrot.slane %v2375, 4
        %v2419 = vsel %vm964, %v2399, %v2418
        %v2420 = vrot.slane %v2403, 4
        %v2421 = vsel %vm964, %v2420, %v2379
        %v2422 = vrot.slane %v2379, 4
        %v2423 = vsel %vm964, %v2403, %v2422
        %v2424 = vrot.slane %v2411, 4
        %v2425 = vsel %vm964, %v2424, %v2387
        %v2426 = vrot.slane %v2387, 4
        %v2427 = vsel %vm964, %v2411, %v2426
        %v2428 = vrot.slane %v2415, 4
        %v2429 = vsel %vm964, %v2428, %v2391
        %v2430 = vrot.slane %v2391, 4
        %v2431 = vsel %vm964, %v2415, %v2430
        %2432 = vxpose.xlu0.b32.start [1/16] %v2081, 128
        %2433 = vxpose.xlu0.b32.cont [2/16] %v2193, 128
        %2434 = vxpose.xlu0.b32.cont [3/16] 0.0, 128
        %2435 = vxpose.xlu0.b32.cont [4/16] 0.0, 128
        %2436 = vxpose.xlu0.b32.cont [5/16] 0.0, 128
        %2437 = vxpose.xlu0.b32.cont [6/16] 0.0, 128
        %2438 = vxpose.xlu0.b32.cont [7/16] 0.0, 128
        %2439 = vxpose.xlu0.b32.cont [8/16] 0.0, 128
        %2440 = vxpose.xlu0.b32.cont [9/16] 0.0, 128
        %2441 = vxpose.xlu0.b32.cont [10/16] 0.0, 128
        %2442 = vxpose.xlu0.b32.cont [11/16] 0.0, 128
        %2443 = vxpose.xlu0.b32.cont [12/16] 0.0, 128
        %2444 = vxpose.xlu0.b32.cont [13/16] 0.0, 128
        %2445 = vxpose.xlu0.b32.cont [14/16] 0.0, 128
        %2446 = vxpose.xlu0.b32.cont [15/16] 0.0, 128
        %2447 = vxpose.xlu0.b32.end [16/16] 0.0, 128
        %v2448 = vpop.trf.xlu0
        %v2449 = vpop.trf.xlu0
        %v2450 = vpop.trf.xlu0
        %v2451 = vpop.trf.xlu0
        %v2452 = vpop.trf.xlu0
        %v2453 = vpop.trf.xlu0
        %v2454 = vpop.trf.xlu0
        %v2455 = vpop.trf.xlu0
        %v2456 = vpop.trf.xlu0
        %v2457 = vpop.trf.xlu0
        %v2458 = vpop.trf.xlu0
        %v2459 = vpop.trf.xlu0
        %v2460 = vpop.trf.xlu0
        %v2461 = vpop.trf.xlu0
        %v2462 = vpop.trf.xlu0
        %v2463 = vpop.trf.xlu0
        %2464 = vxpose.xlu0.b32.start [1/16] %v2083, 128
        %2465 = vxpose.xlu0.b32.cont [2/16] %v2195, 128
        %2466 = vxpose.xlu0.b32.cont [3/16] 0.0, 128
        %2467 = vxpose.xlu0.b32.cont [4/16] 0.0, 128
        %2468 = vxpose.xlu0.b32.cont [5/16] 0.0, 128
        %2469 = vxpose.xlu0.b32.cont [6/16] 0.0, 128
        %2470 = vxpose.xlu0.b32.cont [7/16] 0.0, 128
        %2471 = vxpose.xlu0.b32.cont [8/16] 0.0, 128
        %2472 = vxpose.xlu0.b32.cont [9/16] 0.0, 128
        %2473 = vxpose.xlu0.b32.cont [10/16] 0.0, 128
        %2474 = vxpose.xlu0.b32.cont [11/16] 0.0, 128
        %2475 = vxpose.xlu0.b32.cont [12/16] 0.0, 128
        %2476 = vxpose.xlu0.b32.cont [13/16] 0.0, 128
        %2477 = vxpose.xlu0.b32.cont [14/16] 0.0, 128
        %2478 = vxpose.xlu0.b32.cont [15/16] 0.0, 128
        %2479 = vxpose.xlu0.b32.end [16/16] 0.0, 128
        %v2480 = vpop.trf.xlu0
        %v2481 = vpop.trf.xlu0
        %v2482 = vpop.trf.xlu0
        %v2483 = vpop.trf.xlu0
        %v2484 = vpop.trf.xlu0
        %v2485 = vpop.trf.xlu0
        %v2486 = vpop.trf.xlu0
        %v2487 = vpop.trf.xlu0
        %v2488 = vpop.trf.xlu0
        %v2489 = vpop.trf.xlu0
        %v2490 = vpop.trf.xlu0
        %v2491 = vpop.trf.xlu0
        %v2492 = vpop.trf.xlu0
        %v2493 = vpop.trf.xlu0
        %v2494 = vpop.trf.xlu0
        %v2495 = vpop.trf.xlu0
        %2496 = vxpose.xlu0.b32.start [1/16] %v2085, 128
        %2497 = vxpose.xlu0.b32.cont [2/16] %v2197, 128
        %2498 = vxpose.xlu0.b32.cont [3/16] 0.0, 128
        %2499 = vxpose.xlu0.b32.cont [4/16] 0.0, 128
        %2500 = vxpose.xlu0.b32.cont [5/16] 0.0, 128
        %2501 = vxpose.xlu0.b32.cont [6/16] 0.0, 128
        %2502 = vxpose.xlu0.b32.cont [7/16] 0.0, 128
        %2503 = vxpose.xlu0.b32.cont [8/16] 0.0, 128
        %2504 = vxpose.xlu0.b32.cont [9/16] 0.0, 128
        %2505 = vxpose.xlu0.b32.cont [10/16] 0.0, 128
        %2506 = vxpose.xlu0.b32.cont [11/16] 0.0, 128
        %2507 = vxpose.xlu0.b32.cont [12/16] 0.0, 128
        %2508 = vxpose.xlu0.b32.cont [13/16] 0.0, 128
        %2509 = vxpose.xlu0.b32.cont [14/16] 0.0, 128
        %2510 = vxpose.xlu0.b32.cont [15/16] 0.0, 128
        %2511 = vxpose.xlu0.b32.end [16/16] 0.0, 128
        %v2512 = vpop.trf.xlu0
        %v2513 = vpop.trf.xlu0
        %v2514 = vpop.trf.xlu0
        %v2515 = vpop.trf.xlu0
        %v2516 = vpop.trf.xlu0
        %v2517 = vpop.trf.xlu0
        %v2518 = vpop.trf.xlu0
        %v2519 = vpop.trf.xlu0
        %v2520 = vpop.trf.xlu0
        %v2521 = vpop.trf.xlu0
        %v2522 = vpop.trf.xlu0
        %v2523 = vpop.trf.xlu0
        %v2524 = vpop.trf.xlu0
        %v2525 = vpop.trf.xlu0
        %v2526 = vpop.trf.xlu0
        %v2527 = vpop.trf.xlu0
        %2528 = vxpose.xlu0.b32.start [1/16] %v2087, 128
        %2529 = vxpose.xlu0.b32.cont [2/16] %v2199, 128
        %2530 = vxpose.xlu0.b32.cont [3/16] 0.0, 128
        %2531 = vxpose.xlu0.b32.cont [4/16] 0.0, 128
        %2532 = vxpose.xlu0.b32.cont [5/16] 0.0, 128
        %2533 = vxpose.xlu0.b32.cont [6/16] 0.0, 128
        %2534 = vxpose.xlu0.b32.cont [7/16] 0.0, 128
        %2535 = vxpose.xlu0.b32.cont [8/16] 0.0, 128
        %2536 = vxpose.xlu0.b32.cont [9/16] 0.0, 128
        %2537 = vxpose.xlu0.b32.cont [10/16] 0.0, 128
        %2538 = vxpose.xlu0.b32.cont [11/16] 0.0, 128
        %2539 = vxpose.xlu0.b32.cont [12/16] 0.0, 128
        %2540 = vxpose.xlu0.b32.cont [13/16] 0.0, 128
        %2541 = vxpose.xlu0.b32.cont [14/16] 0.0, 128
        %2542 = vxpose.xlu0.b32.cont [15/16] 0.0, 128
        %2543 = vxpose.xlu0.b32.end [16/16] 0.0, 128
        %v2544 = vpop.trf.xlu0
        %v2545 = vpop.trf.xlu0
        %v2546 = vpop.trf.xlu0
        %v2547 = vpop.trf.xlu0
        %v2548 = vpop.trf.xlu0
        %v2549 = vpop.trf.xlu0
        %v2550 = vpop.trf.xlu0
        %v2551 = vpop.trf.xlu0
        %v2552 = vpop.trf.xlu0
        %v2553 = vpop.trf.xlu0
        %v2554 = vpop.trf.xlu0
        %v2555 = vpop.trf.xlu0
        %v2556 = vpop.trf.xlu0
        %v2557 = vpop.trf.xlu0
        %v2558 = vpop.trf.xlu0
        %v2559 = vpop.trf.xlu0
        %2560 = vxpose.xlu0.b32.start [1/16] %v2089, 128
        %2561 = vxpose.xlu0.b32.cont [2/16] %v2201, 128
        %2562 = vxpose.xlu0.b32.cont [3/16] 0.0, 128
        %2563 = vxpose.xlu0.b32.cont [4/16] 0.0, 128
        %2564 = vxpose.xlu0.b32.cont [5/16] 0.0, 128
        %2565 = vxpose.xlu0.b32.cont [6/16] 0.0, 128
        %2566 = vxpose.xlu0.b32.cont [7/16] 0.0, 128
        %2567 = vxpose.xlu0.b32.cont [8/16] 0.0, 128
        %2568 = vxpose.xlu0.b32.cont [9/16] 0.0, 128
        %2569 = vxpose.xlu0.b32.cont [10/16] 0.0, 128
        %2570 = vxpose.xlu0.b32.cont [11/16] 0.0, 128
        %2571 = vxpose.xlu0.b32.cont [12/16] 0.0, 128
        %2572 = vxpose.xlu0.b32.cont [13/16] 0.0, 128
        %2573 = vxpose.xlu0.b32.cont [14/16] 0.0, 128
        %2574 = vxpose.xlu0.b32.cont [15/16] 0.0, 128
        %2575 = vxpose.xlu0.b32.end [16/16] 0.0, 128
        %v2576 = vpop.trf.xlu0
        %v2577 = vpop.trf.xlu0
        %v2578 = vpop.trf.xlu0
        %v2579 = vpop.trf.xlu0
        %v2580 = vpop.trf.xlu0
        %v2581 = vpop.trf.xlu0
        %v2582 = vpop.trf.xlu0
        %v2583 = vpop.trf.xlu0
        %v2584 = vpop.trf.xlu0
        %v2585 = vpop.trf.xlu0
        %v2586 = vpop.trf.xlu0
        %v2587 = vpop.trf.xlu0
        %v2588 = vpop.trf.xlu0
        %v2589 = vpop.trf.xlu0
        %v2590 = vpop.trf.xlu0
        %v2591 = vpop.trf.xlu0
        %2592 = vxpose.xlu0.b32.start [1/16] %v2091, 128
        %2593 = vxpose.xlu0.b32.cont [2/16] %v2203, 128
        %2594 = vxpose.xlu0.b32.cont [3/16] 0.0, 128
        %2595 = vxpose.xlu0.b32.cont [4/16] 0.0, 128
        %2596 = vxpose.xlu0.b32.cont [5/16] 0.0, 128
        %2597 = vxpose.xlu0.b32.cont [6/16] 0.0, 128
        %2598 = vxpose.xlu0.b32.cont [7/16] 0.0, 128
        %2599 = vxpose.xlu0.b32.cont [8/16] 0.0, 128
        %2600 = vxpose.xlu0.b32.cont [9/16] 0.0, 128
        %2601 = vxpose.xlu0.b32.cont [10/16] 0.0, 128
        %2602 = vxpose.xlu0.b32.cont [11/16] 0.0, 128
        %2603 = vxpose.xlu0.b32.cont [12/16] 0.0, 128
        %2604 = vxpose.xlu0.b32.cont [13/16] 0.0, 128
        %2605 = vxpose.xlu0.b32.cont [14/16] 0.0, 128
        %2606 = vxpose.xlu0.b32.cont [15/16] 0.0, 128
        %2607 = vxpose.xlu0.b32.end [16/16] 0.0, 128
        %v2608 = vpop.trf.xlu0
        %v2609 = vpop.trf.xlu0
        %v2610 = vpop.trf.xlu0
        %v2611 = vpop.trf.xlu0
        %v2612 = vpop.trf.xlu0
        %v2613 = vpop.trf.xlu0
        %v2614 = vpop.trf.xlu0
        %v2615 = vpop.trf.xlu0
        %v2616 = vpop.trf.xlu0
        %v2617 = vpop.trf.xlu0
        %v2618 = vpop.trf.xlu0
        %v2619 = vpop.trf.xlu0
        %v2620 = vpop.trf.xlu0
        %v2621 = vpop.trf.xlu0
        %v2622 = vpop.trf.xlu0
        %v2623 = vpop.trf.xlu0
        %2624 = vxpose.xlu0.b32.start [1/16] %v2093, 128
        %2625 = vxpose.xlu0.b32.cont [2/16] %v2205, 128
        %2626 = vxpose.xlu0.b32.cont [3/16] 0.0, 128
        %2627 = vxpose.xlu0.b32.cont [4/16] 0.0, 128
        %2628 = vxpose.xlu0.b32.cont [5/16] 0.0, 128
        %2629 = vxpose.xlu0.b32.cont [6/16] 0.0, 128
        %2630 = vxpose.xlu0.b32.cont [7/16] 0.0, 128
        %2631 = vxpose.xlu0.b32.cont [8/16] 0.0, 128
        %2632 = vxpose.xlu0.b32.cont [9/16] 0.0, 128
        %2633 = vxpose.xlu0.b32.cont [10/16] 0.0, 128
        %2634 = vxpose.xlu0.b32.cont [11/16] 0.0, 128
        %2635 = vxpose.xlu0.b32.cont [12/16] 0.0, 128
        %2636 = vxpose.xlu0.b32.cont [13/16] 0.0, 128
        %2637 = vxpose.xlu0.b32.cont [14/16] 0.0, 128
        %2638 = vxpose.xlu0.b32.cont [15/16] 0.0, 128
        %2639 = vxpose.xlu0.b32.end [16/16] 0.0, 128
        %v2640 = vpop.trf.xlu0
        %v2641 = vpop.trf.xlu0
        %v2642 = vpop.trf.xlu0
        %v2643 = vpop.trf.xlu0
        %v2644 = vpop.trf.xlu0
        %v2645 = vpop.trf.xlu0
        %v2646 = vpop.trf.xlu0
        %v2647 = vpop.trf.xlu0
        %v2648 = vpop.trf.xlu0
        %v2649 = vpop.trf.xlu0
        %v2650 = vpop.trf.xlu0
        %v2651 = vpop.trf.xlu0
        %v2652 = vpop.trf.xlu0
        %v2653 = vpop.trf.xlu0
        %v2654 = vpop.trf.xlu0
        %v2655 = vpop.trf.xlu0
        %2656 = vxpose.xlu0.b32.start [1/16] %v2095, 128
        %2657 = vxpose.xlu0.b32.cont [2/16] %v2207, 128
        %2658 = vxpose.xlu0.b32.cont [3/16] 0.0, 128
        %2659 = vxpose.xlu0.b32.cont [4/16] 0.0, 128
        %2660 = vxpose.xlu0.b32.cont [5/16] 0.0, 128
        %2661 = vxpose.xlu0.b32.cont [6/16] 0.0, 128
        %2662 = vxpose.xlu0.b32.cont [7/16] 0.0, 128
        %2663 = vxpose.xlu0.b32.cont [8/16] 0.0, 128
        %2664 = vxpose.xlu0.b32.cont [9/16] 0.0, 128
        %2665 = vxpose.xlu0.b32.cont [10/16] 0.0, 128
        %2666 = vxpose.xlu0.b32.cont [11/16] 0.0, 128
        %2667 = vxpose.xlu0.b32.cont [12/16] 0.0, 128
        %2668 = vxpose.xlu0.b32.cont [13/16] 0.0, 128
        %2669 = vxpose.xlu0.b32.cont [14/16] 0.0, 128
        %2670 = vxpose.xlu0.b32.cont [15/16] 0.0, 128
        %2671 = vxpose.xlu0.b32.end [16/16] 0.0, 128
        %v2672 = vpop.trf.xlu0
        %v2673 = vpop.trf.xlu0
        %v2674 = vpop.trf.xlu0
        %v2675 = vpop.trf.xlu0
        %v2676 = vpop.trf.xlu0
        %v2677 = vpop.trf.xlu0
        %v2678 = vpop.trf.xlu0
        %v2679 = vpop.trf.xlu0
        %v2680 = vpop.trf.xlu0
        %v2681 = vpop.trf.xlu0
        %v2682 = vpop.trf.xlu0
        %v2683 = vpop.trf.xlu0
        %v2684 = vpop.trf.xlu0
        %v2685 = vpop.trf.xlu0
        %v2686 = vpop.trf.xlu0
        %v2687 = vpop.trf.xlu0
        %2688 = vxpose.xlu0.b32.start [1/16] %v2305, 128
        %2689 = vxpose.xlu0.b32.cont [2/16] %v2417, 128
        %2690 = vxpose.xlu0.b32.cont [3/16] 0.0, 128
        %2691 = vxpose.xlu0.b32.cont [4/16] 0.0, 128
        %2692 = vxpose.xlu0.b32.cont [5/16] 0.0, 128
        %2693 = vxpose.xlu0.b32.cont [6/16] 0.0, 128
        %2694 = vxpose.xlu0.b32.cont [7/16] 0.0, 128
        %2695 = vxpose.xlu0.b32.cont [8/16] 0.0, 128
        %2696 = vxpose.xlu0.b32.cont [9/16] 0.0, 128
        %2697 = vxpose.xlu0.b32.cont [10/16] 0.0, 128
        %2698 = vxpose.xlu0.b32.cont [11/16] 0.0, 128
        %2699 = vxpose.xlu0.b32.cont [12/16] 0.0, 128
        %2700 = vxpose.xlu0.b32.cont [13/16] 0.0, 128
        %2701 = vxpose.xlu0.b32.cont [14/16] 0.0, 128
        %2702 = vxpose.xlu0.b32.cont [15/16] 0.0, 128
        %2703 = vxpose.xlu0.b32.end [16/16] 0.0, 128
        %v2704 = vpop.trf.xlu0
        %v2705 = vpop.trf.xlu0
        %v2706 = vpop.trf.xlu0
        %v2707 = vpop.trf.xlu0
        %v2708 = vpop.trf.xlu0
        %v2709 = vpop.trf.xlu0
        %v2710 = vpop.trf.xlu0
        %v2711 = vpop.trf.xlu0
        %v2712 = vpop.trf.xlu0
        %v2713 = vpop.trf.xlu0
        %v2714 = vpop.trf.xlu0
        %v2715 = vpop.trf.xlu0
        %v2716 = vpop.trf.xlu0
        %v2717 = vpop.trf.xlu0
        %v2718 = vpop.trf.xlu0
        %v2719 = vpop.trf.xlu0
        %2720 = vxpose.xlu0.b32.start [1/16] %v2307, 128
        %2721 = vxpose.xlu0.b32.cont [2/16] %v2419, 128
        %2722 = vxpose.xlu0.b32.cont [3/16] 0.0, 128
        %2723 = vxpose.xlu0.b32.cont [4/16] 0.0, 128
        %2724 = vxpose.xlu0.b32.cont [5/16] 0.0, 128
        %2725 = vxpose.xlu0.b32.cont [6/16] 0.0, 128
        %2726 = vxpose.xlu0.b32.cont [7/16] 0.0, 128
        %2727 = vxpose.xlu0.b32.cont [8/16] 0.0, 128
        %2728 = vxpose.xlu0.b32.cont [9/16] 0.0, 128
        %2729 = vxpose.xlu0.b32.cont [10/16] 0.0, 128
        %2730 = vxpose.xlu0.b32.cont [11/16] 0.0, 128
        %2731 = vxpose.xlu0.b32.cont [12/16] 0.0, 128
        %2732 = vxpose.xlu0.b32.cont [13/16] 0.0, 128
        %2733 = vxpose.xlu0.b32.cont [14/16] 0.0, 128
        %2734 = vxpose.xlu0.b32.cont [15/16] 0.0, 128
        %2735 = vxpose.xlu0.b32.end [16/16] 0.0, 128
        %v2736 = vpop.trf.xlu0
        %v2737 = vpop.trf.xlu0
        %v2738 = vpop.trf.xlu0
        %v2739 = vpop.trf.xlu0
        %v2740 = vpop.trf.xlu0
        %v2741 = vpop.trf.xlu0
        %v2742 = vpop.trf.xlu0
        %v2743 = vpop.trf.xlu0
        %v2744 = vpop.trf.xlu0
        %v2745 = vpop.trf.xlu0
        %v2746 = vpop.trf.xlu0
        %v2747 = vpop.trf.xlu0
        %v2748 = vpop.trf.xlu0
        %v2749 = vpop.trf.xlu0
        %v2750 = vpop.trf.xlu0
        %v2751 = vpop.trf.xlu0
        %2752 = vxpose.xlu0.b32.start [1/16] %v2309, 128
        %2753 = vxpose.xlu0.b32.cont [2/16] %v2421, 128
        %2754 = vxpose.xlu0.b32.cont [3/16] 0.0, 128
        %2755 = vxpose.xlu0.b32.cont [4/16] 0.0, 128
        %2756 = vxpose.xlu0.b32.cont [5/16] 0.0, 128
        %2757 = vxpose.xlu0.b32.cont [6/16] 0.0, 128
        %2758 = vxpose.xlu0.b32.cont [7/16] 0.0, 128
        %2759 = vxpose.xlu0.b32.cont [8/16] 0.0, 128
        %2760 = vxpose.xlu0.b32.cont [9/16] 0.0, 128
        %2761 = vxpose.xlu0.b32.cont [10/16] 0.0, 128
        %2762 = vxpose.xlu0.b32.cont [11/16] 0.0, 128
        %2763 = vxpose.xlu0.b32.cont [12/16] 0.0, 128
        %2764 = vxpose.xlu0.b32.cont [13/16] 0.0, 128
        %2765 = vxpose.xlu0.b32.cont [14/16] 0.0, 128
        %2766 = vxpose.xlu0.b32.cont [15/16] 0.0, 128
        %2767 = vxpose.xlu0.b32.end [16/16] 0.0, 128
        %v2768 = vpop.trf.xlu0
        %v2769 = vpop.trf.xlu0
        %v2770 = vpop.trf.xlu0
        %v2771 = vpop.trf.xlu0
        %v2772 = vpop.trf.xlu0
        %v2773 = vpop.trf.xlu0
        %v2774 = vpop.trf.xlu0
        %v2775 = vpop.trf.xlu0
        %v2776 = vpop.trf.xlu0
        %v2777 = vpop.trf.xlu0
        %v2778 = vpop.trf.xlu0
        %v2779 = vpop.trf.xlu0
        %v2780 = vpop.trf.xlu0
        %v2781 = vpop.trf.xlu0
        %v2782 = vpop.trf.xlu0
        %v2783 = vpop.trf.xlu0
        %2784 = vxpose.xlu0.b32.start [1/16] %v2311, 128
        %2785 = vxpose.xlu0.b32.cont [2/16] %v2423, 128
        %2786 = vxpose.xlu0.b32.cont [3/16] 0.0, 128
        %2787 = vxpose.xlu0.b32.cont [4/16] 0.0, 128
        %2788 = vxpose.xlu0.b32.cont [5/16] 0.0, 128
        %2789 = vxpose.xlu0.b32.cont [6/16] 0.0, 128
        %2790 = vxpose.xlu0.b32.cont [7/16] 0.0, 128
        %2791 = vxpose.xlu0.b32.cont [8/16] 0.0, 128
        %2792 = vxpose.xlu0.b32.cont [9/16] 0.0, 128
        %2793 = vxpose.xlu0.b32.cont [10/16] 0.0, 128
        %2794 = vxpose.xlu0.b32.cont [11/16] 0.0, 128
        %2795 = vxpose.xlu0.b32.cont [12/16] 0.0, 128
        %2796 = vxpose.xlu0.b32.cont [13/16] 0.0, 128
        %2797 = vxpose.xlu0.b32.cont [14/16] 0.0, 128
        %2798 = vxpose.xlu0.b32.cont [15/16] 0.0, 128
        %2799 = vxpose.xlu0.b32.end [16/16] 0.0, 128
        %v2800 = vpop.trf.xlu0
        %v2801 = vpop.trf.xlu0
        %v2802 = vpop.trf.xlu0
        %v2803 = vpop.trf.xlu0
        %v2804 = vpop.trf.xlu0
        %v2805 = vpop.trf.xlu0
        %v2806 = vpop.trf.xlu0
        %v2807 = vpop.trf.xlu0
        %v2808 = vpop.trf.xlu0
        %v2809 = vpop.trf.xlu0
        %v2810 = vpop.trf.xlu0
        %v2811 = vpop.trf.xlu0
        %v2812 = vpop.trf.xlu0
        %v2813 = vpop.trf.xlu0
        %v2814 = vpop.trf.xlu0
        %v2815 = vpop.trf.xlu0
        %2816 = vxpose.xlu0.b32.start [1/16] %v2313, 128
        %2817 = vxpose.xlu0.b32.cont [2/16] %v2425, 128
        %2818 = vxpose.xlu0.b32.cont [3/16] 0.0, 128
        %2819 = vxpose.xlu0.b32.cont [4/16] 0.0, 128
        %2820 = vxpose.xlu0.b32.cont [5/16] 0.0, 128
        %2821 = vxpose.xlu0.b32.cont [6/16] 0.0, 128
        %2822 = vxpose.xlu0.b32.cont [7/16] 0.0, 128
        %2823 = vxpose.xlu0.b32.cont [8/16] 0.0, 128
        %2824 = vxpose.xlu0.b32.cont [9/16] 0.0, 128
        %2825 = vxpose.xlu0.b32.cont [10/16] 0.0, 128
        %2826 = vxpose.xlu0.b32.cont [11/16] 0.0, 128
        %2827 = vxpose.xlu0.b32.cont [12/16] 0.0, 128
        %2828 = vxpose.xlu0.b32.cont [13/16] 0.0, 128
        %2829 = vxpose.xlu0.b32.cont [14/16] 0.0, 128
        %2830 = vxpose.xlu0.b32.cont [15/16] 0.0, 128
        %2831 = vxpose.xlu0.b32.end [16/16] 0.0, 128
        %v2832 = vpop.trf.xlu0
        %v2833 = vpop.trf.xlu0
        %v2834 = vpop.trf.xlu0
        %v2835 = vpop.trf.xlu0
        %v2836 = vpop.trf.xlu0
        %v2837 = vpop.trf.xlu0
        %v2838 = vpop.trf.xlu0
        %v2839 = vpop.trf.xlu0
        %v2840 = vpop.trf.xlu0
        %v2841 = vpop.trf.xlu0
        %v2842 = vpop.trf.xlu0
        %v2843 = vpop.trf.xlu0
        %v2844 = vpop.trf.xlu0
        %v2845 = vpop.trf.xlu0
        %v2846 = vpop.trf.xlu0
        %v2847 = vpop.trf.xlu0
        %2848 = vxpose.xlu0.b32.start [1/16] %v2315, 128
        %2849 = vxpose.xlu0.b32.cont [2/16] %v2427, 128
        %2850 = vxpose.xlu0.b32.cont [3/16] 0.0, 128
        %2851 = vxpose.xlu0.b32.cont [4/16] 0.0, 128
        %2852 = vxpose.xlu0.b32.cont [5/16] 0.0, 128
        %2853 = vxpose.xlu0.b32.cont [6/16] 0.0, 128
        %2854 = vxpose.xlu0.b32.cont [7/16] 0.0, 128
        %2855 = vxpose.xlu0.b32.cont [8/16] 0.0, 128
        %2856 = vxpose.xlu0.b32.cont [9/16] 0.0, 128
        %2857 = vxpose.xlu0.b32.cont [10/16] 0.0, 128
        %2858 = vxpose.xlu0.b32.cont [11/16] 0.0, 128
        %2859 = vxpose.xlu0.b32.cont [12/16] 0.0, 128
        %2860 = vxpose.xlu0.b32.cont [13/16] 0.0, 128
        %2861 = vxpose.xlu0.b32.cont [14/16] 0.0, 128
        %2862 = vxpose.xlu0.b32.cont [15/16] 0.0, 128
        %2863 = vxpose.xlu0.b32.end [16/16] 0.0, 128
        %v2864 = vpop.trf.xlu0
        %v2865 = vpop.trf.xlu0
        %v2866 = vpop.trf.xlu0
        %v2867 = vpop.trf.xlu0
        %v2868 = vpop.trf.xlu0
        %v2869 = vpop.trf.xlu0
        %v2870 = vpop.trf.xlu0
        %v2871 = vpop.trf.xlu0
        %v2872 = vpop.trf.xlu0
        %v2873 = vpop.trf.xlu0
        %v2874 = vpop.trf.xlu0
        %v2875 = vpop.trf.xlu0
        %v2876 = vpop.trf.xlu0
        %v2877 = vpop.trf.xlu0
        %v2878 = vpop.trf.xlu0
        %v2879 = vpop.trf.xlu0
        %2880 = vxpose.xlu0.b32.start [1/16] %v2317, 128
        %2881 = vxpose.xlu0.b32.cont [2/16] %v2429, 128
        %2882 = vxpose.xlu0.b32.cont [3/16] 0.0, 128
        %2883 = vxpose.xlu0.b32.cont [4/16] 0.0, 128
        %2884 = vxpose.xlu0.b32.cont [5/16] 0.0, 128
        %2885 = vxpose.xlu0.b32.cont [6/16] 0.0, 128
        %2886 = vxpose.xlu0.b32.cont [7/16] 0.0, 128
        %2887 = vxpose.xlu0.b32.cont [8/16] 0.0, 128
        %2888 = vxpose.xlu0.b32.cont [9/16] 0.0, 128
        %2889 = vxpose.xlu0.b32.cont [10/16] 0.0, 128
        %2890 = vxpose.xlu0.b32.cont [11/16] 0.0, 128
        %2891 = vxpose.xlu0.b32.cont [12/16] 0.0, 128
        %2892 = vxpose.xlu0.b32.cont [13/16] 0.0, 128
        %2893 = vxpose.xlu0.b32.cont [14/16] 0.0, 128
        %2894 = vxpose.xlu0.b32.cont [15/16] 0.0, 128
        %2895 = vxpose.xlu0.b32.end [16/16] 0.0, 128
        %v2896 = vpop.trf.xlu0
        %v2897 = vpop.trf.xlu0
        %v2898 = vpop.trf.xlu0
        %v2899 = vpop.trf.xlu0
        %v2900 = vpop.trf.xlu0
        %v2901 = vpop.trf.xlu0
        %v2902 = vpop.trf.xlu0
        %v2903 = vpop.trf.xlu0
        %v2904 = vpop.trf.xlu0
        %v2905 = vpop.trf.xlu0
        %v2906 = vpop.trf.xlu0
        %v2907 = vpop.trf.xlu0
        %v2908 = vpop.trf.xlu0
        %v2909 = vpop.trf.xlu0
        %v2910 = vpop.trf.xlu0
        %v2911 = vpop.trf.xlu0
        %2912 = vxpose.xlu0.b32.start [1/16] %v2319, 128
        %2913 = vxpose.xlu0.b32.cont [2/16] %v2431, 128
        %2914 = vxpose.xlu0.b32.cont [3/16] 0.0, 128
        %2915 = vxpose.xlu0.b32.cont [4/16] 0.0, 128
        %2916 = vxpose.xlu0.b32.cont [5/16] 0.0, 128
        %2917 = vxpose.xlu0.b32.cont [6/16] 0.0, 128
        %2918 = vxpose.xlu0.b32.cont [7/16] 0.0, 128
        %2919 = vxpose.xlu0.b32.cont [8/16] 0.0, 128
        %2920 = vxpose.xlu0.b32.cont [9/16] 0.0, 128
        %2921 = vxpose.xlu0.b32.cont [10/16] 0.0, 128
        %2922 = vxpose.xlu0.b32.cont [11/16] 0.0, 128
        %2923 = vxpose.xlu0.b32.cont [12/16] 0.0, 128
        %2924 = vxpose.xlu0.b32.cont [13/16] 0.0, 128
        %2925 = vxpose.xlu0.b32.cont [14/16] 0.0, 128
        %2926 = vxpose.xlu0.b32.cont [15/16] 0.0, 128
        %2927 = vxpose.xlu0.b32.end [16/16] 0.0, 128
        %v2928 = vpop.trf.xlu0
        %v2929 = vpop.trf.xlu0
        %v2930 = vpop.trf.xlu0
        %v2931 = vpop.trf.xlu0
        %v2932 = vpop.trf.xlu0
        %v2933 = vpop.trf.xlu0
        %v2934 = vpop.trf.xlu0
        %v2935 = vpop.trf.xlu0
        %v2936 = vpop.trf.xlu0
        %v2937 = vpop.trf.xlu0
        %v2938 = vpop.trf.xlu0
        %v2939 = vpop.trf.xlu0
        %v2940 = vpop.trf.xlu0
        %v2941 = vpop.trf.xlu0
        %v2942 = vpop.trf.xlu0
        %v2943 = vpop.trf.xlu0
        %v2944 = vrot.slane %v2512, 4
        %v2945 = vsel %vm964, %v2944, %v2448
        %v2946 = vrot.slane %v2448, 4
        %v2947 = vsel %vm964, %v2512, %v2946
        %v2949 = vunpack.c.l.s4 1983009808
        %v2950 = vunpack.c.0.s8 %v2949
        %v2951 = vperm.slane %v2945, %v2950
        %v2953 = vunpack.c.l.s4 1983009808
        %v2954 = vunpack.c.0.s8 %v2953
        %v2955 = vperm.slane %v2947, %v2954
        %v2956 = vrot.slane %v2544, 4
        %v2957 = vsel %vm964, %v2956, %v2480
        %v2958 = vrot.slane %v2480, 4
        %v2959 = vsel %vm964, %v2544, %v2958
        %v2961 = vunpack.c.l.s4 1983009808
        %v2962 = vunpack.c.0.s8 %v2961
        %v2963 = vperm.slane %v2957, %v2962
        %v2965 = vunpack.c.l.s4 1983009808
        %v2966 = vunpack.c.0.s8 %v2965
        %v2967 = vperm.slane %v2959, %v2966
        %v2968 = vrot.slane %v2640, 4
        %v2969 = vsel %vm964, %v2968, %v2576
        %v2970 = vrot.slane %v2576, 4
        %v2971 = vsel %vm964, %v2640, %v2970
        %v2973 = vunpack.c.l.s4 1983009808
        %v2974 = vunpack.c.0.s8 %v2973
        %v2975 = vperm.slane %v2969, %v2974
        %v2977 = vunpack.c.l.s4 1983009808
        %v2978 = vunpack.c.0.s8 %v2977
        %v2979 = vperm.slane %v2971, %v2978
        %v2980 = vrot.slane %v2672, 4
        %v2981 = vsel %vm964, %v2980, %v2608
        %v2982 = vrot.slane %v2608, 4
        %v2983 = vsel %vm964, %v2672, %v2982
        %v2985 = vunpack.c.l.s4 1983009808
        %v2986 = vunpack.c.0.s8 %v2985
        %v2987 = vperm.slane %v2981, %v2986
        %v2989 = vunpack.c.l.s4 1983009808
        %v2990 = vunpack.c.0.s8 %v2989
        %v2991 = vperm.slane %v2983, %v2990
        %v2992 = vrot.slane %v2963, 4
        %v2993 = vsel %vm964, %v2992, %v2951
        %v2994 = vrot.slane %v2951, 4
        %v2995 = vsel %vm964, %v2963, %v2994
        %v2997 = vunpack.c.l.s4 1934713408
        %v2998 = vunpack.c.0.s8 %v2997
        %v2999 = vperm.slane %v2993, %v2998
        %v3001 = vunpack.c.l.s4 1934713408
        %v3002 = vunpack.c.0.s8 %v3001
        %v3003 = vperm.slane %v2995, %v3002
        %v3004 = vrot.slane %v2967, 4
        %v3005 = vsel %vm964, %v3004, %v2955
        %v3006 = vrot.slane %v2955, 4
        %v3007 = vsel %vm964, %v2967, %v3006
        %v3009 = vunpack.c.l.s4 1934713408
        %v3010 = vunpack.c.0.s8 %v3009
        %v3011 = vperm.slane %v3005, %v3010
        %v3013 = vunpack.c.l.s4 1934713408
        %v3014 = vunpack.c.0.s8 %v3013
        %v3015 = vperm.slane %v3007, %v3014
        %v3016 = vrot.slane %v2987, 4
        %v3017 = vsel %vm964, %v3016, %v2975
        %v3018 = vrot.slane %v2975, 4
        %v3019 = vsel %vm964, %v2987, %v3018
        %v3021 = vunpack.c.l.s4 1934713408
        %v3022 = vunpack.c.0.s8 %v3021
        %v3023 = vperm.slane %v3017, %v3022
        %v3025 = vunpack.c.l.s4 1934713408
        %v3026 = vunpack.c.0.s8 %v3025
        %v3027 = vperm.slane %v3019, %v3026
        %v3028 = vrot.slane %v2991, 4
        %v3029 = vsel %vm964, %v3028, %v2979
        %v3030 = vrot.slane %v2979, 4
        %v3031 = vsel %vm964, %v2991, %v3030
        %v3033 = vunpack.c.l.s4 1934713408
        %v3034 = vunpack.c.0.s8 %v3033
        %v3035 = vperm.slane %v3029, %v3034
        %v3037 = vunpack.c.l.s4 1934713408
        %v3038 = vunpack.c.0.s8 %v3037
        %v3039 = vperm.slane %v3031, %v3038
        %v3040 = vrot.slane %v3023, 4
        %v3041 = vsel %vm964, %v3040, %v2999
        %v3042 = vrot.slane %v2999, 4
        %v3043 = vsel %vm964, %v3023, %v3042
        %v3044 = vrot.slane %v3027, 4
        %v3045 = vsel %vm964, %v3044, %v3003
        %v3046 = vrot.slane %v3003, 4
        %v3047 = vsel %vm964, %v3027, %v3046
        %v3048 = vrot.slane %v3035, 4
        %v3049 = vsel %vm964, %v3048, %v3011
        %v3050 = vrot.slane %v3011, 4
        %v3051 = vsel %vm964, %v3035, %v3050
        %v3052 = vrot.slane %v3039, 4
        %v3053 = vsel %vm964, %v3052, %v3015
        %v3054 = vrot.slane %v3015, 4
        %v3055 = vsel %vm964, %v3039, %v3054
        %v3056 = vrot.slane %v2768, 4
        %v3057 = vsel %vm964, %v3056, %v2704
        %v3058 = vrot.slane %v2704, 4
        %v3059 = vsel %vm964, %v2768, %v3058
        %v3061 = vunpack.c.l.s4 1983009808
        %v3062 = vunpack.c.0.s8 %v3061
        %v3063 = vperm.slane %v3057, %v3062
        %v3065 = vunpack.c.l.s4 1983009808
        %v3066 = vunpack.c.0.s8 %v3065
        %v3067 = vperm.slane %v3059, %v3066
        %v3068 = vrot.slane %v2800, 4
        %v3069 = vsel %vm964, %v3068, %v2736
        %v3070 = vrot.slane %v2736, 4
        %v3071 = vsel %vm964, %v2800, %v3070
        %v3073 = vunpack.c.l.s4 1983009808
        %v3074 = vunpack.c.0.s8 %v3073
        %v3075 = vperm.slane %v3069, %v3074
        %v3077 = vunpack.c.l.s4 1983009808
        %v3078 = vunpack.c.0.s8 %v3077
        %v3079 = vperm.slane %v3071, %v3078
        %v3080 = vrot.slane %v2896, 4
        %v3081 = vsel %vm964, %v3080, %v2832
        %v3082 = vrot.slane %v2832, 4
        %v3083 = vsel %vm964, %v2896, %v3082
        %v3085 = vunpack.c.l.s4 1983009808
        %v3086 = vunpack.c.0.s8 %v3085
        %v3087 = vperm.slane %v3081, %v3086
        %v3089 = vunpack.c.l.s4 1983009808
        %v3090 = vunpack.c.0.s8 %v3089
        %v3091 = vperm.slane %v3083, %v3090
        %v3092 = vrot.slane %v2928, 4
        %v3093 = vsel %vm964, %v3092, %v2864
        %v3094 = vrot.slane %v2864, 4
        %v3095 = vsel %vm964, %v2928, %v3094
        %v3097 = vunpack.c.l.s4 1983009808
        %v3098 = vunpack.c.0.s8 %v3097
        %v3099 = vperm.slane %v3093, %v3098
        %v3101 = vunpack.c.l.s4 1983009808
        %v3102 = vunpack.c.0.s8 %v3101
        %v3103 = vperm.slane %v3095, %v3102
        %v3104 = vrot.slane %v3075, 4
        %v3105 = vsel %vm964, %v3104, %v3063
        %v3106 = vrot.slane %v3063, 4
        %v3107 = vsel %vm964, %v3075, %v3106
        %v3109 = vunpack.c.l.s4 1934713408
        %v3110 = vunpack.c.0.s8 %v3109
        %v3111 = vperm.slane %v3105, %v3110
        %v3113 = vunpack.c.l.s4 1934713408
        %v3114 = vunpack.c.0.s8 %v3113
        %v3115 = vperm.slane %v3107, %v3114
        %v3116 = vrot.slane %v3079, 4
        %v3117 = vsel %vm964, %v3116, %v3067
        %v3118 = vrot.slane %v3067, 4
        %v3119 = vsel %vm964, %v3079, %v3118
        %v3121 = vunpack.c.l.s4 1934713408
        %v3122 = vunpack.c.0.s8 %v3121
        %v3123 = vperm.slane %v3117, %v3122
        %v3125 = vunpack.c.l.s4 1934713408
        %v3126 = vunpack.c.0.s8 %v3125
        %v3127 = vperm.slane %v3119, %v3126
        %v3128 = vrot.slane %v3099, 4
        %v3129 = vsel %vm964, %v3128, %v3087
        %v3130 = vrot.slane %v3087, 4
        %v3131 = vsel %vm964, %v3099, %v3130
        %v3133 = vunpack.c.l.s4 1934713408
        %v3134 = vunpack.c.0.s8 %v3133
        %v3135 = vperm.slane %v3129, %v3134
        %v3137 = vunpack.c.l.s4 1934713408
        %v3138 = vunpack.c.0.s8 %v3137
        %v3139 = vperm.slane %v3131, %v3138
        %v3140 = vrot.slane %v3103, 4
        %v3141 = vsel %vm964, %v3140, %v3091
        %v3142 = vrot.slane %v3091, 4
        %v3143 = vsel %vm964, %v3103, %v3142
        %v3145 = vunpack.c.l.s4 1934713408
        %v3146 = vunpack.c.0.s8 %v3145
        %v3147 = vperm.slane %v3141, %v3146
        %v3149 = vunpack.c.l.s4 1934713408
        %v3150 = vunpack.c.0.s8 %v3149
        %v3151 = vperm.slane %v3143, %v3150
        %v3152 = vrot.slane %v3135, 4
        %v3153 = vsel %vm964, %v3152, %v3111
        %v3154 = vrot.slane %v3111, 4
        %v3155 = vsel %vm964, %v3135, %v3154
        %v3156 = vrot.slane %v3139, 4
        %v3157 = vsel %vm964, %v3156, %v3115
        %v3158 = vrot.slane %v3115, 4
        %v3159 = vsel %vm964, %v3139, %v3158
        %v3160 = vrot.slane %v3147, 4
        %v3161 = vsel %vm964, %v3160, %v3123
        %v3162 = vrot.slane %v3123, 4
        %v3163 = vsel %vm964, %v3147, %v3162
        %v3164 = vrot.slane %v3151, 4
        %v3165 = vsel %vm964, %v3164, %v3127
        %v3166 = vrot.slane %v3127, 4
        %v3167 = vsel %vm964, %v3151, %v3166
        %vm3168 = vcmask 130048
        %v3170 = vsel %vm3168, %v1456, 0
        %v3173 = vsel %vm3168, %v1457, 0
        %3175 = vmatpush.msra.mxu0 0.0
        %3176 = vmatpush.msra.mxu0 0.0
        %3177 = vmatpush.msra.mxu0 0.0
        %3178 = vmatpush.msra.mxu0 0.0
        %3179 = vmatpush.msra.mxu0 0.0
        %3180 = vmatpush.msra.mxu0 0.0
        %3181 = vmatpush.msra.mxu0 0.0
        %3182 = vmatpush.msra.mxu0 0.0
        %3183 = vmatpush.msra.mxu0 0.0
        %3184 = vmatpush.msra.mxu0 0.0
        %3185 = vmatpush.msra.mxu0 0.0
        %3186 = vmatpush.msra.mxu0 0.0
        %3187 = vmatpush.msra.mxu0 0.0
        %3188 = vmatpush.msra.mxu0 0.0
        %3189 = vmatpush.msra.mxu0 %v3153
        %3190 = vmatpush.msra.mxu0 %v3041
        %3191 = vmatmul.f32.gmra.mxu0 %v3170
        %v3192 = vpop.f32.mrf.mxu0
        %v3193 = vadd.f32 0.0, %v3192
        %3194 = vmatmul.f32.gmra.mxu0 %v3173
        %v3195 = vpop.f32.mrf.mxu0
        %v3196 = vadd.f32 0.0, %v3195
        %3197 = vdwg.mxu0
        %v3199 = vsel %vm3168, %v1458, 0
        %v3202 = vsel %vm3168, %v1459, 0
        %3204 = vmatpush.msra.mxu0 0.0
        %3205 = vmatpush.msra.mxu0 0.0
        %3206 = vmatpush.msra.mxu0 0.0
        %3207 = vmatpush.msra.mxu0 0.0
        %3208 = vmatpush.msra.mxu0 0.0
        %3209 = vmatpush.msra.mxu0 0.0
        %3210 = vmatpush.msra.mxu0 0.0
        %3211 = vmatpush.msra.mxu0 0.0
        %3212 = vmatpush.msra.mxu0 0.0
        %3213 = vmatpush.msra.mxu0 0.0
        %3214 = vmatpush.msra.mxu0 0.0
        %3215 = vmatpush.msra.mxu0 0.0
        %3216 = vmatpush.msra.mxu0 0.0
        %3217 = vmatpush.msra.mxu0 0.0
        %3218 = vmatpush.msra.mxu0 %v3155
        %3219 = vmatpush.msra.mxu0 %v3043
        %3220 = vmatmul.f32.gmra.mxu0 %v3199
        %v3221 = vpop.f32.mrf.mxu0
        %v3222 = vadd.f32 0.0, %v3221
        %3223 = vmatmul.f32.gmra.mxu0 %v3202
        %v3224 = vpop.f32.mrf.mxu0
        %v3225 = vadd.f32 0.0, %v3224
        %3226 = vdwg.mxu0
        %v3228 = vsel %vm3168, %v1460, 0
        %v3231 = vsel %vm3168, %v1461, 0
        %3233 = vmatpush.msra.mxu0 0.0
        %3234 = vmatpush.msra.mxu0 0.0
        %3235 = vmatpush.msra.mxu0 0.0
        %3236 = vmatpush.msra.mxu0 0.0
        %3237 = vmatpush.msra.mxu0 0.0
        %3238 = vmatpush.msra.mxu0 0.0
        %3239 = vmatpush.msra.mxu0 0.0
        %3240 = vmatpush.msra.mxu0 0.0
        %3241 = vmatpush.msra.mxu0 0.0
        %3242 = vmatpush.msra.mxu0 0.0
        %3243 = vmatpush.msra.mxu0 0.0
        %3244 = vmatpush.msra.mxu0 0.0
        %3245 = vmatpush.msra.mxu0 0.0
        %3246 = vmatpush.msra.mxu0 0.0
        %3247 = vmatpush.msra.mxu0 %v3157
        %3248 = vmatpush.msra.mxu0 %v3045
        %3249 = vmatmul.f32.gmra.mxu0 %v3228
        %v3250 = vpop.f32.mrf.mxu0
        %v3251 = vadd.f32 0.0, %v3250
        %3252 = vmatmul.f32.gmra.mxu0 %v3231
        %v3253 = vpop.f32.mrf.mxu0
        %v3254 = vadd.f32 0.0, %v3253
        %3255 = vdwg.mxu0
        %v3257 = vsel %vm3168, %v1462, 0
        %v3260 = vsel %vm3168, %v1463, 0
        %3262 = vmatpush.msra.mxu0 0.0
        %3263 = vmatpush.msra.mxu0 0.0
        %3264 = vmatpush.msra.mxu0 0.0
        %3265 = vmatpush.msra.mxu0 0.0
        %3266 = vmatpush.msra.mxu0 0.0
        %3267 = vmatpush.msra.mxu0 0.0
        %3268 = vmatpush.msra.mxu0 0.0
        %3269 = vmatpush.msra.mxu0 0.0
        %3270 = vmatpush.msra.mxu0 0.0
        %3271 = vmatpush.msra.mxu0 0.0
        %3272 = vmatpush.msra.mxu0 0.0
        %3273 = vmatpush.msra.mxu0 0.0
        %3274 = vmatpush.msra.mxu0 0.0
        %3275 = vmatpush.msra.mxu0 0.0
        %3276 = vmatpush.msra.mxu0 %v3159
        %3277 = vmatpush.msra.mxu0 %v3047
        %3278 = vmatmul.f32.gmra.mxu0 %v3257
        %v3279 = vpop.f32.mrf.mxu0
        %v3280 = vadd.f32 0.0, %v3279
        %3281 = vmatmul.f32.gmra.mxu0 %v3260
        %v3282 = vpop.f32.mrf.mxu0
        %v3283 = vadd.f32 0.0, %v3282
        %3284 = vdwg.mxu0
        %v3286 = vsel %vm3168, %v1464, 0
        %v3289 = vsel %vm3168, %v1465, 0
        %3291 = vmatpush.msra.mxu0 0.0
        %3292 = vmatpush.msra.mxu0 0.0
        %3293 = vmatpush.msra.mxu0 0.0
        %3294 = vmatpush.msra.mxu0 0.0
        %3295 = vmatpush.msra.mxu0 0.0
        %3296 = vmatpush.msra.mxu0 0.0
        %3297 = vmatpush.msra.mxu0 0.0
        %3298 = vmatpush.msra.mxu0 0.0
        %3299 = vmatpush.msra.mxu0 0.0
        %3300 = vmatpush.msra.mxu0 0.0
        %3301 = vmatpush.msra.mxu0 0.0
        %3302 = vmatpush.msra.mxu0 0.0
        %3303 = vmatpush.msra.mxu0 0.0
        %3304 = vmatpush.msra.mxu0 0.0
        %3305 = vmatpush.msra.mxu0 %v3161
        %3306 = vmatpush.msra.mxu0 %v3049
        %3307 = vmatmul.f32.gmra.mxu0 %v3286
        %v3308 = vpop.f32.mrf.mxu0
        %v3309 = vadd.f32 0.0, %v3308
        %3310 = vmatmul.f32.gmra.mxu0 %v3289
        %v3311 = vpop.f32.mrf.mxu0
        %v3312 = vadd.f32 0.0, %v3311
        %3313 = vdwg.mxu0
        %v3315 = vsel %vm3168, %v1466, 0
        %v3318 = vsel %vm3168, %v1467, 0
        %3320 = vmatpush.msra.mxu0 0.0
        %3321 = vmatpush.msra.mxu0 0.0
        %3322 = vmatpush.msra.mxu0 0.0
        %3323 = vmatpush.msra.mxu0 0.0
        %3324 = vmatpush.msra.mxu0 0.0
        %3325 = vmatpush.msra.mxu0 0.0
        %3326 = vmatpush.msra.mxu0 0.0
        %3327 = vmatpush.msra.mxu0 0.0
        %3328 = vmatpush.msra.mxu0 0.0
        %3329 = vmatpush.msra.mxu0 0.0
        %3330 = vmatpush.msra.mxu0 0.0
        %3331 = vmatpush.msra.mxu0 0.0
        %3332 = vmatpush.msra.mxu0 0.0
        %3333 = vmatpush.msra.mxu0 0.0
        %3334 = vmatpush.msra.mxu0 %v3163
        %3335 = vmatpush.msra.mxu0 %v3051
        %3336 = vmatmul.f32.gmra.mxu0 %v3315
        %v3337 = vpop.f32.mrf.mxu0
        %v3338 = vadd.f32 0.0, %v3337
        %3339 = vmatmul.f32.gmra.mxu0 %v3318
        %v3340 = vpop.f32.mrf.mxu0
        %v3341 = vadd.f32 0.0, %v3340
        %3342 = vdwg.mxu0
        %v3344 = vsel %vm3168, %v1468, 0
        %v3347 = vsel %vm3168, %v1469, 0
        %3349 = vmatpush.msra.mxu0 0.0
        %3350 = vmatpush.msra.mxu0 0.0
        %3351 = vmatpush.msra.mxu0 0.0
        %3352 = vmatpush.msra.mxu0 0.0
        %3353 = vmatpush.msra.mxu0 0.0
        %3354 = vmatpush.msra.mxu0 0.0
        %3355 = vmatpush.msra.mxu0 0.0
        %3356 = vmatpush.msra.mxu0 0.0
        %3357 = vmatpush.msra.mxu0 0.0
        %3358 = vmatpush.msra.mxu0 0.0
        %3359 = vmatpush.msra.mxu0 0.0
        %3360 = vmatpush.msra.mxu0 0.0
        %3361 = vmatpush.msra.mxu0 0.0
        %3362 = vmatpush.msra.mxu0 0.0
        %3363 = vmatpush.msra.mxu0 %v3165
        %3364 = vmatpush.msra.mxu0 %v3053
        %3365 = vmatmul.f32.gmra.mxu0 %v3344
        %v3366 = vpop.f32.mrf.mxu0
        %v3367 = vadd.f32 0.0, %v3366
        %3368 = vmatmul.f32.gmra.mxu0 %v3347
        %v3369 = vpop.f32.mrf.mxu0
        %v3370 = vadd.f32 0.0, %v3369
        %3371 = vdwg.mxu0
        %v3373 = vsel %vm3168, %v1470, 0
        %v3376 = vsel %vm3168, %v1471, 0
        %3378 = vmatpush.msra.mxu0 0.0
        %3379 = vmatpush.msra.mxu0 0.0
        %3380 = vmatpush.msra.mxu0 0.0
        %3381 = vmatpush.msra.mxu0 0.0
        %3382 = vmatpush.msra.mxu0 0.0
        %3383 = vmatpush.msra.mxu0 0.0
        %3384 = vmatpush.msra.mxu0 0.0
        %3385 = vmatpush.msra.mxu0 0.0
        %3386 = vmatpush.msra.mxu0 0.0
        %3387 = vmatpush.msra.mxu0 0.0
        %3388 = vmatpush.msra.mxu0 0.0
        %3389 = vmatpush.msra.mxu0 0.0
        %3390 = vmatpush.msra.mxu0 0.0
        %3391 = vmatpush.msra.mxu0 0.0
        %3392 = vmatpush.msra.mxu0 %v3167
        %3393 = vmatpush.msra.mxu0 %v3055
        %3394 = vmatmul.f32.gmra.mxu0 %v3373
        %v3395 = vpop.f32.mrf.mxu0
        %v3396 = vadd.f32 0.0, %v3395
        %3397 = vmatmul.f32.gmra.mxu0 %v3376
        %v3398 = vpop.f32.mrf.mxu0
        %v3399 = vadd.f32 0.0, %v3398
        %3400 = vdwg.mxu0
        %v3401 = vld [vmem:[#allocation3] sm:$0xff]
        %v3402 = vsel %vm3168, %v3193, -inf
        %3403 = vmax.xlane.f32.xlu0 %v3402
        %v3404 = vpop.xlane.xlu0 %3403
        %v3405 = vsel %vm3168, %v3196, -inf
        %3406 = vmax.xlane.f32.xlu0 %v3405
        %v3407 = vpop.xlane.xlu0 %3406
        %v3408 = vsel %vm3168, %v3222, -inf
        %3409 = vmax.xlane.f32.xlu0 %v3408
        %v3410 = vpop.xlane.xlu0 %3409
        %v3411 = vsel %vm3168, %v3225, -inf
        %3412 = vmax.xlane.f32.xlu0 %v3411
        %v3413 = vpop.xlane.xlu0 %3412
        %v3414 = vsel %vm3168, %v3251, -inf
        %3415 = vmax.xlane.f32.xlu0 %v3414
        %v3416 = vpop.xlane.xlu0 %3415
        %v3417 = vsel %vm3168, %v3254, -inf
        %3418 = vmax.xlane.f32.xlu0 %v3417
        %v3419 = vpop.xlane.xlu0 %3418
        %v3420 = vsel %vm3168, %v3280, -inf
        %3421 = vmax.xlane.f32.xlu0 %v3420
        %v3422 = vpop.xlane.xlu0 %3421
        %v3423 = vsel %vm3168, %v3283, -inf
        %3424 = vmax.xlane.f32.xlu0 %v3423
        %v3425 = vpop.xlane.xlu0 %3424
        %v3426 = vsel %vm3168, %v3309, -inf
        %3427 = vmax.xlane.f32.xlu0 %v3426
        %v3428 = vpop.xlane.xlu0 %3427
        %v3429 = vsel %vm3168, %v3312, -inf
        %3430 = vmax.xlane.f32.xlu0 %v3429
        %v3431 = vpop.xlane.xlu0 %3430
        %v3432 = vsel %vm3168, %v3338, -inf
        %3433 = vmax.xlane.f32.xlu0 %v3432
        %v3434 = vpop.xlane.xlu0 %3433
        %v3435 = vsel %vm3168, %v3341, -inf
        %3436 = vmax.xlane.f32.xlu0 %v3435
        %v3437 = vpop.xlane.xlu0 %3436
        %v3438 = vsel %vm3168, %v3367, -inf
        %3439 = vmax.xlane.f32.xlu0 %v3438
        %v3440 = vpop.xlane.xlu0 %3439
        %v3441 = vsel %vm3168, %v3370, -inf
        %3442 = vmax.xlane.f32.xlu0 %v3441
        %v3443 = vpop.xlane.xlu0 %3442
        %v3444 = vsel %vm3168, %v3396, -inf
        %3445 = vmax.xlane.f32.xlu0 %v3444
        %v3446 = vpop.xlane.xlu0 %3445
        %v3447 = vsel %vm3168, %v3399, -inf
        %3448 = vmax.xlane.f32.xlu0 %v3447
        %v3449 = vpop.xlane.xlu0 %3448
        %v3466 = vlaneseq
        %v3467 = vand.u32 %v3466, 127
        %v3468 = vperm.slane %v3404, %v3467
        %v3469 = vadd.s32 %v3467, 4294967288
        %v3470 = vperm.slane %v3407, %v3469
        %vm3471 = vcmask 130112
        %v3472 = vsel %vm3471, %v3470, %v3468
        %v3473 = vperm.slane %v3410, %v3467
        %v3474 = vperm.slane %v3413, %v3469
        %v3475 = vsel %vm3471, %v3474, %v3473
        %v3476 = vperm.slane %v3416, %v3467
        %v3477 = vperm.slane %v3419, %v3469
        %v3478 = vsel %vm3471, %v3477, %v3476
        %v3479 = vperm.slane %v3422, %v3467
        %v3480 = vperm.slane %v3425, %v3469
        %v3481 = vsel %vm3471, %v3480, %v3479
        %v3482 = vperm.slane %v3428, %v3467
        %v3483 = vperm.slane %v3431, %v3469
        %v3484 = vsel %vm3471, %v3483, %v3482
        %v3485 = vperm.slane %v3434, %v3467
        %v3486 = vperm.slane %v3437, %v3469
        %v3487 = vsel %vm3471, %v3486, %v3485
        %v3488 = vperm.slane %v3440, %v3467
        %v3489 = vperm.slane %v3443, %v3469
        %v3490 = vsel %vm3471, %v3489, %v3488
        %v3491 = vperm.slane %v3446, %v3467
        %v3492 = vperm.slane %v3449, %v3469
        %v3493 = vsel %vm3471, %v3492, %v3491
        %vm3494 = vcmask 1041409
        %v3495 = vsel %vm3494, %v3475, %v3472
        %vm3496 = vcmask 1042434
        %v3497 = vsel %vm3496, %v3478, %v3495
        %vm3498 = vcmask 1043459
        %v3499 = vsel %vm3498, %v3481, %v3497
        %vm3500 = vcmask 1044484
        %v3501 = vsel %vm3500, %v3484, %v3499
        %vm3502 = vcmask 1045509
        %v3503 = vsel %vm3502, %v3487, %v3501
        %vm3504 = vcmask 1046534
        %v3505 = vsel %vm3504, %v3490, %v3503
        %vm3506 = vcmask 1047559
        %v3507 = vsel %vm3506, %v3493, %v3505
        %v3509 = vmax.f32 %v3401, %v3507
        %v3510 = vsub.f32 %v3401, %v3509
        %v3511 = vmul.f32 %v3510, 1.442695
        %v3512 = vpow.pop %v3511
        %v3513 = vperm.slane %v3509, 0
        %v3514 = vlaneseq
        %v3515 = vshrl.u32 %v3514, 7
        %3517 = vset.pattern.permute.xlu0 %v3515
        %3518 = vperm.xlu0 %3517, %v3513
        %v3519 = vpop.permute.xlu0 %3518
        %v3520 = vlaneseq
        %v3521 = vshrl.u32 %v3520, 7
        %v3522 = vadd.s32 %v3521, 8
        %3523 = vset.pattern.permute.xlu0 %v3522
        %3524 = vperm.xlu0 %3523, %v3513
        %v3525 = vpop.permute.xlu0 %3524
        %v3526 = vperm.slane %v3509, 1
        %v3527 = vlaneseq
        %v3528 = vshrl.u32 %v3527, 7
        %3530 = vset.pattern.permute.xlu0 %v3528
        %3531 = vperm.xlu0 %3530, %v3526
        %v3532 = vpop.permute.xlu0 %3531
        %v3533 = vlaneseq
        %v3534 = vshrl.u32 %v3533, 7
        %v3535 = vadd.s32 %v3534, 8
        %3536 = vset.pattern.permute.xlu0 %v3535
        %3537 = vperm.xlu0 %3536, %v3526
        %v3538 = vpop.permute.xlu0 %3537
        %v3539 = vperm.slane %v3509, 2
        %v3540 = vlaneseq
        %v3541 = vshrl.u32 %v3540, 7
        %3543 = vset.pattern.permute.xlu0 %v3541
        %3544 = vperm.xlu0 %3543, %v3539
        %v3545 = vpop.permute.xlu0 %3544
        %v3546 = vlaneseq
        %v3547 = vshrl.u32 %v3546, 7
        %v3548 = vadd.s32 %v3547, 8
        %3549 = vset.pattern.permute.xlu0 %v3548
        %3550 = vperm.xlu0 %3549, %v3539
        %v3551 = vpop.permute.xlu0 %3550
        %v3552 = vperm.slane %v3509, 3
        %v3553 = vlaneseq
        %v3554 = vshrl.u32 %v3553, 7
        %3556 = vset.pattern.permute.xlu0 %v3554
        %3557 = vperm.xlu0 %3556, %v3552
        %v3558 = vpop.permute.xlu0 %3557
        %v3559 = vlaneseq
        %v3560 = vshrl.u32 %v3559, 7
        %v3561 = vadd.s32 %v3560, 8
        %3562 = vset.pattern.permute.xlu0 %v3561
        %3563 = vperm.xlu0 %3562, %v3552
        %v3564 = vpop.permute.xlu0 %3563
        %v3565 = vperm.slane %v3509, 4
        %v3566 = vlaneseq
        %v3567 = vshrl.u32 %v3566, 7
        %3569 = vset.pattern.permute.xlu0 %v3567
        %3570 = vperm.xlu0 %3569, %v3565
        %v3571 = vpop.permute.xlu0 %3570
        %v3572 = vlaneseq
        %v3573 = vshrl.u32 %v3572, 7
        %v3574 = vadd.s32 %v3573, 8
        %3575 = vset.pattern.permute.xlu0 %v3574
        %3576 = vperm.xlu0 %3575, %v3565
        %v3577 = vpop.permute.xlu0 %3576
        %v3578 = vperm.slane %v3509, 5
        %v3579 = vlaneseq
        %v3580 = vshrl.u32 %v3579, 7
        %3582 = vset.pattern.permute.xlu0 %v3580
        %3583 = vperm.xlu0 %3582, %v3578
        %v3584 = vpop.permute.xlu0 %3583
        %v3585 = vlaneseq
        %v3586 = vshrl.u32 %v3585, 7
        %v3587 = vadd.s32 %v3586, 8
        %3588 = vset.pattern.permute.xlu0 %v3587
        %3589 = vperm.xlu0 %3588, %v3578
        %v3590 = vpop.permute.xlu0 %3589
        %v3591 = vperm.slane %v3509, 6
        %v3592 = vlaneseq
        %v3593 = vshrl.u32 %v3592, 7
        %3595 = vset.pattern.permute.xlu0 %v3593
        %3596 = vperm.xlu0 %3595, %v3591
        %v3597 = vpop.permute.xlu0 %3596
        %v3598 = vlaneseq
        %v3599 = vshrl.u32 %v3598, 7
        %v3600 = vadd.s32 %v3599, 8
        %3601 = vset.pattern.permute.xlu0 %v3600
        %3602 = vperm.xlu0 %3601, %v3591
        %v3603 = vpop.permute.xlu0 %3602
        %v3604 = vperm.slane %v3509, 7
        %v3605 = vlaneseq
        %v3606 = vshrl.u32 %v3605, 7
        %3608 = vset.pattern.permute.xlu0 %v3606
        %3609 = vperm.xlu0 %3608, %v3604
        %v3610 = vpop.permute.xlu0 %3609
        %v3611 = vlaneseq
        %v3612 = vshrl.u32 %v3611, 7
        %v3613 = vadd.s32 %v3612, 8
        %3614 = vset.pattern.permute.xlu0 %v3613
        %3615 = vperm.xlu0 %3614, %v3604
        %v3616 = vpop.permute.xlu0 %3615
        %v3617 = vsub.f32 %v3193, %v3519
        %v3618 = vsub.f32 %v3196, %v3525
        %v3619 = vsub.f32 %v3222, %v3532
        %v3620 = vsub.f32 %v3225, %v3538
        %v3621 = vsub.f32 %v3251, %v3545
        %v3622 = vsub.f32 %v3254, %v3551
        %v3623 = vsub.f32 %v3280, %v3558
        %v3624 = vsub.f32 %v3283, %v3564
        %v3625 = vsub.f32 %v3309, %v3571
        %v3626 = vsub.f32 %v3312, %v3577
        %v3627 = vsub.f32 %v3338, %v3584
        %v3628 = vsub.f32 %v3341, %v3590
        %v3629 = vsub.f32 %v3367, %v3597
        %v3630 = vsub.f32 %v3370, %v3603
        %v3631 = vsub.f32 %v3396, %v3610
        %v3632 = vsub.f32 %v3399, %v3616
        %v3633 = vmul.f32 %v3617, 1.442695
        %v3634 = vpow.pop %v3633
        %v3635 = vmul.f32 %v3618, 1.442695
        %v3636 = vpow.pop %v3635
        %v3637 = vmul.f32 %v3619, 1.442695
        %v3638 = vpow.pop %v3637
        %v3639 = vmul.f32 %v3620, 1.442695
        %v3640 = vpow.pop %v3639
        %v3641 = vmul.f32 %v3621, 1.442695
        %v3642 = vpow.pop %v3641
        %v3643 = vmul.f32 %v3622, 1.442695
        %v3644 = vpow.pop %v3643
        %v3645 = vmul.f32 %v3623, 1.442695
        %v3646 = vpow.pop %v3645
        %v3647 = vmul.f32 %v3624, 1.442695
        %v3648 = vpow.pop %v3647
        %v3649 = vmul.f32 %v3625, 1.442695
        %v3650 = vpow.pop %v3649
        %v3651 = vmul.f32 %v3626, 1.442695
        %v3652 = vpow.pop %v3651
        %v3653 = vmul.f32 %v3627, 1.442695
        %v3654 = vpow.pop %v3653
        %v3655 = vmul.f32 %v3628, 1.442695
        %v3656 = vpow.pop %v3655
        %v3657 = vmul.f32 %v3629, 1.442695
        %v3658 = vpow.pop %v3657
        %v3659 = vmul.f32 %v3630, 1.442695
        %v3660 = vpow.pop %v3659
        %v3661 = vmul.f32 %v3631, 1.442695
        %v3662 = vpow.pop %v3661
        %v3663 = vmul.f32 %v3632, 1.442695
        %v3664 = vpow.pop %v3663
        %v3665 = vld [vmem:[#allocation4] sm:$0xff]
        %v3666 = vmul.f32 %v3512, %v3665
        %v3667 = vsel %vm3168, %v3634, 0.0
        %3668 = vadd.xlane.f32.xlu0 %v3667
        %v3669 = vpop.xlane.xlu0 %3668
        %v3670 = vsel %vm3168, %v3636, 0.0
        %3671 = vadd.xlane.f32.xlu0 %v3670
        %v3672 = vpop.xlane.xlu0 %3671
        %v3673 = vsel %vm3168, %v3638, 0.0
        %3674 = vadd.xlane.f32.xlu0 %v3673
        %v3675 = vpop.xlane.xlu0 %3674
        %v3676 = vsel %vm3168, %v3640, 0.0
        %3677 = vadd.xlane.f32.xlu0 %v3676
        %v3678 = vpop.xlane.xlu0 %3677
        %v3679 = vsel %vm3168, %v3642, 0.0
        %3680 = vadd.xlane.f32.xlu0 %v3679
        %v3681 = vpop.xlane.xlu0 %3680
        %v3682 = vsel %vm3168, %v3644, 0.0
        %3683 = vadd.xlane.f32.xlu0 %v3682
        %v3684 = vpop.xlane.xlu0 %3683
        %v3685 = vsel %vm3168, %v3646, 0.0
        %3686 = vadd.xlane.f32.xlu0 %v3685
        %v3687 = vpop.xlane.xlu0 %3686
        %v3688 = vsel %vm3168, %v3648, 0.0
        %3689 = vadd.xlane.f32.xlu0 %v3688
        %v3690 = vpop.xlane.xlu0 %3689
        %v3691 = vsel %vm3168, %v3650, 0.0
        %3692 = vadd.xlane.f32.xlu0 %v3691
        %v3693 = vpop.xlane.xlu0 %3692
        %v3694 = vsel %vm3168, %v3652, 0.0
        %3695 = vadd.xlane.f32.xlu0 %v3694
        %v3696 = vpop.xlane.xlu0 %3695
        %v3697 = vsel %vm3168, %v3654, 0.0
        %3698 = vadd.xlane.f32.xlu0 %v3697
        %v3699 = vpop.xlane.xlu0 %3698
        %v3700 = vsel %vm3168, %v3656, 0.0
        %3701 = vadd.xlane.f32.xlu0 %v3700
        %v3702 = vpop.xlane.xlu0 %3701
        %v3703 = vsel %vm3168, %v3658, 0.0
        %3704 = vadd.xlane.f32.xlu0 %v3703
        %v3705 = vpop.xlane.xlu0 %3704
        %v3706 = vsel %vm3168, %v3660, 0.0
        %3707 = vadd.xlane.f32.xlu0 %v3706
        %v3708 = vpop.xlane.xlu0 %3707
        %v3709 = vsel %vm3168, %v3662, 0.0
        %3710 = vadd.xlane.f32.xlu0 %v3709
        %v3711 = vpop.xlane.xlu0 %3710
        %v3712 = vsel %vm3168, %v3664, 0.0
        %3713 = vadd.xlane.f32.xlu0 %v3712
        %v3714 = vpop.xlane.xlu0 %3713
        %v3731 = vperm.slane %v3669, %v3467
        %v3732 = vperm.slane %v3672, %v3469
        %v3733 = vsel %vm3471, %v3732, %v3731
        %v3734 = vperm.slane %v3675, %v3467
        %v3735 = vperm.slane %v3678, %v3469
        %v3736 = vsel %vm3471, %v3735, %v3734
        %v3737 = vperm.slane %v3681, %v3467
        %v3738 = vperm.slane %v3684, %v3469
        %v3739 = vsel %vm3471, %v3738, %v3737
        %v3740 = vperm.slane %v3687, %v3467
        %v3741 = vperm.slane %v3690, %v3469
        %v3742 = vsel %vm3471, %v3741, %v3740
        %v3743 = vperm.slane %v3693, %v3467
        %v3744 = vperm.slane %v3696, %v3469
        %v3745 = vsel %vm3471, %v3744, %v3743
        %v3746 = vperm.slane %v3699, %v3467
        %v3747 = vperm.slane %v3702, %v3469
        %v3748 = vsel %vm3471, %v3747, %v3746
        %v3749 = vperm.slane %v3705, %v3467
        %v3750 = vperm.slane %v3708, %v3469
        %v3751 = vsel %vm3471, %v3750, %v3749
        %v3752 = vperm.slane %v3711, %v3467
        %v3753 = vperm.slane %v3714, %v3469
        %v3754 = vsel %vm3471, %v3753, %v3752
        %v3755 = vsel %vm3494, %v3736, %v3733
        %v3756 = vsel %vm3496, %v3739, %v3755
        %v3757 = vsel %vm3498, %v3742, %v3756
        %v3758 = vsel %vm3500, %v3745, %v3757
        %v3759 = vsel %vm3502, %v3748, %v3758
        %v3760 = vsel %vm3504, %v3751, %v3759
        %v3761 = vsel %vm3506, %v3754, %v3760
        %v3763 = vadd.f32 %v3666, %v3761
        %3764 = vst.msk [vmem:[#allocation4] sm:$0xff] %vm3168, %v3763
        %v3765 = vperm.slane %v3512, 0
        %v3766 = vlaneseq
        %v3767 = vshrl.u32 %v3766, 7
        %3769 = vset.pattern.permute.xlu0 %v3767
        %3770 = vperm.xlu0 %3769, %v3765
        %v3771 = vpop.permute.xlu0 %3770
        %v3772 = vlaneseq
        %v3773 = vshrl.u32 %v3772, 7
        %v3774 = vadd.s32 %v3773, 8
        %3775 = vset.pattern.permute.xlu0 %v3774
        %3776 = vperm.xlu0 %3775, %v3765
        %v3777 = vpop.permute.xlu0 %3776
        %v3778 = vperm.slane %v3512, 1
        %v3779 = vlaneseq
        %v3780 = vshrl.u32 %v3779, 7
        %3782 = vset.pattern.permute.xlu0 %v3780
        %3783 = vperm.xlu0 %3782, %v3778
        %v3784 = vpop.permute.xlu0 %3783
        %v3785 = vlaneseq
        %v3786 = vshrl.u32 %v3785, 7
        %v3787 = vadd.s32 %v3786, 8
        %3788 = vset.pattern.permute.xlu0 %v3787
        %3789 = vperm.xlu0 %3788, %v3778
        %v3790 = vpop.permute.xlu0 %3789
        %v3791 = vperm.slane %v3512, 2
        %v3792 = vlaneseq
        %v3793 = vshrl.u32 %v3792, 7
        %3795 = vset.pattern.permute.xlu0 %v3793
        %3796 = vperm.xlu0 %3795, %v3791
        %v3797 = vpop.permute.xlu0 %3796
        %v3798 = vlaneseq
        %v3799 = vshrl.u32 %v3798, 7
        %v3800 = vadd.s32 %v3799, 8
        %3801 = vset.pattern.permute.xlu0 %v3800
        %3802 = vperm.xlu0 %3801, %v3791
        %v3803 = vpop.permute.xlu0 %3802
        %v3804 = vperm.slane %v3512, 3
        %v3805 = vlaneseq
        %v3806 = vshrl.u32 %v3805, 7
        %3808 = vset.pattern.permute.xlu0 %v3806
        %3809 = vperm.xlu0 %3808, %v3804
        %v3810 = vpop.permute.xlu0 %3809
        %v3811 = vlaneseq
        %v3812 = vshrl.u32 %v3811, 7
        %v3813 = vadd.s32 %v3812, 8
        %3814 = vset.pattern.permute.xlu0 %v3813
        %3815 = vperm.xlu0 %3814, %v3804
        %v3816 = vpop.permute.xlu0 %3815
        %v3817 = vperm.slane %v3512, 4
        %v3818 = vlaneseq
        %v3819 = vshrl.u32 %v3818, 7
        %3821 = vset.pattern.permute.xlu0 %v3819
        %3822 = vperm.xlu0 %3821, %v3817
        %v3823 = vpop.permute.xlu0 %3822
        %v3824 = vlaneseq
        %v3825 = vshrl.u32 %v3824, 7
        %v3826 = vadd.s32 %v3825, 8
        %3827 = vset.pattern.permute.xlu0 %v3826
        %3828 = vperm.xlu0 %3827, %v3817
        %v3829 = vpop.permute.xlu0 %3828
        %v3830 = vperm.slane %v3512, 5
        %v3831 = vlaneseq
        %v3832 = vshrl.u32 %v3831, 7
        %3834 = vset.pattern.permute.xlu0 %v3832
        %3835 = vperm.xlu0 %3834, %v3830
        %v3836 = vpop.permute.xlu0 %3835
        %v3837 = vlaneseq
        %v3838 = vshrl.u32 %v3837, 7
        %v3839 = vadd.s32 %v3838, 8
        %3840 = vset.pattern.permute.xlu0 %v3839
        %3841 = vperm.xlu0 %3840, %v3830
        %v3842 = vpop.permute.xlu0 %3841
        %v3843 = vperm.slane %v3512, 6
        %v3844 = vlaneseq
        %v3845 = vshrl.u32 %v3844, 7
        %3847 = vset.pattern.permute.xlu0 %v3845
        %3848 = vperm.xlu0 %3847, %v3843
        %v3849 = vpop.permute.xlu0 %3848
        %v3850 = vlaneseq
        %v3851 = vshrl.u32 %v3850, 7
        %v3852 = vadd.s32 %v3851, 8
        %3853 = vset.pattern.permute.xlu0 %v3852
        %3854 = vperm.xlu0 %3853, %v3843
        %v3855 = vpop.permute.xlu0 %3854
        %v3856 = vperm.slane %v3512, 7
        %v3857 = vlaneseq
        %v3858 = vshrl.u32 %v3857, 7
        %3860 = vset.pattern.permute.xlu0 %v3858
        %3861 = vperm.xlu0 %3860, %v3856
        %v3862 = vpop.permute.xlu0 %3861
        %v3863 = vlaneseq
        %v3864 = vshrl.u32 %v3863, 7
        %v3865 = vadd.s32 %v3864, 8
        %3866 = vset.pattern.permute.xlu0 %v3865
        %3867 = vperm.xlu0 %3866, %v3856
        %v3868 = vpop.permute.xlu0 %3867
        %v3869 = vld [vmem:[#allocation5] sm:$0xff]
        %v3870 = vld [vmem:[#allocation5 + $0x8] sm:$0xff]
        %v3871 = vld [vmem:[#allocation5 + $0x10] sm:$0xff]
        %v3872 = vld [vmem:[#allocation5 + $0x18] sm:$0xff]
        %v3873 = vld [vmem:[#allocation5 + $0x20] sm:$0xff]
        %v3874 = vld [vmem:[#allocation5 + $0x28] sm:$0xff]
        %v3875 = vld [vmem:[#allocation5 + $0x30] sm:$0xff]
        %v3876 = vld [vmem:[#allocation5 + $0x38] sm:$0xff]
        %v3877 = vld [vmem:[#allocation5 + $0x40] sm:$0xff]
        %v3878 = vld [vmem:[#allocation5 + $0x48] sm:$0xff]
        %v3879 = vld [vmem:[#allocation5 + $0x50] sm:$0xff]
        %v3880 = vld [vmem:[#allocation5 + $0x58] sm:$0xff]
        %v3881 = vld [vmem:[#allocation5 + $0x60] sm:$0xff]
        %v3882 = vld [vmem:[#allocation5 + $0x68] sm:$0xff]
        %v3883 = vld [vmem:[#allocation5 + $0x70] sm:$0xff]
        %v3884 = vld [vmem:[#allocation5 + $0x78] sm:$0xff]
        %v3885 = vmul.f32 %v3771, %v3869
        %v3886 = vmul.f32 %v3777, %v3870
        %v3887 = vmul.f32 %v3784, %v3871
        %v3888 = vmul.f32 %v3790, %v3872
        %v3889 = vmul.f32 %v3797, %v3873
        %v3890 = vmul.f32 %v3803, %v3874
        %v3891 = vmul.f32 %v3810, %v3875
        %v3892 = vmul.f32 %v3816, %v3876
        %v3893 = vmul.f32 %v3823, %v3877
        %v3894 = vmul.f32 %v3829, %v3878
        %v3895 = vmul.f32 %v3836, %v3879
        %v3896 = vmul.f32 %v3842, %v3880
        %v3897 = vmul.f32 %v3849, %v3881
        %v3898 = vmul.f32 %v3855, %v3882
        %v3899 = vmul.f32 %v3862, %v3883
        %v3900 = vmul.f32 %v3868, %v3884
        %v3901 = vrot.slane %v1333, 4
        %v3902 = vsel %vm964, %v3901, %v1329
        %v3903 = vrot.slane %v1329, 4
        %v3904 = vsel %vm964, %v1333, %v3903
        %v3906 = vunpack.c.l.s4 1983009808
        %v3907 = vunpack.c.0.s8 %v3906
        %v3908 = vperm.slane %v3902, %v3907
        %v3910 = vunpack.c.l.s4 1983009808
        %v3911 = vunpack.c.0.s8 %v3910
        %v3912 = vperm.slane %v3904, %v3911
        %v3913 = vrot.slane %v1335, 4
        %v3914 = vsel %vm964, %v3913, %v1331
        %v3915 = vrot.slane %v1331, 4
        %v3916 = vsel %vm964, %v1335, %v3915
        %v3918 = vunpack.c.l.s4 1983009808
        %v3919 = vunpack.c.0.s8 %v3918
        %v3920 = vperm.slane %v3914, %v3919
        %v3922 = vunpack.c.l.s4 1983009808
        %v3923 = vunpack.c.0.s8 %v3922
        %v3924 = vperm.slane %v3916, %v3923
        %v3925 = vrot.slane %v1341, 4
        %v3926 = vsel %vm964, %v3925, %v1337
        %v3927 = vrot.slane %v1337, 4
        %v3928 = vsel %vm964, %v1341, %v3927
        %v3930 = vunpack.c.l.s4 1983009808
        %v3931 = vunpack.c.0.s8 %v3930
        %v3932 = vperm.slane %v3926, %v3931
        %v3934 = vunpack.c.l.s4 1983009808
        %v3935 = vunpack.c.0.s8 %v3934
        %v3936 = vperm.slane %v3928, %v3935
        %v3937 = vrot.slane %v1343, 4
        %v3938 = vsel %vm964, %v3937, %v1339
        %v3939 = vrot.slane %v1339, 4
        %v3940 = vsel %vm964, %v1343, %v3939
        %v3942 = vunpack.c.l.s4 1983009808
        %v3943 = vunpack.c.0.s8 %v3942
        %v3944 = vperm.slane %v3938, %v3943
        %v3946 = vunpack.c.l.s4 1983009808
        %v3947 = vunpack.c.0.s8 %v3946
        %v3948 = vperm.slane %v3940, %v3947
        %v3949 = vrot.slane %v3920, 4
        %v3950 = vsel %vm964, %v3949, %v3908
        %v3951 = vrot.slane %v3908, 4
        %v3952 = vsel %vm964, %v3920, %v3951
        %v3954 = vunpack.c.l.s4 1934713408
        %v3955 = vunpack.c.0.s8 %v3954
        %v3956 = vperm.slane %v3950, %v3955
        %v3958 = vunpack.c.l.s4 1934713408
        %v3959 = vunpack.c.0.s8 %v3958
        %v3960 = vperm.slane %v3952, %v3959
        %v3961 = vrot.slane %v3924, 4
        %v3962 = vsel %vm964, %v3961, %v3912
        %v3963 = vrot.slane %v3912, 4
        %v3964 = vsel %vm964, %v3924, %v3963
        %v3966 = vunpack.c.l.s4 1934713408
        %v3967 = vunpack.c.0.s8 %v3966
        %v3968 = vperm.slane %v3962, %v3967
        %v3970 = vunpack.c.l.s4 1934713408
        %v3971 = vunpack.c.0.s8 %v3970
        %v3972 = vperm.slane %v3964, %v3971
        %v3973 = vrot.slane %v3944, 4
        %v3974 = vsel %vm964, %v3973, %v3932
        %v3975 = vrot.slane %v3932, 4
        %v3976 = vsel %vm964, %v3944, %v3975
        %v3978 = vunpack.c.l.s4 1934713408
        %v3979 = vunpack.c.0.s8 %v3978
        %v3980 = vperm.slane %v3974, %v3979
        %v3982 = vunpack.c.l.s4 1934713408
        %v3983 = vunpack.c.0.s8 %v3982
        %v3984 = vperm.slane %v3976, %v3983
        %v3985 = vrot.slane %v3948, 4
        %v3986 = vsel %vm964, %v3985, %v3936
        %v3987 = vrot.slane %v3936, 4
        %v3988 = vsel %vm964, %v3948, %v3987
        %v3990 = vunpack.c.l.s4 1934713408
        %v3991 = vunpack.c.0.s8 %v3990
        %v3992 = vperm.slane %v3986, %v3991
        %v3994 = vunpack.c.l.s4 1934713408
        %v3995 = vunpack.c.0.s8 %v3994
        %v3996 = vperm.slane %v3988, %v3995
        %v3997 = vrot.slane %v3980, 4
        %v3998 = vsel %vm964, %v3997, %v3956
        %v3999 = vrot.slane %v3956, 4
        %v4000 = vsel %vm964, %v3980, %v3999
        %v4001 = vrot.slane %v3984, 4
        %v4002 = vsel %vm964, %v4001, %v3960
        %v4003 = vrot.slane %v3960, 4
        %v4004 = vsel %vm964, %v3984, %v4003
        %v4005 = vrot.slane %v3992, 4
        %v4006 = vsel %vm964, %v4005, %v3968
        %v4007 = vrot.slane %v3968, 4
        %v4008 = vsel %vm964, %v3992, %v4007
        %v4009 = vrot.slane %v3996, 4
        %v4010 = vsel %vm964, %v4009, %v3972
        %v4011 = vrot.slane %v3972, 4
        %v4012 = vsel %vm964, %v3996, %v4011
        %v4013 = vrot.slane %v1445, 4
        %v4014 = vsel %vm964, %v4013, %v1441
        %v4015 = vrot.slane %v1441, 4
        %v4016 = vsel %vm964, %v1445, %v4015
        %v4018 = vunpack.c.l.s4 1983009808
        %v4019 = vunpack.c.0.s8 %v4018
        %v4020 = vperm.slane %v4014, %v4019
        %v4022 = vunpack.c.l.s4 1983009808
        %v4023 = vunpack.c.0.s8 %v4022
        %v4024 = vperm.slane %v4016, %v4023
        %v4025 = vrot.slane %v1447, 4
        %v4026 = vsel %vm964, %v4025, %v1443
        %v4027 = vrot.slane %v1443, 4
        %v4028 = vsel %vm964, %v1447, %v4027
        %v4030 = vunpack.c.l.s4 1983009808
        %v4031 = vunpack.c.0.s8 %v4030
        %v4032 = vperm.slane %v4026, %v4031
        %v4034 = vunpack.c.l.s4 1983009808
        %v4035 = vunpack.c.0.s8 %v4034
        %v4036 = vperm.slane %v4028, %v4035
        %v4037 = vrot.slane %v1453, 4
        %v4038 = vsel %vm964, %v4037, %v1449
        %v4039 = vrot.slane %v1449, 4
        %v4040 = vsel %vm964, %v1453, %v4039
        %v4042 = vunpack.c.l.s4 1983009808
        %v4043 = vunpack.c.0.s8 %v4042
        %v4044 = vperm.slane %v4038, %v4043
        %v4046 = vunpack.c.l.s4 1983009808
        %v4047 = vunpack.c.0.s8 %v4046
        %v4048 = vperm.slane %v4040, %v4047
        %v4049 = vrot.slane %v1455, 4
        %v4050 = vsel %vm964, %v4049, %v1451
        %v4051 = vrot.slane %v1451, 4
        %v4052 = vsel %vm964, %v1455, %v4051
        %v4054 = vunpack.c.l.s4 1983009808
        %v4055 = vunpack.c.0.s8 %v4054
        %v4056 = vperm.slane %v4050, %v4055
        %v4058 = vunpack.c.l.s4 1983009808
        %v4059 = vunpack.c.0.s8 %v4058
        %v4060 = vperm.slane %v4052, %v4059
        %v4061 = vrot.slane %v4032, 4
        %v4062 = vsel %vm964, %v4061, %v4020
        %v4063 = vrot.slane %v4020, 4
        %v4064 = vsel %vm964, %v4032, %v4063
        %v4066 = vunpack.c.l.s4 1934713408
        %v4067 = vunpack.c.0.s8 %v4066
        %v4068 = vperm.slane %v4062, %v4067
        %v4070 = vunpack.c.l.s4 1934713408
        %v4071 = vunpack.c.0.s8 %v4070
        %v4072 = vperm.slane %v4064, %v4071
        %v4073 = vrot.slane %v4036, 4
        %v4074 = vsel %vm964, %v4073, %v4024
        %v4075 = vrot.slane %v4024, 4
        %v4076 = vsel %vm964, %v4036, %v4075
        %v4078 = vunpack.c.l.s4 1934713408
        %v4079 = vunpack.c.0.s8 %v4078
        %v4080 = vperm.slane %v4074, %v4079
        %v4082 = vunpack.c.l.s4 1934713408
        %v4083 = vunpack.c.0.s8 %v4082
        %v4084 = vperm.slane %v4076, %v4083
        %v4085 = vrot.slane %v4056, 4
        %v4086 = vsel %vm964, %v4085, %v4044
        %v4087 = vrot.slane %v4044, 4
        %v4088 = vsel %vm964, %v4056, %v4087
        %v4090 = vunpack.c.l.s4 1934713408
        %v4091 = vunpack.c.0.s8 %v4090
        %v4092 = vperm.slane %v4086, %v4091
        %v4094 = vunpack.c.l.s4 1934713408
        %v4095 = vunpack.c.0.s8 %v4094
        %v4096 = vperm.slane %v4088, %v4095
        %v4097 = vrot.slane %v4060, 4
        %v4098 = vsel %vm964, %v4097, %v4048
        %v4099 = vrot.slane %v4048, 4
        %v4100 = vsel %vm964, %v4060, %v4099
        %v4102 = vunpack.c.l.s4 1934713408
        %v4103 = vunpack.c.0.s8 %v4102
        %v4104 = vperm.slane %v4098, %v4103
        %v4106 = vunpack.c.l.s4 1934713408
        %v4107 = vunpack.c.0.s8 %v4106
        %v4108 = vperm.slane %v4100, %v4107
        %v4109 = vrot.slane %v4092, 4
        %v4110 = vsel %vm964, %v4109, %v4068
        %v4111 = vrot.slane %v4068, 4
        %v4112 = vsel %vm964, %v4092, %v4111
        %v4113 = vrot.slane %v4096, 4
        %v4114 = vsel %vm964, %v4113, %v4072
        %v4115 = vrot.slane %v4072, 4
        %v4116 = vsel %vm964, %v4096, %v4115
        %v4117 = vrot.slane %v4104, 4
        %v4118 = vsel %vm964, %v4117, %v4080
        %v4119 = vrot.slane %v4080, 4
        %v4120 = vsel %vm964, %v4104, %v4119
        %v4121 = vrot.slane %v4108, 4
        %v4122 = vsel %vm964, %v4121, %v4084
        %v4123 = vrot.slane %v4084, 4
        %v4124 = vsel %vm964, %v4108, %v4123
        %v4126 = vsel %vm3168, %v3634, 0
        %v4129 = vsel %vm3168, %v3636, 0
        %4131 = vmatpush.msra.mxu0 0.0
        %4132 = vmatpush.msra.mxu0 0.0
        %4133 = vmatpush.msra.mxu0 0.0
        %4134 = vmatpush.msra.mxu0 0.0
        %4135 = vmatpush.msra.mxu0 0.0
        %4136 = vmatpush.msra.mxu0 0.0
        %4137 = vmatpush.msra.mxu0 0.0
        %4138 = vmatpush.msra.mxu0 0.0
        %4139 = vmatpush.msra.mxu0 0.0
        %4140 = vmatpush.msra.mxu0 0.0
        %4141 = vmatpush.msra.mxu0 0.0
        %4142 = vmatpush.msra.mxu0 0.0
        %4143 = vmatpush.msra.mxu0 0.0
        %4144 = vmatpush.msra.mxu0 0.0
        %4145 = vmatpush.msra.mxu0 %v4110
        %4146 = vmatpush.msra.mxu0 %v3998
        %4147 = vmatmul.f32.gmra.mxu0 %v4126
        %v4148 = vpop.f32.mrf.mxu0
        %v4149 = vadd.f32 0.0, %v4148
        %4150 = vmatmul.f32.gmra.mxu0 %v4129
        %v4151 = vpop.f32.mrf.mxu0
        %v4152 = vadd.f32 0.0, %v4151
        %4153 = vdwg.mxu0
        %v4155 = vsel %vm3168, %v3638, 0
        %v4158 = vsel %vm3168, %v3640, 0
        %4160 = vmatpush.msra.mxu0 0.0
        %4161 = vmatpush.msra.mxu0 0.0
        %4162 = vmatpush.msra.mxu0 0.0
        %4163 = vmatpush.msra.mxu0 0.0
        %4164 = vmatpush.msra.mxu0 0.0
        %4165 = vmatpush.msra.mxu0 0.0
        %4166 = vmatpush.msra.mxu0 0.0
        %4167 = vmatpush.msra.mxu0 0.0
        %4168 = vmatpush.msra.mxu0 0.0
        %4169 = vmatpush.msra.mxu0 0.0
        %4170 = vmatpush.msra.mxu0 0.0
        %4171 = vmatpush.msra.mxu0 0.0
        %4172 = vmatpush.msra.mxu0 0.0
        %4173 = vmatpush.msra.mxu0 0.0
        %4174 = vmatpush.msra.mxu0 %v4112
        %4175 = vmatpush.msra.mxu0 %v4000
        %4176 = vmatmul.f32.gmra.mxu0 %v4155
        %v4177 = vpop.f32.mrf.mxu0
        %v4178 = vadd.f32 0.0, %v4177
        %4179 = vmatmul.f32.gmra.mxu0 %v4158
        %v4180 = vpop.f32.mrf.mxu0
        %v4181 = vadd.f32 0.0, %v4180
        %4182 = vdwg.mxu0
        %v4184 = vsel %vm3168, %v3642, 0
        %v4187 = vsel %vm3168, %v3644, 0
        %4189 = vmatpush.msra.mxu0 0.0
        %4190 = vmatpush.msra.mxu0 0.0
        %4191 = vmatpush.msra.mxu0 0.0
        %4192 = vmatpush.msra.mxu0 0.0
        %4193 = vmatpush.msra.mxu0 0.0
        %4194 = vmatpush.msra.mxu0 0.0
        %4195 = vmatpush.msra.mxu0 0.0
        %4196 = vmatpush.msra.mxu0 0.0
        %4197 = vmatpush.msra.mxu0 0.0
        %4198 = vmatpush.msra.mxu0 0.0
        %4199 = vmatpush.msra.mxu0 0.0
        %4200 = vmatpush.msra.mxu0 0.0
        %4201 = vmatpush.msra.mxu0 0.0
        %4202 = vmatpush.msra.mxu0 0.0
        %4203 = vmatpush.msra.mxu0 %v4114
        %4204 = vmatpush.msra.mxu0 %v4002
        %4205 = vmatmul.f32.gmra.mxu0 %v4184
        %v4206 = vpop.f32.mrf.mxu0
        %v4207 = vadd.f32 0.0, %v4206
        %4208 = vmatmul.f32.gmra.mxu0 %v4187
        %v4209 = vpop.f32.mrf.mxu0
        %v4210 = vadd.f32 0.0, %v4209
        %4211 = vdwg.mxu0
        %v4213 = vsel %vm3168, %v3646, 0
        %v4216 = vsel %vm3168, %v3648, 0
        %4218 = vmatpush.msra.mxu0 0.0
        %4219 = vmatpush.msra.mxu0 0.0
        %4220 = vmatpush.msra.mxu0 0.0
        %4221 = vmatpush.msra.mxu0 0.0
        %4222 = vmatpush.msra.mxu0 0.0
        %4223 = vmatpush.msra.mxu0 0.0
        %4224 = vmatpush.msra.mxu0 0.0
        %4225 = vmatpush.msra.mxu0 0.0
        %4226 = vmatpush.msra.mxu0 0.0
        %4227 = vmatpush.msra.mxu0 0.0
        %4228 = vmatpush.msra.mxu0 0.0
        %4229 = vmatpush.msra.mxu0 0.0
        %4230 = vmatpush.msra.mxu0 0.0
        %4231 = vmatpush.msra.mxu0 0.0
        %4232 = vmatpush.msra.mxu0 %v4116
        %4233 = vmatpush.msra.mxu0 %v4004
        %4234 = vmatmul.f32.gmra.mxu0 %v4213
        %v4235 = vpop.f32.mrf.mxu0
        %v4236 = vadd.f32 0.0, %v4235
        %4237 = vmatmul.f32.gmra.mxu0 %v4216
        %v4238 = vpop.f32.mrf.mxu0
        %v4239 = vadd.f32 0.0, %v4238
        %4240 = vdwg.mxu0
        %v4242 = vsel %vm3168, %v3650, 0
        %v4245 = vsel %vm3168, %v3652, 0
        %4247 = vmatpush.msra.mxu0 0.0
        %4248 = vmatpush.msra.mxu0 0.0
        %4249 = vmatpush.msra.mxu0 0.0
        %4250 = vmatpush.msra.mxu0 0.0
        %4251 = vmatpush.msra.mxu0 0.0
        %4252 = vmatpush.msra.mxu0 0.0
        %4253 = vmatpush.msra.mxu0 0.0
        %4254 = vmatpush.msra.mxu0 0.0
        %4255 = vmatpush.msra.mxu0 0.0
        %4256 = vmatpush.msra.mxu0 0.0
        %4257 = vmatpush.msra.mxu0 0.0
        %4258 = vmatpush.msra.mxu0 0.0
        %4259 = vmatpush.msra.mxu0 0.0
        %4260 = vmatpush.msra.mxu0 0.0
        %4261 = vmatpush.msra.mxu0 %v4118
        %4262 = vmatpush.msra.mxu0 %v4006
        %4263 = vmatmul.f32.gmra.mxu0 %v4242
        %v4264 = vpop.f32.mrf.mxu0
        %v4265 = vadd.f32 0.0, %v4264
        %4266 = vmatmul.f32.gmra.mxu0 %v4245
        %v4267 = vpop.f32.mrf.mxu0
        %v4268 = vadd.f32 0.0, %v4267
        %4269 = vdwg.mxu0
        %v4271 = vsel %vm3168, %v3654, 0
        %v4274 = vsel %vm3168, %v3656, 0
        %4276 = vmatpush.msra.mxu0 0.0
        %4277 = vmatpush.msra.mxu0 0.0
        %4278 = vmatpush.msra.mxu0 0.0
        %4279 = vmatpush.msra.mxu0 0.0
        %4280 = vmatpush.msra.mxu0 0.0
        %4281 = vmatpush.msra.mxu0 0.0
        %4282 = vmatpush.msra.mxu0 0.0
        %4283 = vmatpush.msra.mxu0 0.0
        %4284 = vmatpush.msra.mxu0 0.0
        %4285 = vmatpush.msra.mxu0 0.0
        %4286 = vmatpush.msra.mxu0 0.0
        %4287 = vmatpush.msra.mxu0 0.0
        %4288 = vmatpush.msra.mxu0 0.0
        %4289 = vmatpush.msra.mxu0 0.0
        %4290 = vmatpush.msra.mxu0 %v4120
        %4291 = vmatpush.msra.mxu0 %v4008
        %4292 = vmatmul.f32.gmra.mxu0 %v4271
        %v4293 = vpop.f32.mrf.mxu0
        %v4294 = vadd.f32 0.0, %v4293
        %4295 = vmatmul.f32.gmra.mxu0 %v4274
        %v4296 = vpop.f32.mrf.mxu0
        %v4297 = vadd.f32 0.0, %v4296
        %4298 = vdwg.mxu0
        %v4300 = vsel %vm3168, %v3658, 0
        %v4303 = vsel %vm3168, %v3660, 0
        %4305 = vmatpush.msra.mxu0 0.0
        %4306 = vmatpush.msra.mxu0 0.0
        %4307 = vmatpush.msra.mxu0 0.0
        %4308 = vmatpush.msra.mxu0 0.0
        %4309 = vmatpush.msra.mxu0 0.0
        %4310 = vmatpush.msra.mxu0 0.0
        %4311 = vmatpush.msra.mxu0 0.0
        %4312 = vmatpush.msra.mxu0 0.0
        %4313 = vmatpush.msra.mxu0 0.0
        %4314 = vmatpush.msra.mxu0 0.0
        %4315 = vmatpush.msra.mxu0 0.0
        %4316 = vmatpush.msra.mxu0 0.0
        %4317 = vmatpush.msra.mxu0 0.0
        %4318 = vmatpush.msra.mxu0 0.0
        %4319 = vmatpush.msra.mxu0 %v4122
        %4320 = vmatpush.msra.mxu0 %v4010
        %4321 = vmatmul.f32.gmra.mxu0 %v4300
        %v4322 = vpop.f32.mrf.mxu0
        %v4323 = vadd.f32 0.0, %v4322
        %4324 = vmatmul.f32.gmra.mxu0 %v4303
        %v4325 = vpop.f32.mrf.mxu0
        %v4326 = vadd.f32 0.0, %v4325
        %4327 = vdwg.mxu0
        %v4329 = vsel %vm3168, %v3662, 0
        %v4332 = vsel %vm3168, %v3664, 0
        %4334 = vmatpush.msra.mxu0 0.0
        %4335 = vmatpush.msra.mxu0 0.0
        %4336 = vmatpush.msra.mxu0 0.0
        %4337 = vmatpush.msra.mxu0 0.0
        %4338 = vmatpush.msra.mxu0 0.0
        %4339 = vmatpush.msra.mxu0 0.0
        %4340 = vmatpush.msra.mxu0 0.0
        %4341 = vmatpush.msra.mxu0 0.0
        %4342 = vmatpush.msra.mxu0 0.0
        %4343 = vmatpush.msra.mxu0 0.0
        %4344 = vmatpush.msra.mxu0 0.0
        %4345 = vmatpush.msra.mxu0 0.0
        %4346 = vmatpush.msra.mxu0 0.0
        %4347 = vmatpush.msra.mxu0 0.0
        %4348 = vmatpush.msra.mxu0 %v4124
        %4349 = vmatpush.msra.mxu0 %v4012
        %4350 = vmatmul.f32.gmra.mxu0 %v4329
        %v4351 = vpop.f32.mrf.mxu0
        %v4352 = vadd.f32 0.0, %v4351
        %4353 = vmatmul.f32.gmra.mxu0 %v4332
        %v4354 = vpop.f32.mrf.mxu0
        %v4355 = vadd.f32 0.0, %v4354
        %4356 = vdwg.mxu0
        %v4357 = vadd.f32 %v3885, %v4149
        %v4358 = vadd.f32 %v3886, %v4152
        %v4359 = vadd.f32 %v3887, %v4178
        %v4360 = vadd.f32 %v3888, %v4181
        %v4361 = vadd.f32 %v3889, %v4207
        %v4362 = vadd.f32 %v3890, %v4210
        %v4363 = vadd.f32 %v3891, %v4236
        %v4364 = vadd.f32 %v3892, %v4239
        %v4365 = vadd.f32 %v3893, %v4265
        %v4366 = vadd.f32 %v3894, %v4268
        %v4367 = vadd.f32 %v3895, %v4294
        %v4368 = vadd.f32 %v3896, %v4297
        %v4369 = vadd.f32 %v3897, %v4323
        %v4370 = vadd.f32 %v3898, %v4326
        %v4371 = vadd.f32 %v3899, %v4352
        %v4372 = vadd.f32 %v3900, %v4355
        %4373 = vst.msk [vmem:[#allocation5] sm:$0xff] %vm3168, %v4357
        %4374 = vst.msk [vmem:[#allocation5 + $0x8] sm:$0xff] %vm3168, %v4358
        %4375 = vst.msk [vmem:[#allocation5 + $0x10] sm:$0xff] %vm3168, %v4359
        %4376 = vst.msk [vmem:[#allocation5 + $0x18] sm:$0xff] %vm3168, %v4360
        %4377 = vst.msk [vmem:[#allocation5 + $0x20] sm:$0xff] %vm3168, %v4361
        %4378 = vst.msk [vmem:[#allocation5 + $0x28] sm:$0xff] %vm3168, %v4362
        %4379 = vst.msk [vmem:[#allocation5 + $0x30] sm:$0xff] %vm3168, %v4363
        %4380 = vst.msk [vmem:[#allocation5 + $0x38] sm:$0xff] %vm3168, %v4364
        %4381 = vst.msk [vmem:[#allocation5 + $0x40] sm:$0xff] %vm3168, %v4365
        %4382 = vst.msk [vmem:[#allocation5 + $0x48] sm:$0xff] %vm3168, %v4366
        %4383 = vst.msk [vmem:[#allocation5 + $0x50] sm:$0xff] %vm3168, %v4367
        %4384 = vst.msk [vmem:[#allocation5 + $0x58] sm:$0xff] %vm3168, %v4368
        %4385 = vst.msk [vmem:[#allocation5 + $0x60] sm:$0xff] %vm3168, %v4369
        %4386 = vst.msk [vmem:[#allocation5 + $0x68] sm:$0xff] %vm3168, %v4370
        %4387 = vst.msk [vmem:[#allocation5 + $0x70] sm:$0xff] %vm3168, %v4371
        %4388 = vst.msk [vmem:[#allocation5 + $0x78] sm:$0xff] %vm3168, %v4372
        %4389 = vst.msk [vmem:[#allocation3] sm:$0xff] %vm3168, %v3509
        // Predicated region
        $region151: #{attention_forward.4} parent=133 // pred_check
          %p4390 = pneg %p381
        $region152: #{attention_forward.4} parent=133 // pred_check_branch
          %4392 = sbr.rel (%p4390) target = $region154
        $region153: #{attention_forward.4} parent=133 // pred_region
          %v4393 = vld [vmem:[#allocation4] sm:$0xff]
          %v4394 = vrcp.pop %v4393
          %v4395 = vmul.f32 %v4393, %v4394
          %v4396 = vsub.f32 1.0, %v4395
          %v4397 = vmul.f32 %v4394, %v4396
          %v4398 = vadd.f32 %v4394, %v4397
          %vm4399 = vweird.f32 %v4393
          %vm4400 = vweird.f32 %v4394
          %vm4401 = vmor %vm4399, %vm4400
          %v4402 = vsel %vm4401, %v4394, %v4398
          %v4403 = vand.u32 2147483647, %v4393
          %vm4404 = vcmp.eq.f32.partialorder %v4403, 8.507059e+37
          %v4405 = vand.u32 %v4393, 2147483648
          %v4406 = vor.u32 1.1754944e-38, %v4405
          %v4407 = vsel %vm4404, %v4406, %v4402
          %v4408 = vld [vmem:[#allocation5] sm:$0xff]
          %v4409 = vld [vmem:[#allocation5 + $0x8] sm:$0xff]
          %v4410 = vld [vmem:[#allocation5 + $0x10] sm:$0xff]
          %v4411 = vld [vmem:[#allocation5 + $0x18] sm:$0xff]
          %v4412 = vld [vmem:[#allocation5 + $0x20] sm:$0xff]
          %v4413 = vld [vmem:[#allocation5 + $0x28] sm:$0xff]
          %v4414 = vld [vmem:[#allocation5 + $0x30] sm:$0xff]
          %v4415 = vld [vmem:[#allocation5 + $0x38] sm:$0xff]
          %v4416 = vld [vmem:[#allocation5 + $0x40] sm:$0xff]
          %v4417 = vld [vmem:[#allocation5 + $0x48] sm:$0xff]
          %v4418 = vld [vmem:[#allocation5 + $0x50] sm:$0xff]
          %v4419 = vld [vmem:[#allocation5 + $0x58] sm:$0xff]
          %v4420 = vld [vmem:[#allocation5 + $0x60] sm:$0xff]
          %v4421 = vld [vmem:[#allocation5 + $0x68] sm:$0xff]
          %v4422 = vld [vmem:[#allocation5 + $0x70] sm:$0xff]
          %v4423 = vld [vmem:[#allocation5 + $0x78] sm:$0xff]
          %v4424 = vperm.slane %v4407, 0
          %v4425 = vlaneseq
          %v4426 = vshrl.u32 %v4425, 7
          %4428 = vset.pattern.permute.xlu0 %v4426
          %4429 = vperm.xlu0 %4428, %v4424
          %v4430 = vpop.permute.xlu0 %4429
          %v4431 = vlaneseq
          %v4432 = vshrl.u32 %v4431, 7
          %v4433 = vadd.s32 %v4432, 8
          %4434 = vset.pattern.permute.xlu0 %v4433
          %4435 = vperm.xlu0 %4434, %v4424
          %v4436 = vpop.permute.xlu0 %4435
          %v4437 = vperm.slane %v4407, 1
          %v4438 = vlaneseq
          %v4439 = vshrl.u32 %v4438, 7
          %4441 = vset.pattern.permute.xlu0 %v4439
          %4442 = vperm.xlu0 %4441, %v4437
          %v4443 = vpop.permute.xlu0 %4442
          %v4444 = vlaneseq
          %v4445 = vshrl.u32 %v4444, 7
          %v4446 = vadd.s32 %v4445, 8
          %4447 = vset.pattern.permute.xlu0 %v4446
          %4448 = vperm.xlu0 %4447, %v4437
          %v4449 = vpop.permute.xlu0 %4448
          %v4450 = vperm.slane %v4407, 2
          %v4451 = vlaneseq
          %v4452 = vshrl.u32 %v4451, 7
          %4454 = vset.pattern.permute.xlu0 %v4452
          %4455 = vperm.xlu0 %4454, %v4450
          %v4456 = vpop.permute.xlu0 %4455
          %v4457 = vlaneseq
          %v4458 = vshrl.u32 %v4457, 7
          %v4459 = vadd.s32 %v4458, 8
          %4460 = vset.pattern.permute.xlu0 %v4459
          %4461 = vperm.xlu0 %4460, %v4450
          %v4462 = vpop.permute.xlu0 %4461
          %v4463 = vperm.slane %v4407, 3
          %v4464 = vlaneseq
          %v4465 = vshrl.u32 %v4464, 7
          %4467 = vset.pattern.permute.xlu0 %v4465
          %4468 = vperm.xlu0 %4467, %v4463
          %v4469 = vpop.permute.xlu0 %4468
          %v4470 = vlaneseq
          %v4471 = vshrl.u32 %v4470, 7
          %v4472 = vadd.s32 %v4471, 8
          %4473 = vset.pattern.permute.xlu0 %v4472
          %4474 = vperm.xlu0 %4473, %v4463
          %v4475 = vpop.permute.xlu0 %4474
          %v4476 = vperm.slane %v4407, 4
          %v4477 = vlaneseq
          %v4478 = vshrl.u32 %v4477, 7
          %4480 = vset.pattern.permute.xlu0 %v4478
          %4481 = vperm.xlu0 %4480, %v4476
          %v4482 = vpop.permute.xlu0 %4481
          %v4483 = vlaneseq
          %v4484 = vshrl.u32 %v4483, 7
          %v4485 = vadd.s32 %v4484, 8
          %4486 = vset.pattern.permute.xlu0 %v4485
          %4487 = vperm.xlu0 %4486, %v4476
          %v4488 = vpop.permute.xlu0 %4487
          %v4489 = vperm.slane %v4407, 5
          %v4490 = vlaneseq
          %v4491 = vshrl.u32 %v4490, 7
          %4493 = vset.pattern.permute.xlu0 %v4491
          %4494 = vperm.xlu0 %4493, %v4489
          %v4495 = vpop.permute.xlu0 %4494
          %v4496 = vlaneseq
          %v4497 = vshrl.u32 %v4496, 7
          %v4498 = vadd.s32 %v4497, 8
          %4499 = vset.pattern.permute.xlu0 %v4498
          %4500 = vperm.xlu0 %4499, %v4489
          %v4501 = vpop.permute.xlu0 %4500
          %v4502 = vperm.slane %v4407, 6
          %v4503 = vlaneseq
          %v4504 = vshrl.u32 %v4503, 7
          %4506 = vset.pattern.permute.xlu0 %v4504
          %4507 = vperm.xlu0 %4506, %v4502
          %v4508 = vpop.permute.xlu0 %4507
          %v4509 = vlaneseq
          %v4510 = vshrl.u32 %v4509, 7
          %v4511 = vadd.s32 %v4510, 8
          %4512 = vset.pattern.permute.xlu0 %v4511
          %4513 = vperm.xlu0 %4512, %v4502
          %v4514 = vpop.permute.xlu0 %4513
          %v4515 = vperm.slane %v4407, 7
          %v4516 = vlaneseq
          %v4517 = vshrl.u32 %v4516, 7
          %4519 = vset.pattern.permute.xlu0 %v4517
          %4520 = vperm.xlu0 %4519, %v4515
          %v4521 = vpop.permute.xlu0 %4520
          %v4522 = vlaneseq
          %v4523 = vshrl.u32 %v4522, 7
          %v4524 = vadd.s32 %v4523, 8
          %4525 = vset.pattern.permute.xlu0 %v4524
          %4526 = vperm.xlu0 %4525, %v4515
          %v4527 = vpop.permute.xlu0 %4526
          %v4528 = vmul.f32 %v4408, %v4430
          %v4529 = vmul.f32 %v4409, %v4436
          %v4530 = vmul.f32 %v4410, %v4443
          %v4531 = vmul.f32 %v4411, %v4449
          %v4532 = vmul.f32 %v4412, %v4456
          %v4533 = vmul.f32 %v4413, %v4462
          %v4534 = vmul.f32 %v4414, %v4469
          %v4535 = vmul.f32 %v4415, %v4475
          %v4536 = vmul.f32 %v4416, %v4482
          %v4537 = vmul.f32 %v4417, %v4488
          %v4538 = vmul.f32 %v4418, %v4495
          %v4539 = vmul.f32 %v4419, %v4501
          %v4540 = vmul.f32 %v4420, %v4508
          %v4541 = vmul.f32 %v4421, %v4514
          %v4542 = vmul.f32 %v4422, %v4521
          %v4543 = vmul.f32 %v4423, %v4527
          %v4544 = vrot.slane %v4532, 4
          %v4545 = vsel %vm964, %v4544, %v4528
          %v4546 = vrot.slane %v4528, 4
          %v4547 = vsel %vm964, %v4532, %v4546
          %v4549 = vunpack.c.l.s4 1983009808
          %v4550 = vunpack.c.0.s8 %v4549
          %v4551 = vperm.slane %v4545, %v4550
          %v4553 = vunpack.c.l.s4 1983009808
          %v4554 = vunpack.c.0.s8 %v4553
          %v4555 = vperm.slane %v4547, %v4554
          %v4556 = vrot.slane %v4534, 4
          %v4557 = vsel %vm964, %v4556, %v4530
          %v4558 = vrot.slane %v4530, 4
          %v4559 = vsel %vm964, %v4534, %v4558
          %v4561 = vunpack.c.l.s4 1983009808
          %v4562 = vunpack.c.0.s8 %v4561
          %v4563 = vperm.slane %v4557, %v4562
          %v4565 = vunpack.c.l.s4 1983009808
          %v4566 = vunpack.c.0.s8 %v4565
          %v4567 = vperm.slane %v4559, %v4566
          %v4568 = vrot.slane %v4540, 4
          %v4569 = vsel %vm964, %v4568, %v4536
          %v4570 = vrot.slane %v4536, 4
          %v4571 = vsel %vm964, %v4540, %v4570
          %v4573 = vunpack.c.l.s4 1983009808
          %v4574 = vunpack.c.0.s8 %v4573
          %v4575 = vperm.slane %v4569, %v4574
          %v4577 = vunpack.c.l.s4 1983009808
          %v4578 = vunpack.c.0.s8 %v4577
          %v4579 = vperm.slane %v4571, %v4578
          %v4580 = vrot.slane %v4542, 4
          %v4581 = vsel %vm964, %v4580, %v4538
          %v4582 = vrot.slane %v4538, 4
          %v4583 = vsel %vm964, %v4542, %v4582
          %v4585 = vunpack.c.l.s4 1983009808
          %v4586 = vunpack.c.0.s8 %v4585
          %v4587 = vperm.slane %v4581, %v4586
          %v4589 = vunpack.c.l.s4 1983009808
          %v4590 = vunpack.c.0.s8 %v4589
          %v4591 = vperm.slane %v4583, %v4590
          %v4592 = vrot.slane %v4563, 4
          %v4593 = vsel %vm964, %v4592, %v4551
          %v4594 = vrot.slane %v4551, 4
          %v4595 = vsel %vm964, %v4563, %v4594
          %v4597 = vunpack.c.l.s4 1934713408
          %v4598 = vunpack.c.0.s8 %v4597
          %v4599 = vperm.slane %v4593, %v4598
          %v4601 = vunpack.c.l.s4 1934713408
          %v4602 = vunpack.c.0.s8 %v4601
          %v4603 = vperm.slane %v4595, %v4602
          %v4604 = vrot.slane %v4567, 4
          %v4605 = vsel %vm964, %v4604, %v4555
          %v4606 = vrot.slane %v4555, 4
          %v4607 = vsel %vm964, %v4567, %v4606
          %v4609 = vunpack.c.l.s4 1934713408
          %v4610 = vunpack.c.0.s8 %v4609
          %v4611 = vperm.slane %v4605, %v4610
          %v4613 = vunpack.c.l.s4 1934713408
          %v4614 = vunpack.c.0.s8 %v4613
          %v4615 = vperm.slane %v4607, %v4614
          %v4616 = vrot.slane %v4587, 4
          %v4617 = vsel %vm964, %v4616, %v4575
          %v4618 = vrot.slane %v4575, 4
          %v4619 = vsel %vm964, %v4587, %v4618
          %v4621 = vunpack.c.l.s4 1934713408
          %v4622 = vunpack.c.0.s8 %v4621
          %v4623 = vperm.slane %v4617, %v4622
          %v4625 = vunpack.c.l.s4 1934713408
          %v4626 = vunpack.c.0.s8 %v4625
          %v4627 = vperm.slane %v4619, %v4626
          %v4628 = vrot.slane %v4591, 4
          %v4629 = vsel %vm964, %v4628, %v4579
          %v4630 = vrot.slane %v4579, 4
          %v4631 = vsel %vm964, %v4591, %v4630
          %v4633 = vunpack.c.l.s4 1934713408
          %v4634 = vunpack.c.0.s8 %v4633
          %v4635 = vperm.slane %v4629, %v4634
          %v4637 = vunpack.c.l.s4 1934713408
          %v4638 = vunpack.c.0.s8 %v4637
          %v4639 = vperm.slane %v4631, %v4638
          %v4640 = vrot.slane %v4623, 4
          %v4641 = vsel %vm964, %v4640, %v4599
          %v4642 = vrot.slane %v4599, 4
          %v4643 = vsel %vm964, %v4623, %v4642
          %v4644 = vrot.slane %v4627, 4
          %v4645 = vsel %vm964, %v4644, %v4603
          %v4646 = vrot.slane %v4603, 4
          %v4647 = vsel %vm964, %v4627, %v4646
          %v4648 = vrot.slane %v4635, 4
          %v4649 = vsel %vm964, %v4648, %v4611
          %v4650 = vrot.slane %v4611, 4
          %v4651 = vsel %vm964, %v4635, %v4650
          %v4652 = vrot.slane %v4639, 4
          %v4653 = vsel %vm964, %v4652, %v4615
          %v4654 = vrot.slane %v4615, 4
          %v4655 = vsel %vm964, %v4639, %v4654
          %v4656 = vrot.slane %v4533, 4
          %v4657 = vsel %vm964, %v4656, %v4529
          %v4658 = vrot.slane %v4529, 4
          %v4659 = vsel %vm964, %v4533, %v4658
          %v4661 = vunpack.c.l.s4 1983009808
          %v4662 = vunpack.c.0.s8 %v4661
          %v4663 = vperm.slane %v4657, %v4662
          %v4665 = vunpack.c.l.s4 1983009808
          %v4666 = vunpack.c.0.s8 %v4665
          %v4667 = vperm.slane %v4659, %v4666
          %v4668 = vrot.slane %v4535, 4
          %v4669 = vsel %vm964, %v4668, %v4531
          %v4670 = vrot.slane %v4531, 4
          %v4671 = vsel %vm964, %v4535, %v4670
          %v4673 = vunpack.c.l.s4 1983009808
          %v4674 = vunpack.c.0.s8 %v4673
          %v4675 = vperm.slane %v4669, %v4674
          %v4677 = vunpack.c.l.s4 1983009808
          %v4678 = vunpack.c.0.s8 %v4677
          %v4679 = vperm.slane %v4671, %v4678
          %v4680 = vrot.slane %v4541, 4
          %v4681 = vsel %vm964, %v4680, %v4537
          %v4682 = vrot.slane %v4537, 4
          %v4683 = vsel %vm964, %v4541, %v4682
          %v4685 = vunpack.c.l.s4 1983009808
          %v4686 = vunpack.c.0.s8 %v4685
          %v4687 = vperm.slane %v4681, %v4686
          %v4689 = vunpack.c.l.s4 1983009808
          %v4690 = vunpack.c.0.s8 %v4689
          %v4691 = vperm.slane %v4683, %v4690
          %v4692 = vrot.slane %v4543, 4
          %v4693 = vsel %vm964, %v4692, %v4539
          %v4694 = vrot.slane %v4539, 4
          %v4695 = vsel %vm964, %v4543, %v4694
          %v4697 = vunpack.c.l.s4 1983009808
          %v4698 = vunpack.c.0.s8 %v4697
          %v4699 = vperm.slane %v4693, %v4698
          %v4701 = vunpack.c.l.s4 1983009808
          %v4702 = vunpack.c.0.s8 %v4701
          %v4703 = vperm.slane %v4695, %v4702
          %v4704 = vrot.slane %v4675, 4
          %v4705 = vsel %vm964, %v4704, %v4663
          %v4706 = vrot.slane %v4663, 4
          %v4707 = vsel %vm964, %v4675, %v4706
          %v4709 = vunpack.c.l.s4 1934713408
          %v4710 = vunpack.c.0.s8 %v4709
          %v4711 = vperm.slane %v4705, %v4710
          %v4713 = vunpack.c.l.s4 1934713408
          %v4714 = vunpack.c.0.s8 %v4713
          %v4715 = vperm.slane %v4707, %v4714
          %v4716 = vrot.slane %v4679, 4
          %v4717 = vsel %vm964, %v4716, %v4667
          %v4718 = vrot.slane %v4667, 4
          %v4719 = vsel %vm964, %v4679, %v4718
          %v4721 = vunpack.c.l.s4 1934713408
          %v4722 = vunpack.c.0.s8 %v4721
          %v4723 = vperm.slane %v4717, %v4722
          %v4725 = vunpack.c.l.s4 1934713408
          %v4726 = vunpack.c.0.s8 %v4725
          %v4727 = vperm.slane %v4719, %v4726
          %v4728 = vrot.slane %v4699, 4
          %v4729 = vsel %vm964, %v4728, %v4687
          %v4730 = vrot.slane %v4687, 4
          %v4731 = vsel %vm964, %v4699, %v4730
          %v4733 = vunpack.c.l.s4 1934713408
          %v4734 = vunpack.c.0.s8 %v4733
          %v4735 = vperm.slane %v4729, %v4734
          %v4737 = vunpack.c.l.s4 1934713408
          %v4738 = vunpack.c.0.s8 %v4737
          %v4739 = vperm.slane %v4731, %v4738
          %v4740 = vrot.slane %v4703, 4
          %v4741 = vsel %vm964, %v4740, %v4691
          %v4742 = vrot.slane %v4691, 4
          %v4743 = vsel %vm964, %v4703, %v4742
          %v4745 = vunpack.c.l.s4 1934713408
          %v4746 = vunpack.c.0.s8 %v4745
          %v4747 = vperm.slane %v4741, %v4746
          %v4749 = vunpack.c.l.s4 1934713408
          %v4750 = vunpack.c.0.s8 %v4749
          %v4751 = vperm.slane %v4743, %v4750
          %v4752 = vrot.slane %v4735, 4
          %v4753 = vsel %vm964, %v4752, %v4711
          %v4754 = vrot.slane %v4711, 4
          %v4755 = vsel %vm964, %v4735, %v4754
          %v4756 = vrot.slane %v4739, 4
          %v4757 = vsel %vm964, %v4756, %v4715
          %v4758 = vrot.slane %v4715, 4
          %v4759 = vsel %vm964, %v4739, %v4758
          %v4760 = vrot.slane %v4747, 4
          %v4761 = vsel %vm964, %v4760, %v4723
          %v4762 = vrot.slane %v4723, 4
          %v4763 = vsel %vm964, %v4747, %v4762
          %v4764 = vrot.slane %v4751, 4
          %v4765 = vsel %vm964, %v4764, %v4727
          %v4766 = vrot.slane %v4727, 4
          %v4767 = vsel %vm964, %v4751, %v4766
          %v4768 = vrot.slane %v4645, 4
          %v4769 = vsel %vm964, %v4768, %v4641
          %v4770 = vrot.slane %v4641, 4
          %v4771 = vsel %vm964, %v4645, %v4770
          %v4773 = vunpack.c.l.s4 1983009808
          %v4774 = vunpack.c.0.s8 %v4773
          %v4775 = vperm.slane %v4769, %v4774
          %v4777 = vunpack.c.l.s4 1983009808
          %v4778 = vunpack.c.0.s8 %v4777
          %v4779 = vperm.slane %v4771, %v4778
          %v4780 = vrot.slane %v4647, 4
          %v4781 = vsel %vm964, %v4780, %v4643
          %v4782 = vrot.slane %v4643, 4
          %v4783 = vsel %vm964, %v4647, %v4782
          %v4785 = vunpack.c.l.s4 1983009808
          %v4786 = vunpack.c.0.s8 %v4785
          %v4787 = vperm.slane %v4781, %v4786
          %v4789 = vunpack.c.l.s4 1983009808
          %v4790 = vunpack.c.0.s8 %v4789
          %v4791 = vperm.slane %v4783, %v4790
          %v4792 = vrot.slane %v4653, 4
          %v4793 = vsel %vm964, %v4792, %v4649
          %v4794 = vrot.slane %v4649, 4
          %v4795 = vsel %vm964, %v4653, %v4794
          %v4797 = vunpack.c.l.s4 1983009808
          %v4798 = vunpack.c.0.s8 %v4797
          %v4799 = vperm.slane %v4793, %v4798
          %v4801 = vunpack.c.l.s4 1983009808
          %v4802 = vunpack.c.0.s8 %v4801
          %v4803 = vperm.slane %v4795, %v4802
          %v4804 = vrot.slane %v4655, 4
          %v4805 = vsel %vm964, %v4804, %v4651
          %v4806 = vrot.slane %v4651, 4
          %v4807 = vsel %vm964, %v4655, %v4806
          %v4809 = vunpack.c.l.s4 1983009808
          %v4810 = vunpack.c.0.s8 %v4809
          %v4811 = vperm.slane %v4805, %v4810
          %v4813 = vunpack.c.l.s4 1983009808
          %v4814 = vunpack.c.0.s8 %v4813
          %v4815 = vperm.slane %v4807, %v4814
          %v4816 = vrot.slane %v4787, 4
          %v4817 = vsel %vm964, %v4816, %v4775
          %v4818 = vrot.slane %v4775, 4
          %v4819 = vsel %vm964, %v4787, %v4818
          %v4821 = vunpack.c.l.s4 1934713408
          %v4822 = vunpack.c.0.s8 %v4821
          %v4823 = vperm.slane %v4817, %v4822
          %v4825 = vunpack.c.l.s4 1934713408
          %v4826 = vunpack.c.0.s8 %v4825
          %v4827 = vperm.slane %v4819, %v4826
          %v4828 = vrot.slane %v4791, 4
          %v4829 = vsel %vm964, %v4828, %v4779
          %v4830 = vrot.slane %v4779, 4
          %v4831 = vsel %vm964, %v4791, %v4830
          %v4833 = vunpack.c.l.s4 1934713408
          %v4834 = vunpack.c.0.s8 %v4833
          %v4835 = vperm.slane %v4829, %v4834
          %v4837 = vunpack.c.l.s4 1934713408
          %v4838 = vunpack.c.0.s8 %v4837
          %v4839 = vperm.slane %v4831, %v4838
          %v4840 = vrot.slane %v4811, 4
          %v4841 = vsel %vm964, %v4840, %v4799
          %v4842 = vrot.slane %v4799, 4
          %v4843 = vsel %vm964, %v4811, %v4842
          %v4845 = vunpack.c.l.s4 1934713408
          %v4846 = vunpack.c.0.s8 %v4845
          %v4847 = vperm.slane %v4841, %v4846
          %v4849 = vunpack.c.l.s4 1934713408
          %v4850 = vunpack.c.0.s8 %v4849
          %v4851 = vperm.slane %v4843, %v4850
          %v4852 = vrot.slane %v4815, 4
          %v4853 = vsel %vm964, %v4852, %v4803
          %v4854 = vrot.slane %v4803, 4
          %v4855 = vsel %vm964, %v4815, %v4854
          %v4857 = vunpack.c.l.s4 1934713408
          %v4858 = vunpack.c.0.s8 %v4857
          %v4859 = vperm.slane %v4853, %v4858
          %v4861 = vunpack.c.l.s4 1934713408
          %v4862 = vunpack.c.0.s8 %v4861
          %v4863 = vperm.slane %v4855, %v4862
          %v4864 = vrot.slane %v4847, 4
          %v4865 = vsel %vm964, %v4864, %v4823
          %v4866 = vrot.slane %v4823, 4
          %v4867 = vsel %vm964, %v4847, %v4866
          %v4868 = vrot.slane %v4851, 4
          %v4869 = vsel %vm964, %v4868, %v4827
          %v4870 = vrot.slane %v4827, 4
          %v4871 = vsel %vm964, %v4851, %v4870
          %v4872 = vrot.slane %v4859, 4
          %v4873 = vsel %vm964, %v4872, %v4835
          %v4874 = vrot.slane %v4835, 4
          %v4875 = vsel %vm964, %v4859, %v4874
          %v4876 = vrot.slane %v4863, 4
          %v4877 = vsel %vm964, %v4876, %v4839
          %v4878 = vrot.slane %v4839, 4
          %v4879 = vsel %vm964, %v4863, %v4878
          %v4880 = vrot.slane %v4757, 4
          %v4881 = vsel %vm964, %v4880, %v4753
          %v4882 = vrot.slane %v4753, 4
          %v4883 = vsel %vm964, %v4757, %v4882
          %v4885 = vunpack.c.l.s4 1983009808
          %v4886 = vunpack.c.0.s8 %v4885
          %v4887 = vperm.slane %v4881, %v4886
          %v4889 = vunpack.c.l.s4 1983009808
          %v4890 = vunpack.c.0.s8 %v4889
          %v4891 = vperm.slane %v4883, %v4890
          %v4892 = vrot.slane %v4759, 4
          %v4893 = vsel %vm964, %v4892, %v4755
          %v4894 = vrot.slane %v4755, 4
          %v4895 = vsel %vm964, %v4759, %v4894
          %v4897 = vunpack.c.l.s4 1983009808
          %v4898 = vunpack.c.0.s8 %v4897
          %v4899 = vperm.slane %v4893, %v4898
          %v4901 = vunpack.c.l.s4 1983009808
          %v4902 = vunpack.c.0.s8 %v4901
          %v4903 = vperm.slane %v4895, %v4902
          %v4904 = vrot.slane %v4765, 4
          %v4905 = vsel %vm964, %v4904, %v4761
          %v4906 = vrot.slane %v4761, 4
          %v4907 = vsel %vm964, %v4765, %v4906
          %v4909 = vunpack.c.l.s4 1983009808
          %v4910 = vunpack.c.0.s8 %v4909
          %v4911 = vperm.slane %v4905, %v4910
          %v4913 = vunpack.c.l.s4 1983009808
          %v4914 = vunpack.c.0.s8 %v4913
          %v4915 = vperm.slane %v4907, %v4914
          %v4916 = vrot.slane %v4767, 4
          %v4917 = vsel %vm964, %v4916, %v4763
          %v4918 = vrot.slane %v4763, 4
          %v4919 = vsel %vm964, %v4767, %v4918
          %v4921 = vunpack.c.l.s4 1983009808
          %v4922 = vunpack.c.0.s8 %v4921
          %v4923 = vperm.slane %v4917, %v4922
          %v4925 = vunpack.c.l.s4 1983009808
          %v4926 = vunpack.c.0.s8 %v4925
          %v4927 = vperm.slane %v4919, %v4926
          %v4928 = vrot.slane %v4899, 4
          %v4929 = vsel %vm964, %v4928, %v4887
          %v4930 = vrot.slane %v4887, 4
          %v4931 = vsel %vm964, %v4899, %v4930
          %v4933 = vunpack.c.l.s4 1934713408
          %v4934 = vunpack.c.0.s8 %v4933
          %v4935 = vperm.slane %v4929, %v4934
          %v4937 = vunpack.c.l.s4 1934713408
          %v4938 = vunpack.c.0.s8 %v4937
          %v4939 = vperm.slane %v4931, %v4938
          %v4940 = vrot.slane %v4903, 4
          %v4941 = vsel %vm964, %v4940, %v4891
          %v4942 = vrot.slane %v4891, 4
          %v4943 = vsel %vm964, %v4903, %v4942
          %v4945 = vunpack.c.l.s4 1934713408
          %v4946 = vunpack.c.0.s8 %v4945
          %v4947 = vperm.slane %v4941, %v4946
          %v4949 = vunpack.c.l.s4 1934713408
          %v4950 = vunpack.c.0.s8 %v4949
          %v4951 = vperm.slane %v4943, %v4950
          %v4952 = vrot.slane %v4923, 4
          %v4953 = vsel %vm964, %v4952, %v4911
          %v4954 = vrot.slane %v4911, 4
          %v4955 = vsel %vm964, %v4923, %v4954
          %v4957 = vunpack.c.l.s4 1934713408
          %v4958 = vunpack.c.0.s8 %v4957
          %v4959 = vperm.slane %v4953, %v4958
          %v4961 = vunpack.c.l.s4 1934713408
          %v4962 = vunpack.c.0.s8 %v4961
          %v4963 = vperm.slane %v4955, %v4962
          %v4964 = vrot.slane %v4927, 4
          %v4965 = vsel %vm964, %v4964, %v4915
          %v4966 = vrot.slane %v4915, 4
          %v4967 = vsel %vm964, %v4927, %v4966
          %v4969 = vunpack.c.l.s4 1934713408
          %v4970 = vunpack.c.0.s8 %v4969
          %v4971 = vperm.slane %v4965, %v4970
          %v4973 = vunpack.c.l.s4 1934713408
          %v4974 = vunpack.c.0.s8 %v4973
          %v4975 = vperm.slane %v4967, %v4974
          %v4976 = vrot.slane %v4959, 4
          %v4977 = vsel %vm964, %v4976, %v4935
          %v4978 = vrot.slane %v4935, 4
          %v4979 = vsel %vm964, %v4959, %v4978
          %v4980 = vrot.slane %v4963, 4
          %v4981 = vsel %vm964, %v4980, %v4939
          %v4982 = vrot.slane %v4939, 4
          %v4983 = vsel %vm964, %v4963, %v4982
          %v4984 = vrot.slane %v4971, 4
          %v4985 = vsel %vm964, %v4984, %v4947
          %v4986 = vrot.slane %v4947, 4
          %v4987 = vsel %vm964, %v4971, %v4986
          %v4988 = vrot.slane %v4975, 4
          %v4989 = vsel %vm964, %v4988, %v4951
          %v4990 = vrot.slane %v4951, 4
          %v4991 = vsel %vm964, %v4975, %v4990
          %4994 = vrot.lane.b32.xlu0 %v4867, 16
          %v4995 = vpop.permute.xlu0 %4994
          %4996 = vrot.lane.b32.xlu0 %v4979, 16
          %v4997 = vpop.permute.xlu0 %4996
          %5002 = vrot.lane.b32.xlu0 %v4869, 32
          %v5003 = vpop.permute.xlu0 %5002
          %5004 = vrot.lane.b32.xlu0 %v4981, 32
          %v5005 = vpop.permute.xlu0 %5004
          %5010 = vrot.lane.b32.xlu0 %v4871, 48
          %v5011 = vpop.permute.xlu0 %5010
          %5012 = vrot.lane.b32.xlu0 %v4983, 48
          %v5013 = vpop.permute.xlu0 %5012
          %5018 = vrot.lane.b32.xlu0 %v4873, 64
          %v5019 = vpop.permute.xlu0 %5018
          %5020 = vrot.lane.b32.xlu0 %v4985, 64
          %v5021 = vpop.permute.xlu0 %5020
          %5026 = vrot.lane.b32.xlu0 %v4875, 80
          %v5027 = vpop.permute.xlu0 %5026
          %5028 = vrot.lane.b32.xlu0 %v4987, 80
          %v5029 = vpop.permute.xlu0 %5028
          %5034 = vrot.lane.b32.xlu0 %v4877, 96
          %v5035 = vpop.permute.xlu0 %5034
          %5036 = vrot.lane.b32.xlu0 %v4989, 96
          %v5037 = vpop.permute.xlu0 %5036
          %5042 = vrot.lane.b32.xlu0 %v4879, 112
          %v5043 = vpop.permute.xlu0 %5042
          %5044 = vrot.lane.b32.xlu0 %v4991, 112
          %v5045 = vpop.permute.xlu0 %5044
          %v5048 = vsel %vm3168, %v4865, %v4995
          %v5049 = vsel %vm3168, %v4977, %v4997
          %vm5050 = vcmask 261120
          %v5051 = vsel %vm5050, %v5048, %v5003
          %v5052 = vsel %vm5050, %v5049, %v5005
          %vm5053 = vcmask 392192
          %v5054 = vsel %vm5053, %v5051, %v5011
          %v5055 = vsel %vm5053, %v5052, %v5013
          %vm5056 = vcmask 523264
          %v5057 = vsel %vm5056, %v5054, %v5019
          %v5058 = vsel %vm5056, %v5055, %v5021
          %vm5059 = vcmask 654336
          %v5060 = vsel %vm5059, %v5057, %v5027
          %v5061 = vsel %vm5059, %v5058, %v5029
          %vm5062 = vcmask 785408
          %v5063 = vsel %vm5062, %v5060, %v5035
          %v5064 = vsel %vm5062, %v5061, %v5037
          %vm5065 = vcmask 916480
          %v5066 = vsel %vm5065, %v5063, %v5043
          %v5067 = vsel %vm5065, %v5064, %v5045
          %5068 = vst [vmem:[%s379] sm:$0xff] %v5066
          %5069 = vst [vmem:[%s379 + $0x8] sm:$0xff] %v5067
        $region154: #{attention_forward.4} parent=133 // pred_fallthru
          _
        %s5070 = smul.u32 2, %s20
        %p5071 = scmp.lt.s32.totalorder %s19, 1
        %s5072 = scalar_select %p5071, %s19, 1
        %p5073 = scmp.lt.s32.totalorder %s5070, 1
        %s5074 = scalar_select %p5073, %s5070, 1
        %s5075 = smul.addr %s5072, 2
        %s5076 = sadd.s32 %s5074, %s5075
        %s5077 = smul.addr %s5076, 8
        %s5078 = scalar_lea.vmem %s3, %s5077
        // Predicated region
        $region155: #{attention_forward.4} parent=133 // pred_check
          %p5079 = pneg %p137
        $region156: #{attention_forward.4} parent=133 // pred_check_branch
          %5081 = sbr.rel (%p5079) target = $region158
        $region157: #{attention_forward.4} parent=133 // pred_region
          %s5082 = smul.u32 2, %s20
        $region158: #{attention_forward.4} parent=133 // pred_fallthru
          _
      $region134: #{attention_forward.4} parent=5 // pred_fallthru
        _
      %p5083 = scmp.le.s32.totalorder 2, %s9
      // Predicated region
      $region159: #{attention_forward.4} parent=5 // pred_check
        %p5084 = pneg %p5083
      $region160: #{attention_forward.4} parent=5 // pred_check_branch
        %5086 = sbr.rel (%p5084) target = $region162
      $region161: #{attention_forward.4} parent=5 // pred_region
        %s5087 = ssub.s32 %s9, 2
        // Predicated region
        $region163: #{attention_forward.4} parent=161 // pred_check
          %p5088 = pneg %p143
        $region164: #{attention_forward.4} parent=161 // pred_check_branch
          %5090 = sbr.rel (%p5088) target = $region166
        $region165: #{attention_forward.4} parent=161 // pred_region
          %s5091 = smul.u32 2, %s23
          %p5092 = scmp.lt.s32.totalorder %s22, 1
          %s5093 = scalar_select %p5092, %s22, 1
          %p5094 = scmp.lt.s32.totalorder %s5091, 1
          %s5095 = scalar_select %p5094, %s5091, 1
          %s5096 = smul.addr %s5093, 2
          %s5097 = sadd.s32 %s5095, %s5096
          %s5098 = smul.addr %s5097, 8
          %s5099 = scalar_lea.vmem %s3, %s5098
        $region166: #{attention_forward.4} parent=161 // pred_fallthru
          _
      $region162: #{attention_forward.4} parent=5 // pred_fallthru
        _
    $region6: #{attention_forward.4} parent=1 // loop_footer
      %s13 = sadd.s32 1, %s9
    $region7: #{attention_forward.4} parent=1 // loop_footer_branch
      %8 = sbr.rel target = $region3
    $region8: #{attention_forward.4} parent=1 // loop_exit
      _

</llo_original>
